<compile_context>
chip_gen: v5e
topology: v5e:2x2
jax: 0.10.0
libtpu: 0.0.40
codegen_flags: <defaults>
</compile_context>

<pallas_src>
import functools

import jax
import jax.numpy as jnp
from jax import lax
from jax.experimental import pallas as pl
from jax.experimental.pallas import tpu as pltpu

NODES = 116   # nodes per graph (hard-coded 116 in the reference module)
NP = 128      # padded node count  (sublane friendly)
FP = 128      # padded feature / embedding dim (lane-dense stores)


# ------------------------------------------------------------------ fused kernel

def _fused_encoder_kernel(a_ref, x_ref, ws_ref, vecs_ref,
                          h_out_ref, pool_out_ref,
                          *, num_layers, eps, n_valid):
    G = x_ref.shape[0]

    # pre-masked, pre-transposed adjacency: A[g, dst, src], bf16 for the MXU path.
    A = a_ref[...]                                                      # (G, NP, NP) bf16

    # node-validity mask regenerated from iota (no DMA of a lane-sparse (NP,1) array)
    flat_ids = lax.broadcasted_iota(jnp.int32, (G * NP, 1), 0) & (NP - 1)
    flat_mask = (flat_ids < NODES).astype(jnp.float32)                  # (G*NP, 1)

    h = x_ref[...]                                                      # (G, NP, FP) bf16

    for l in range(num_layers):
        ws = ws_ref[l]                                                  # (2, FP, FP) bf16
        vecs = vecs_ref[l]                                              # (4, FP)     f32
        b1, b2 = vecs[0:1, :], vecs[1:2, :]
        gamma, beta = vecs[2:3, :], vecs[3:4, :]

        # ---- WGINConv:  out[dst] = sum_src A[dst, src] * h[src]  +  (1 + eps) * h[dst]
        agg = jnp.einsum('gds,gsf->gdf', A, h,
                         preferred_element_type=jnp.float32)            # (G, NP, FP) f32
        z = agg + (1.0 + eps) * h.astype(jnp.float32)

        # shared MLP batched over all graphs: one (G*NP, FP) @ (FP, FP) per Linear
        zf = z.reshape(G * NP, FP).astype(jnp.bfloat16)
        h1 = jnp.maximum(
            jnp.dot(zf, ws[0], preferred_element_type=jnp.float32) + b1, 0.0)
        h2 = jnp.dot(h1.astype(jnp.bfloat16), ws[1],
                     preferred_element_type=jnp.float32) + b2           # (G*NP, FP) f32
        h2 = h2 * flat_mask        # zero padded rows so BN stats only see the valid nodes

        # ---- BatchNorm1d, training-mode batch stats over the G*116 valid nodes
        #      fused single pass:  var = E[x^2] - mean^2  (clamped at 0)
        s1 = jnp.sum(h2, axis=0, keepdims=True)                         # (1, FP)
        s2 = jnp.sum(h2 * h2, axis=0, keepdims=True)                    # (1, FP)
        mean = s1 * (1.0 / n_valid)
        var = jnp.maximum(s2 * (1.0 / n_valid) - mean * mean, 0.0)      # biased, like torch BN
        inv = lax.rsqrt(var + 1e-5)
        scale = inv * gamma
        shift = beta - mean * scale
        y = h2 * scale + shift                                          # single FMA pass
        if l < num_layers - 1:                                          # no ReLU on last layer
            y = jnp.maximum(y, 0.0)

        # bf16-resident between layers; padded rows carry BN-shift garbage but cannot leak
        # into valid rows (padded src cols of A are 0, MLP/BN are row-wise) — masked at the end.
        h = y.reshape(G, NP, FP).astype(jnp.bfloat16)

    hf = h.astype(jnp.float32) * flat_mask.reshape(G, NP, 1)            # final mask once
    pool_out_ref[...] = jnp.sum(hf, axis=1)                             # global_add_pool (G, FP)
    h_out_ref[...] = hf.astype(jnp.bfloat16)                            # (G, NP, FP) lane-dense


# ------------------------------------------------------------------ glue (plain JAX)

def dense_adj_t(src, dst, w, num_graphs):
    """Scatter a global-index COO edge list into per-graph dense, TRANSPOSED adjacencies:
    A[g, dst_local, src_local] = w  (duplicates sum, like scipy coo_matrix)."""
    src = src.astype(jnp.int32)
    dst = dst.astype(jnp.int32)
    g_ids = src // NODES
    lr = src - g_ids * NODES                 # local source
    lc = dst - g_ids * NODES                 # local destination
    A = jnp.zeros((num_graphs, NP, NP), jnp.float32)
    # TODO(synk): for very large E replace this XLA scatter-add with a segment-sum /
    # one-hot-matmul formulation (scatter lowers to a serialized update loop on TPU).
    return A.at[g_ids, lc, lr].add(w.astype(jnp.float32))


def _pad2(m, r, c):
    out = jnp.zeros((r, c), jnp.float32)
    return out.at[:m.shape[0], :m.shape[1]].set(m)


def init_params(key, num_features, emb_dim, num_layers):
    """Per-layer (Linear, ReLU, Linear) + BatchNorm params, zero-padded to FP and packed into
    two dense tensors: ws [L,2,FP,FP] bf16 and vecs [L,4,FP] f32 (b1,b2,gamma,beta)."""
    w_pairs, vec_quads = [], []
    for i in range(num_layers):
        fin = num_features if i == 0 else emb_dim
        key, k1, k2, k3, k4 = jax.random.split(key, 5)
        w1 = jax.random.normal(k1, (fin, emb_dim), jnp.float32) / jnp.sqrt(float(fin))
        b1 = jax.random.normal(k2, (1, emb_dim), jnp.float32) * 0.01
        w2 = jax.random.normal(k3, (emb_dim, emb_dim), jnp.float32) / jnp.sqrt(float(emb_dim))
        b2 = jax.random.normal(k4, (1, emb_dim), jnp.float32) * 0.01
        gamma = jnp.ones((1, emb_dim), jnp.float32)    # BatchNorm1d default weight
        beta = jnp.zeros((1, emb_dim), jnp.float32)    # BatchNorm1d default bias
        w_pairs.append(jnp.stack([_pad2(w1, FP, FP), _pad2(w2, FP, FP)]))      # (2, FP, FP)
        vec_quads.append(jnp.concatenate([_pad2(b1, 1, FP), _pad2(b2, 1, FP),
                                          _pad2(gamma, 1, FP), _pad2(beta, 1, FP)],
                                         axis=0))                             # (4, FP)
    return dict(
        ws=jnp.stack(w_pairs).astype(jnp.bfloat16),    # (L, 2, FP, FP) bf16 — MXU operands
        vecs=jnp.stack(vec_quads),                     # (L, 4, FP) f32
    )


def uni_encoder_forward(params, batch, x, edge_index, edge_attr, edge_weight,
                        batch_aug_edge_weight, emb_dim, drop_ratio=0.0, eps=0.0):
    """pooling_type='standard' forward: returns (xpool [G, emb], x [G*116, emb])."""
    num_graphs = x.shape[0] // NODES              # static (no device->host sync on batch[-1])
    num_layers = params['ws'].shape[0]

    # --- edge preprocessing (replaces python .index() + scipy coo_matrix splitting) ---
    # Both adjacencies sum duplicate edges independently BEFORE the elementwise product
    # (exactly like the reference's coo_matrix -> toarray -> multiply); the masked product is
    # built here and shipped as a single bf16 tensor (dominant HBM input, 4x smaller than 2xf32).
    adj_w = dense_adj_t(edge_index[0], edge_index[1], edge_weight, num_graphs)
    adj_b = dense_adj_t(batch_aug_edge_weight[0], batch_aug_edge_weight[1],
                        batch_aug_edge_weight[2], num_graphs)
    adj = (adj_w * adj_b).astype(jnp.bfloat16)                           # (G, NP, NP) bf16

    # --- pad node features to [G, NP, FP], bf16 (MXU consumes bf16 anyway) ---
    f_in = x.shape[-1]
    xp = jnp.zeros((num_graphs, NP, FP), jnp.bfloat16)
    xp = xp.at[:, :NODES, :f_in].set(
        x.reshape(num_graphs, NODES, f_in).astype(jnp.bfloat16))

    kernel = functools.partial(_fused_encoder_kernel,
                               num_layers=num_layers, eps=eps,
                               n_valid=float(num_graphs * NODES))

    h_pad, pool_pad = pl.pallas_call(
        kernel,
        out_shape=(jax.ShapeDtypeStruct((num_graphs, NP, FP), jnp.bfloat16),
                   jax.ShapeDtypeStruct((num_graphs, FP), jnp.float32)),
        compiler_params=pltpu.CompilerParams(vmem_limit_bytes=32 * 1024 * 1024),
    )(adj, xp, params['ws'], params['vecs'])

    xpool = pool_pad[:, :emb_dim]                                        # (G, emb) f32
    x_nodes = h_pad[:, :NODES, :emb_dim].reshape(
        num_graphs * NODES, emb_dim).astype(jnp.float32)                 # (G*116, emb)
    return xpool, x_nodes


# ------------------------------------------------------------------ main

if __name__ == "__main__":
    G = 2            # graphs in the batch
    E_PER = 200      # edges per graph
    F_IN = 16        # num_dataset_features (small)
    EMB = 32         # emb_dim (small)
    LAYERS = 3       # num_gc_layers (small)

    key = jax.random.PRNGKey(0)
    keys = jax.random.split(key, 8)

    # synthetic graph data: edges grouped per graph, global node indices in [0, G*116)
    src_l = jax.random.randint(keys[0], (G, E_PER), 0, NODES)
    dst_l = jax.random.randint(keys[1], (G, E_PER), 0, NODES)
    offsets = (jnp.arange(G) * NODES)[:, None]
    src = (src_l + offsets).reshape(-1).astype(jnp.int32)
    dst = (dst_l + offsets).reshape(-1).astype(jnp.int32)
    edge_index = jnp.stack([src, dst], axis=0)                           # (2, E)
    edge_weight = jax.random.uniform(keys[2], (G * E_PER,), jnp.float32,
                                     minval=0.5, maxval=1.5)             # (E,)
    bernoulli = (jax.random.uniform(keys[3], (G * E_PER,)) > 0.5).astype(jnp.float32)
    # node indices carried as float32 like the reference's batch_aug_edge_weight tensor
    batch_aug_edge_weight = jnp.stack([src.astype(jnp.float32),
                                       dst.astype(jnp.float32),
                                       bernoulli], axis=0)               # (3, E)
    x = jax.random.normal(keys[4], (G * NODES, F_IN), jnp.float32)       # (232, 16)
    batch = jnp.repeat(jnp.arange(G, dtype=jnp.int32), NODES)            # (232,)
    edge_attr = None

    params = init_params(keys[5], F_IN, EMB, LAYERS)

    xpool, x_nodes = uni_encoder_forward(params, batch, x, edge_index, edge_attr,
                                         edge_weight, batch_aug_edge_weight, emb_dim=EMB)
    jax.block_until_ready((xpool, x_nodes))

    assert xpool.shape == (G, EMB)
    assert x_nodes.shape == (G * NODES, EMB)
    assert bool(jnp.all(jnp.isfinite(xpool)))
    assert bool(jnp.all(jnp.isfinite(x_nodes)))
    print("KERNEL_OK")
</pallas_src>

<mosaic_0001>
module attributes {stable_mosaic.version = 11 : i64} {
  func.func @_fused_encoder_kernel(%arg0: memref<2x128x128xbf16, #tpu.memory_space<vmem>>, %arg1: memref<2x128x128xbf16, #tpu.memory_space<vmem>>, %arg2: memref<3x2x128x128xbf16, #tpu.memory_space<vmem>>, %arg3: memref<3x4x128xf32, #tpu.memory_space<vmem>>, %arg4: memref<2x128x128xbf16, #tpu.memory_space<vmem>>, %arg5: memref<2x128xf32, #tpu.memory_space<vmem>>) attributes {dimension_semantics = [], scalar_prefetch = 0 : i64, scratch_operands = 0 : i64, tpu.core_type = #tpu.core_type<tc>} {
    %c0 = arith.constant 0 : index
    %c0_0 = arith.constant 0 : index
    %c0_1 = arith.constant 0 : index
    %0 = vector.load %arg0[%c0, %c0_0, %c0_1] : memref<2x128x128xbf16, #tpu.memory_space<vmem>>, vector<2x128x128xbf16>
    %1 = tpu.iota {dimensions = array<i32: 0>} : vector<256x1xi32>
    %c127_i32 = arith.constant 127 : i32
    %2 = vector.broadcast %c127_i32 : i32 to vector<256x1xi32>
    %3 = arith.andi %1, %2 : vector<256x1xi32>
    %c116_i32 = arith.constant 116 : i32
    %4 = vector.broadcast %c116_i32 : i32 to vector<256x1xi32>
    %5 = arith.cmpi slt, %3, %4 : vector<256x1xi32>
    %6 = arith.extui %5 : vector<256x1xi1> to vector<256x1xi32>
    %7 = arith.sitofp %6 : vector<256x1xi32> to vector<256x1xf32>
    %c0_2 = arith.constant 0 : index
    %c0_3 = arith.constant 0 : index
    %c0_4 = arith.constant 0 : index
    %8 = vector.load %arg1[%c0_2, %c0_3, %c0_4] : memref<2x128x128xbf16, #tpu.memory_space<vmem>>, vector<2x128x128xbf16>
    %c0_5 = arith.constant 0 : index
    %c0_6 = arith.constant 0 : index
    %c0_7 = arith.constant 0 : index
    %c0_8 = arith.constant 0 : index
    %9 = vector.load %arg2[%c0_5, %c0_6, %c0_7, %c0_8] : memref<3x2x128x128xbf16, #tpu.memory_space<vmem>>, vector<1x2x128x128xbf16>
    %10 = vector.shape_cast %9 : vector<1x2x128x128xbf16> to vector<2x128x128xbf16>
    %c0_9 = arith.constant 0 : index
    %c0_10 = arith.constant 0 : index
    %c0_11 = arith.constant 0 : index
    %11 = vector.load %arg3[%c0_9, %c0_10, %c0_11] : memref<3x4x128xf32, #tpu.memory_space<vmem>>, vector<1x4x128xf32>
    %12 = vector.shape_cast %11 : vector<1x4x128xf32> to vector<4x128xf32>
    %13 = vector.extract_strided_slice %12 {offsets = [0, 0], sizes = [1, 128], strides = [1, 1]} : vector<4x128xf32> to vector<1x128xf32>
    %14 = vector.extract_strided_slice %12 {offsets = [1, 0], sizes = [1, 128], strides = [1, 1]} : vector<4x128xf32> to vector<1x128xf32>
    %15 = vector.extract_strided_slice %12 {offsets = [2, 0], sizes = [1, 128], strides = [1, 1]} : vector<4x128xf32> to vector<1x128xf32>
    %16 = vector.extract_strided_slice %12 {offsets = [3, 0], sizes = [1, 128], strides = [1, 1]} : vector<4x128xf32> to vector<1x128xf32>
    "tpu.trace_start"() <{level = 10 : i32, message = "gds,gsf->gdf"}> : () -> ()
    %cst = arith.constant dense<0.000000e+00> : vector<2x128x128xf32>
    %17 = tpu.matmul %0, %8, %cst {dimension_numbers = #tpu.dot_dimension_numbers<[2], [1], [1], [2], [0, 0, 0, 1, 1, 2], [0], [0]>} : vector<2x128x128xbf16>, vector<2x128x128xbf16>, vector<2x128x128xf32> -> vector<2x128x128xf32>
    "tpu.trace_stop"() : () -> ()
    %18 = arith.extf %8 : vector<2x128x128xbf16> to vector<2x128x128xf32>
    %cst_12 = arith.constant 1.000000e+00 : f32
    %19 = vector.broadcast %cst_12 : f32 to vector<2x128x128xf32>
    %20 = arith.mulf %19, %18 : vector<2x128x128xf32>
    %21 = arith.addf %17, %20 : vector<2x128x128xf32>
    %22 = vector.shape_cast %21 : vector<2x128x128xf32> to vector<256x128xf32>
    %23 = arith.truncf %22 : vector<256x128xf32> to vector<256x128xbf16>
    %24 = vector.extract_strided_slice %10 {offsets = [0, 0, 0], sizes = [1, 128, 128], strides = [1, 1, 1]} : vector<2x128x128xbf16> to vector<1x128x128xbf16>
    %25 = vector.shape_cast %24 : vector<1x128x128xbf16> to vector<128x128xbf16>
    %cst_13 = arith.constant dense<0.000000e+00> : vector<256x128xf32>
    %26 = tpu.matmul %23, %25, %cst_13 {dimension_numbers = #tpu.dot_dimension_numbers<[1], [0], [0], [1], [0, 0, 1, 1], [], []>} : vector<256x128xbf16>, vector<128x128xbf16>, vector<256x128xf32> -> vector<256x128xf32>
    %27 = vector.broadcast %13 : vector<1x128xf32> to vector<256x128xf32>
    %28 = arith.addf %26, %27 : vector<256x128xf32>
    %cst_14 = arith.constant 0.000000e+00 : f32
    %29 = vector.broadcast %cst_14 : f32 to vector<256x128xf32>
    %30 = arith.maximumf %28, %29 : vector<256x128xf32>
    %31 = arith.truncf %30 : vector<256x128xf32> to vector<256x128xbf16>
    %32 = vector.extract_strided_slice %10 {offsets = [1, 0, 0], sizes = [1, 128, 128], strides = [1, 1, 1]} : vector<2x128x128xbf16> to vector<1x128x128xbf16>
    %33 = vector.shape_cast %32 : vector<1x128x128xbf16> to vector<128x128xbf16>
    %cst_15 = arith.constant dense<0.000000e+00> : vector<256x128xf32>
    %34 = tpu.matmul %31, %33, %cst_15 {dimension_numbers = #tpu.dot_dimension_numbers<[1], [0], [0], [1], [0, 0, 1, 1], [], []>} : vector<256x128xbf16>, vector<128x128xbf16>, vector<256x128xf32> -> vector<256x128xf32>
    %35 = vector.broadcast %14 : vector<1x128xf32> to vector<256x128xf32>
    %36 = arith.addf %34, %35 : vector<256x128xf32>
    %37 = vector.broadcast %7 : vector<256x1xf32> to vector<256x128xf32>
    %38 = arith.mulf %36, %37 : vector<256x128xf32>
    %cst_16 = arith.constant dense<0.000000e+00> : vector<128xf32>
    %39 = vector.multi_reduction <add>, %38, %cst_16 [0] : vector<256x128xf32> to vector<128xf32>
    %40 = vector.shape_cast %39 : vector<128xf32> to vector<1x128xf32>
    %41 = arith.mulf %38, %38 : vector<256x128xf32>
    %cst_17 = arith.constant dense<0.000000e+00> : vector<128xf32>
    %42 = vector.multi_reduction <add>, %41, %cst_17 [0] : vector<256x128xf32> to vector<128xf32>
    %43 = vector.shape_cast %42 : vector<128xf32> to vector<1x128xf32>
    %cst_18 = arith.constant 0.00431034481 : f32
    %44 = vector.broadcast %cst_18 : f32 to vector<1x128xf32>
    %45 = arith.mulf %40, %44 : vector<1x128xf32>
    %cst_19 = arith.constant 0.00431034481 : f32
    %46 = vector.broadcast %cst_19 : f32 to vector<1x128xf32>
    %47 = arith.mulf %43, %46 : vector<1x128xf32>
    %48 = arith.mulf %45, %45 : vector<1x128xf32>
    %49 = arith.subf %47, %48 : vector<1x128xf32>
    %cst_20 = arith.constant 0.000000e+00 : f32
    %50 = vector.broadcast %cst_20 : f32 to vector<1x128xf32>
    %51 = arith.maximumf %49, %50 : vector<1x128xf32>
    %cst_21 = arith.constant 9.99999974E-6 : f32
    %52 = vector.broadcast %cst_21 : f32 to vector<1x128xf32>
    %53 = arith.addf %51, %52 : vector<1x128xf32>
    %54 = math.rsqrt %53 : vector<1x128xf32>
    %55 = arith.mulf %54, %15 : vector<1x128xf32>
    %56 = arith.mulf %45, %55 : vector<1x128xf32>
    %57 = arith.subf %16, %56 : vector<1x128xf32>
    %58 = vector.broadcast %55 : vector<1x128xf32> to vector<256x128xf32>
    %59 = arith.mulf %38, %58 : vector<256x128xf32>
    %60 = vector.broadcast %57 : vector<1x128xf32> to vector<256x128xf32>
    %61 = arith.addf %59, %60 : vector<256x128xf32>
    %cst_22 = arith.constant 0.000000e+00 : f32
    %62 = vector.broadcast %cst_22 : f32 to vector<256x128xf32>
    %63 = arith.maximumf %61, %62 : vector<256x128xf32>
    %64 = vector.shape_cast %63 : vector<256x128xf32> to vector<2x128x128xf32>
    %65 = arith.truncf %64 : vector<2x128x128xf32> to vector<2x128x128xbf16>
    %c1 = arith.constant 1 : index
    %c0_23 = arith.constant 0 : index
    %c0_24 = arith.constant 0 : index
    %c0_25 = arith.constant 0 : index
    %66 = vector.load %arg2[%c1, %c0_23, %c0_24, %c0_25] : memref<3x2x128x128xbf16, #tpu.memory_space<vmem>>, vector<1x2x128x128xbf16>
    %67 = vector.shape_cast %66 : vector<1x2x128x128xbf16> to vector<2x128x128xbf16>
    %c1_26 = arith.constant 1 : index
    %c0_27 = arith.constant 0 : index
    %c0_28 = arith.constant 0 : index
    %68 = vector.load %arg3[%c1_26, %c0_27, %c0_28] : memref<3x4x128xf32, #tpu.memory_space<vmem>>, vector<1x4x128xf32>
    %69 = vector.shape_cast %68 : vector<1x4x128xf32> to vector<4x128xf32>
    %70 = vector.extract_strided_slice %69 {offsets = [0, 0], sizes = [1, 128], strides = [1, 1]} : vector<4x128xf32> to vector<1x128xf32>
    %71 = vector.extract_strided_slice %69 {offsets = [1, 0], sizes = [1, 128], strides = [1, 1]} : vector<4x128xf32> to vector<1x128xf32>
    %72 = vector.extract_strided_slice %69 {offsets = [2, 0], sizes = [1, 128], strides = [1, 1]} : vector<4x128xf32> to vector<1x128xf32>
    %73 = vector.extract_strided_slice %69 {offsets = [3, 0], sizes = [1, 128], strides = [1, 1]} : vector<4x128xf32> to vector<1x128xf32>
    "tpu.trace_start"() <{level = 10 : i32, message = "gds,gsf->gdf"}> : () -> ()
    %cst_29 = arith.constant dense<0.000000e+00> : vector<2x128x128xf32>
    %74 = tpu.matmul %0, %65, %cst_29 {dimension_numbers = #tpu.dot_dimension_numbers<[2], [1], [1], [2], [0, 0, 0, 1, 1, 2], [0], [0]>} : vector<2x128x128xbf16>, vector<2x128x128xbf16>, vector<2x128x128xf32> -> vector<2x128x128xf32>
    "tpu.trace_stop"() : () -> ()
    %75 = arith.extf %65 : vector<2x128x128xbf16> to vector<2x128x128xf32>
    %cst_30 = arith.constant 1.000000e+00 : f32
    %76 = vector.broadcast %cst_30 : f32 to vector<2x128x128xf32>
    %77 = arith.mulf %76, %75 : vector<2x128x128xf32>
    %78 = arith.addf %74, %77 : vector<2x128x128xf32>
    %79 = vector.shape_cast %78 : vector<2x128x128xf32> to vector<256x128xf32>
    %80 = arith.truncf %79 : vector<256x128xf32> to vector<256x128xbf16>
    %81 = vector.extract_strided_slice %67 {offsets = [0, 0, 0], sizes = [1, 128, 128], strides = [1, 1, 1]} : vector<2x128x128xbf16> to vector<1x128x128xbf16>
    %82 = vector.shape_cast %81 : vector<1x128x128xbf16> to vector<128x128xbf16>
    %cst_31 = arith.constant dense<0.000000e+00> : vector<256x128xf32>
    %83 = tpu.matmul %80, %82, %cst_31 {dimension_numbers = #tpu.dot_dimension_numbers<[1], [0], [0], [1], [0, 0, 1, 1], [], []>} : vector<256x128xbf16>, vector<128x128xbf16>, vector<256x128xf32> -> vector<256x128xf32>
    %84 = vector.broadcast %70 : vector<1x128xf32> to vector<256x128xf32>
    %85 = arith.addf %83, %84 : vector<256x128xf32>
    %cst_32 = arith.constant 0.000000e+00 : f32
    %86 = vector.broadcast %cst_32 : f32 to vector<256x128xf32>
    %87 = arith.maximumf %85, %86 : vector<256x128xf32>
    %88 = arith.truncf %87 : vector<256x128xf32> to vector<256x128xbf16>
    %89 = vector.extract_strided_slice %67 {offsets = [1, 0, 0], sizes = [1, 128, 128], strides = [1, 1, 1]} : vector<2x128x128xbf16> to vector<1x128x128xbf16>
    %90 = vector.shape_cast %89 : vector<1x128x128xbf16> to vector<128x128xbf16>
    %cst_33 = arith.constant dense<0.000000e+00> : vector<256x128xf32>
    %91 = tpu.matmul %88, %90, %cst_33 {dimension_numbers = #tpu.dot_dimension_numbers<[1], [0], [0], [1], [0, 0, 1, 1], [], []>} : vector<256x128xbf16>, vector<128x128xbf16>, vector<256x128xf32> -> vector<256x128xf32>
    %92 = vector.broadcast %71 : vector<1x128xf32> to vector<256x128xf32>
    %93 = arith.addf %91, %92 : vector<256x128xf32>
    %94 = vector.broadcast %7 : vector<256x1xf32> to vector<256x128xf32>
    %95 = arith.mulf %93, %94 : vector<256x128xf32>
    %cst_34 = arith.constant dense<0.000000e+00> : vector<128xf32>
    %96 = vector.multi_reduction <add>, %95, %cst_34 [0] : vector<256x128xf32> to vector<128xf32>
    %97 = vector.shape_cast %96 : vector<128xf32> to vector<1x128xf32>
    %98 = arith.mulf %95, %95 : vector<256x128xf32>
    %cst_35 = arith.constant dense<0.000000e+00> : vector<128xf32>
    %99 = vector.multi_reduction <add>, %98, %cst_35 [0] : vector<256x128xf32> to vector<128xf32>
    %100 = vector.shape_cast %99 : vector<128xf32> to vector<1x128xf32>
    %cst_36 = arith.constant 0.00431034481 : f32
    %101 = vector.broadcast %cst_36 : f32 to vector<1x128xf32>
    %102 = arith.mulf %97, %101 : vector<1x128xf32>
    %cst_37 = arith.constant 0.00431034481 : f32
    %103 = vector.broadcast %cst_37 : f32 to vector<1x128xf32>
    %104 = arith.mulf %100, %103 : vector<1x128xf32>
    %105 = arith.mulf %102, %102 : vector<1x128xf32>
    %106 = arith.subf %104, %105 : vector<1x128xf32>
    %cst_38 = arith.constant 0.000000e+00 : f32
    %107 = vector.broadcast %cst_38 : f32 to vector<1x128xf32>
    %108 = arith.maximumf %106, %107 : vector<1x128xf32>
    %cst_39 = arith.constant 9.99999974E-6 : f32
    %109 = vector.broadcast %cst_39 : f32 to vector<1x128xf32>
    %110 = arith.addf %108, %109 : vector<1x128xf32>
    %111 = math.rsqrt %110 : vector<1x128xf32>
    %112 = arith.mulf %111, %72 : vector<1x128xf32>
    %113 = arith.mulf %102, %112 : vector<1x128xf32>
    %114 = arith.subf %73, %113 : vector<1x128xf32>
    %115 = vector.broadcast %112 : vector<1x128xf32> to vector<256x128xf32>
    %116 = arith.mulf %95, %115 : vector<256x128xf32>
    %117 = vector.broadcast %114 : vector<1x128xf32> to vector<256x128xf32>
    %118 = arith.addf %116, %117 : vector<256x128xf32>
    %cst_40 = arith.constant 0.000000e+00 : f32
    %119 = vector.broadcast %cst_40 : f32 to vector<256x128xf32>
    %120 = arith.maximumf %118, %119 : vector<256x128xf32>
    %121 = vector.shape_cast %120 : vector<256x128xf32> to vector<2x128x128xf32>
    %122 = arith.truncf %121 : vector<2x128x128xf32> to vector<2x128x128xbf16>
    %c2 = arith.constant 2 : index
    %c0_41 = arith.constant 0 : index
    %c0_42 = arith.constant 0 : index
    %c0_43 = arith.constant 0 : index
    %123 = vector.load %arg2[%c2, %c0_41, %c0_42, %c0_43] : memref<3x2x128x128xbf16, #tpu.memory_space<vmem>>, vector<1x2x128x128xbf16>
    %124 = vector.shape_cast %123 : vector<1x2x128x128xbf16> to vector<2x128x128xbf16>
    %c2_44 = arith.constant 2 : index
    %c0_45 = arith.constant 0 : index
    %c0_46 = arith.constant 0 : index
    %125 = vector.load %arg3[%c2_44, %c0_45, %c0_46] : memref<3x4x128xf32, #tpu.memory_space<vmem>>, vector<1x4x128xf32>
    %126 = vector.shape_cast %125 : vector<1x4x128xf32> to vector<4x128xf32>
    %127 = vector.extract_strided_slice %126 {offsets = [0, 0], sizes = [1, 128], strides = [1, 1]} : vector<4x128xf32> to vector<1x128xf32>
    %128 = vector.extract_strided_slice %126 {offsets = [1, 0], sizes = [1, 128], strides = [1, 1]} : vector<4x128xf32> to vector<1x128xf32>
    %129 = vector.extract_strided_slice %126 {offsets = [2, 0], sizes = [1, 128], strides = [1, 1]} : vector<4x128xf32> to vector<1x128xf32>
    %130 = vector.extract_strided_slice %126 {offsets = [3, 0], sizes = [1, 128], strides = [1, 1]} : vector<4x128xf32> to vector<1x128xf32>
    "tpu.trace_start"() <{level = 10 : i32, message = "gds,gsf->gdf"}> : () -> ()
    %cst_47 = arith.constant dense<0.000000e+00> : vector<2x128x128xf32>
    %131 = tpu.matmul %0, %122, %cst_47 {dimension_numbers = #tpu.dot_dimension_numbers<[2], [1], [1], [2], [0, 0, 0, 1, 1, 2], [0], [0]>} : vector<2x128x128xbf16>, vector<2x128x128xbf16>, vector<2x128x128xf32> -> vector<2x128x128xf32>
    "tpu.trace_stop"() : () -> ()
    %132 = arith.extf %122 : vector<2x128x128xbf16> to vector<2x128x128xf32>
    %cst_48 = arith.constant 1.000000e+00 : f32
    %133 = vector.broadcast %cst_48 : f32 to vector<2x128x128xf32>
    %134 = arith.mulf %133, %132 : vector<2x128x128xf32>
    %135 = arith.addf %131, %134 : vector<2x128x128xf32>
    %136 = vector.shape_cast %135 : vector<2x128x128xf32> to vector<256x128xf32>
    %137 = arith.truncf %136 : vector<256x128xf32> to vector<256x128xbf16>
    %138 = vector.extract_strided_slice %124 {offsets = [0, 0, 0], sizes = [1, 128, 128], strides = [1, 1, 1]} : vector<2x128x128xbf16> to vector<1x128x128xbf16>
    %139 = vector.shape_cast %138 : vector<1x128x128xbf16> to vector<128x128xbf16>
    %cst_49 = arith.constant dense<0.000000e+00> : vector<256x128xf32>
    %140 = tpu.matmul %137, %139, %cst_49 {dimension_numbers = #tpu.dot_dimension_numbers<[1], [0], [0], [1], [0, 0, 1, 1], [], []>} : vector<256x128xbf16>, vector<128x128xbf16>, vector<256x128xf32> -> vector<256x128xf32>
    %141 = vector.broadcast %127 : vector<1x128xf32> to vector<256x128xf32>
    %142 = arith.addf %140, %141 : vector<256x128xf32>
    %cst_50 = arith.constant 0.000000e+00 : f32
    %143 = vector.broadcast %cst_50 : f32 to vector<256x128xf32>
    %144 = arith.maximumf %142, %143 : vector<256x128xf32>
    %145 = arith.truncf %144 : vector<256x128xf32> to vector<256x128xbf16>
    %146 = vector.extract_strided_slice %124 {offsets = [1, 0, 0], sizes = [1, 128, 128], strides = [1, 1, 1]} : vector<2x128x128xbf16> to vector<1x128x128xbf16>
    %147 = vector.shape_cast %146 : vector<1x128x128xbf16> to vector<128x128xbf16>
    %cst_51 = arith.constant dense<0.000000e+00> : vector<256x128xf32>
    %148 = tpu.matmul %145, %147, %cst_51 {dimension_numbers = #tpu.dot_dimension_numbers<[1], [0], [0], [1], [0, 0, 1, 1], [], []>} : vector<256x128xbf16>, vector<128x128xbf16>, vector<256x128xf32> -> vector<256x128xf32>
    %149 = vector.broadcast %128 : vector<1x128xf32> to vector<256x128xf32>
    %150 = arith.addf %148, %149 : vector<256x128xf32>
    %151 = vector.broadcast %7 : vector<256x1xf32> to vector<256x128xf32>
    %152 = arith.mulf %150, %151 : vector<256x128xf32>
    %cst_52 = arith.constant dense<0.000000e+00> : vector<128xf32>
    %153 = vector.multi_reduction <add>, %152, %cst_52 [0] : vector<256x128xf32> to vector<128xf32>
    %154 = vector.shape_cast %153 : vector<128xf32> to vector<1x128xf32>
    %155 = arith.mulf %152, %152 : vector<256x128xf32>
    %cst_53 = arith.constant dense<0.000000e+00> : vector<128xf32>
    %156 = vector.multi_reduction <add>, %155, %cst_53 [0] : vector<256x128xf32> to vector<128xf32>
    %157 = vector.shape_cast %156 : vector<128xf32> to vector<1x128xf32>
    %cst_54 = arith.constant 0.00431034481 : f32
    %158 = vector.broadcast %cst_54 : f32 to vector<1x128xf32>
    %159 = arith.mulf %154, %158 : vector<1x128xf32>
    %cst_55 = arith.constant 0.00431034481 : f32
    %160 = vector.broadcast %cst_55 : f32 to vector<1x128xf32>
    %161 = arith.mulf %157, %160 : vector<1x128xf32>
    %162 = arith.mulf %159, %159 : vector<1x128xf32>
    %163 = arith.subf %161, %162 : vector<1x128xf32>
    %cst_56 = arith.constant 0.000000e+00 : f32
    %164 = vector.broadcast %cst_56 : f32 to vector<1x128xf32>
    %165 = arith.maximumf %163, %164 : vector<1x128xf32>
    %cst_57 = arith.constant 9.99999974E-6 : f32
    %166 = vector.broadcast %cst_57 : f32 to vector<1x128xf32>
    %167 = arith.addf %165, %166 : vector<1x128xf32>
    %168 = math.rsqrt %167 : vector<1x128xf32>
    %169 = arith.mulf %168, %129 : vector<1x128xf32>
    %170 = arith.mulf %159, %169 : vector<1x128xf32>
    %171 = arith.subf %130, %170 : vector<1x128xf32>
    %172 = vector.broadcast %169 : vector<1x128xf32> to vector<256x128xf32>
    %173 = arith.mulf %152, %172 : vector<256x128xf32>
    %174 = vector.broadcast %171 : vector<1x128xf32> to vector<256x128xf32>
    %175 = arith.addf %173, %174 : vector<256x128xf32>
    %176 = vector.shape_cast %175 : vector<256x128xf32> to vector<2x128x128xf32>
    %177 = arith.truncf %176 : vector<2x128x128xf32> to vector<2x128x128xbf16>
    %178 = arith.extf %177 : vector<2x128x128xbf16> to vector<2x128x128xf32>
    %179 = vector.shape_cast %7 : vector<256x1xf32> to vector<2x128x1xf32>
    %180 = vector.broadcast %179 : vector<2x128x1xf32> to vector<2x128x128xf32>
    %181 = arith.mulf %178, %180 : vector<2x128x128xf32>
    %cst_58 = arith.constant dense<0.000000e+00> : vector<2x128xf32>
    %182 = vector.multi_reduction <add>, %181, %cst_58 [1] : vector<2x128x128xf32> to vector<2x128xf32>
    %c0_59 = arith.constant 0 : index
    %c0_60 = arith.constant 0 : index
    %183 = vector.load %arg5[%c0_59, %c0_60] : memref<2x128xf32, #tpu.memory_space<vmem>>, vector<2x128xf32>
    tpu.vector_store %arg5[%c0_59, %c0_60], %182 {strides = array<i32>} : memref<2x128xf32, #tpu.memory_space<vmem>>, vector<2x128xf32>,
    %184 = arith.truncf %181 : vector<2x128x128xf32> to vector<2x128x128xbf16>
    %c0_61 = arith.constant 0 : index
    %c0_62 = arith.constant 0 : index
    %c0_63 = arith.constant 0 : index
    %185 = vector.load %arg4[%c0_61, %c0_62, %c0_63] : memref<2x128x128xbf16, #tpu.memory_space<vmem>>, vector<2x128x128xbf16>
    tpu.vector_store %arg4[%c0_61, %c0_62, %c0_63], %184 {strides = array<i32>} : memref<2x128x128xbf16, #tpu.memory_space<vmem>>, vector<2x128x128xbf16>,
    return
  }
}

</mosaic_0001>

<llo_original>
// kernel: tpu_custom_call.1
$region0: #{tpu_custom_call.1}
  #allocation0 [shape = 'u32[]', space=smem, size = 0x4, offset = 0x4, fixed_abs, tag = 'smem constant byte address 0x4 - core index']
  #allocation1 [shape = 'u32[72,128]{1,0:T(1,128)}', space=vmem, size = 0x9000, scoped, tag = 'internal scratch']
  %s0 = inlined_call_operand.hbm [shape: bf16[2,128,128], index: 0, kind: input, shape index: {}]
  %s1 = inlined_call_operand.hbm [shape: bf16[2,128,128], index: 1, kind: input, shape index: {}]
  %s2 = inlined_call_operand.hbm [shape: bf16[3,2,128,128], index: 2, kind: input, shape index: {}]
  %s3 = inlined_call_operand.hbm [shape: f32[3,4,128], index: 3, kind: input, shape index: {}]
  %s4 = inlined_call_operand.hbm [shape: bf16[2,128,128], index: 4, kind: output, shape index: {0}]
  %s5 = inlined_call_operand.hbm [shape: f32[2,128], index: 5, kind: output, shape index: {1}]
  %6 = xla_tuple %s4, %s5
  %s7 = sld [smem:[#allocation0]]
  $region50: #{tpu_custom_call.1} parent=0
    _
  %s9 = ssub.s32 1, %s7
  %s10 = scalar_select 0, %s9, %s7
  $region1: #{tpu_custom_call.1} parent=0
    #allocation2 [shape = 'u8[65536]{0}', space=vmem, size = 0x10000, scoped, tag = 'input window, operand 0, single buffered']
    #allocation3 [shape = 's32[1]{0}', space=sflag, size = 0x4, scoped, tag = 'scoped memory for tpu_custom_call.1']
    #allocation4 [shape = 's32[1]{0}', space=sflag, size = 0x4, scoped, tag = 'scoped memory for tpu_custom_call.1']
    #allocation5 [shape = 'u8[65536]{0}', space=vmem, size = 0x10000, scoped, tag = 'input window, operand 1, single buffered']
    #allocation6 [shape = 's32[1]{0}', space=sflag, size = 0x4, scoped, tag = 'scoped memory for tpu_custom_call.1']
    #allocation7 [shape = 'u8[196608]{0}', space=vmem, size = 0x30000, scoped, tag = 'input window, operand 2, single buffered']
    #allocation8 [shape = 'u8[6144]{0}', space=vmem, size = 0x1800, scoped, tag = 'input window, operand 3, single buffered']
    #allocation9 [shape = 's32[1]{0}', space=sflag, size = 0x4, scoped, tag = 'scoped memory for tpu_custom_call.1']
    #allocation10 [shape = 'u8[65536]{0}', space=vmem, size = 0x10000, scoped, tag = 'output window, operand 0, single buffered']
    #allocation11 [shape = 'u8[1024]{0}', space=vmem, size = 0x400, scoped, tag = 'output window, operand 1, single buffered']
    #allocation12 [shape = 's32[1]{0}', space=sflag, size = 0x4, scoped, tag = 'scoped memory for tpu_custom_call.1']
    %11 = vsyncpa [#allocation3], 0
    %12 = vsyncpa [#allocation6], 0
    %13 = vsyncpa [#allocation9], 0
    %14 = vsyncpa [#allocation4], 0
    %15 = vsyncpa [#allocation12], 0
    // Predicated region
    $region2: #{tpu_custom_call.1} parent=1 // pred_check
      _
    $region3: #{tpu_custom_call.1} parent=1 // pred_check_branch
      %17 = sbr.rel (0) target = $region5
    $region4: #{tpu_custom_call.1} parent=1 // pred_region
      %19 = vsyncadd [#allocation3], 0
      %s20 = sshll.u32 %s0, 4
      %s21 = int_to_ptr.hbm [resolvable:$true] %s20
      %s22 = sshll.u32 [#allocation2], 4
      %s23 = int_to_ptr.vmem [resolvable:$true] %s22
      %28 = dma.hbm_to_vmem [thread:$0]  %s21, 2048, %s23, [#allocation3], 64, 64, 4
    $region5: #{tpu_custom_call.1} parent=1 // pred_fallthru
      _
    // Predicated region
    $region6: #{tpu_custom_call.1} parent=1 // pred_check
      _
    $region7: #{tpu_custom_call.1} parent=1 // pred_check_branch
      %30 = sbr.rel (0) target = $region9
    $region8: #{tpu_custom_call.1} parent=1 // pred_region
      %32 = vsyncadd [#allocation6], 0
      %s33 = sshll.u32 %s1, 4
      %s34 = int_to_ptr.hbm [resolvable:$true] %s33
      %s35 = sshll.u32 [#allocation5], 4
      %s36 = int_to_ptr.vmem [resolvable:$true] %s35
      %41 = dma.hbm_to_vmem [thread:$0]  %s34, 2048, %s36, [#allocation6], 64, 64, 4
    $region9: #{tpu_custom_call.1} parent=1 // pred_fallthru
      _
    // Predicated region
    $region10: #{tpu_custom_call.1} parent=1 // pred_check
      _
    $region11: #{tpu_custom_call.1} parent=1 // pred_check_branch
      %43 = sbr.rel (0) target = $region13
    $region12: #{tpu_custom_call.1} parent=1 // pred_region
      %45 = vsyncadd [#allocation6], 0
      %s46 = sshll.u32 %s2, 4
      %s47 = int_to_ptr.hbm [resolvable:$true] %s46
      %s48 = sshll.u32 [#allocation7], 4
      %s49 = int_to_ptr.vmem [resolvable:$true] %s48
      %54 = dma.hbm_to_vmem [thread:$0]  %s47, 6144, %s49, [#allocation6], 64, 64, 4
    $region13: #{tpu_custom_call.1} parent=1 // pred_fallthru
      _
    // Predicated region
    $region14: #{tpu_custom_call.1} parent=1 // pred_check
      _
    $region15: #{tpu_custom_call.1} parent=1 // pred_check_branch
      %56 = sbr.rel (0) target = $region17
    $region16: #{tpu_custom_call.1} parent=1 // pred_region
      %58 = vsyncadd [#allocation9], 0
      %s59 = sshll.u32 %s3, 4
      %s60 = int_to_ptr.hbm [resolvable:$true] %s59
      %s61 = sshll.u32 [#allocation8], 4
      %s62 = int_to_ptr.vmem [resolvable:$true] %s61
      %67 = dma.hbm_to_vmem [thread:$0]  %s60, 192, %s62, [#allocation9], 64, 64, 4
    $region17: #{tpu_custom_call.1} parent=1 // pred_fallthru
      _
    // Predicated region
    $region18: #{tpu_custom_call.1} parent=1 // pred_check
      _
    $region19: #{tpu_custom_call.1} parent=1 // pred_check_branch
      %69 = sbr.rel (0) target = $region21
    $region20: #{tpu_custom_call.1} parent=1 // pred_region
      %71 = dma.done [#allocation3], 2048
    $region21: #{tpu_custom_call.1} parent=1 // pred_fallthru
      _
    // Predicated region
    $region22: #{tpu_custom_call.1} parent=1 // pred_check
      _
    $region23: #{tpu_custom_call.1} parent=1 // pred_check_branch
      %73 = sbr.rel (0) target = $region25
    $region24: #{tpu_custom_call.1} parent=1 // pred_region
      %75 = dma.done [#allocation6], 2048
    $region25: #{tpu_custom_call.1} parent=1 // pred_fallthru
      _
    // Predicated region
    $region26: #{tpu_custom_call.1} parent=1 // pred_check
      _
    $region27: #{tpu_custom_call.1} parent=1 // pred_check_branch
      %77 = sbr.rel (0) target = $region29
    $region28: #{tpu_custom_call.1} parent=1 // pred_region
      %79 = dma.done [#allocation6], 6144
    $region29: #{tpu_custom_call.1} parent=1 // pred_fallthru
      _
    // Predicated region
    $region30: #{tpu_custom_call.1} parent=1 // pred_check
      _
    $region31: #{tpu_custom_call.1} parent=1 // pred_check_branch
      %81 = sbr.rel (0) target = $region33
    $region32: #{tpu_custom_call.1} parent=1 // pred_region
      %83 = dma.done [#allocation9], 192
    $region33: #{tpu_custom_call.1} parent=1 // pred_fallthru
      _
    %v84 = vld [vmem:[#allocation2] sm:$0xf]
    %v85 = vld [vmem:[#allocation2 + $0x4] sm:$0xf]
    %v86 = vld [vmem:[#allocation2 + $0x8] sm:$0xf]
    %v87 = vld [vmem:[#allocation2 + $0xc] sm:$0xf]
    %v88 = vld [vmem:[#allocation2 + $0x10] sm:$0xf]
    %v89 = vld [vmem:[#allocation2 + $0x14] sm:$0xf]
    %v90 = vld [vmem:[#allocation2 + $0x18] sm:$0xf]
    %v91 = vld [vmem:[#allocation2 + $0x1c] sm:$0xf]
    %v92 = vld [vmem:[#allocation2 + $0x20] sm:$0xf]
    %v93 = vld [vmem:[#allocation2 + $0x24] sm:$0xf]
    %v94 = vld [vmem:[#allocation2 + $0x28] sm:$0xf]
    %v95 = vld [vmem:[#allocation2 + $0x2c] sm:$0xf]
    %v96 = vld [vmem:[#allocation2 + $0x30] sm:$0xf]
    %v97 = vld [vmem:[#allocation2 + $0x34] sm:$0xf]
    %v98 = vld [vmem:[#allocation2 + $0x38] sm:$0xf]
    %v99 = vld [vmem:[#allocation2 + $0x3c] sm:$0xf]
    %v100 = vld [vmem:[#allocation2 + $0x40] sm:$0xf]
    %v101 = vld [vmem:[#allocation2 + $0x44] sm:$0xf]
    %v102 = vld [vmem:[#allocation2 + $0x48] sm:$0xf]
    %v103 = vld [vmem:[#allocation2 + $0x4c] sm:$0xf]
    %v104 = vld [vmem:[#allocation2 + $0x50] sm:$0xf]
    %v105 = vld [vmem:[#allocation2 + $0x54] sm:$0xf]
    %v106 = vld [vmem:[#allocation2 + $0x58] sm:$0xf]
    %v107 = vld [vmem:[#allocation2 + $0x5c] sm:$0xf]
    %v108 = vld [vmem:[#allocation2 + $0x60] sm:$0xf]
    %v109 = vld [vmem:[#allocation2 + $0x64] sm:$0xf]
    %v110 = vld [vmem:[#allocation2 + $0x68] sm:$0xf]
    %v111 = vld [vmem:[#allocation2 + $0x6c] sm:$0xf]
    %v112 = vld [vmem:[#allocation2 + $0x70] sm:$0xf]
    %v113 = vld [vmem:[#allocation2 + $0x74] sm:$0xf]
    %v114 = vld [vmem:[#allocation2 + $0x78] sm:$0xf]
    %v115 = vld [vmem:[#allocation2 + $0x7c] sm:$0xf]
    %v116 = vlaneseq
    %v117 = vshrl.u32 %v116, 7
    %v118 = vadd.s32 %v117, 8
    %v119 = vadd.s32 %v117, 16
    %v120 = vadd.s32 %v117, 24
    %v121 = vadd.s32 %v117, 32
    %v122 = vadd.s32 %v117, 40
    %v123 = vadd.s32 %v117, 48
    %v124 = vadd.s32 %v117, 56
    %v125 = vadd.s32 %v117, 64
    %v126 = vadd.s32 %v117, 72
    %v127 = vadd.s32 %v117, 80
    %v128 = vadd.s32 %v117, 88
    %v129 = vadd.s32 %v117, 96
    %v130 = vadd.s32 %v117, 104
    %v131 = vadd.s32 %v117, 112
    %v132 = vadd.s32 %v117, 120
    %v133 = vadd.s32 %v117, 128
    %v134 = vadd.s32 %v117, 136
    %v135 = vadd.s32 %v117, 144
    %v136 = vadd.s32 %v117, 152
    %v137 = vadd.s32 %v117, 160
    %v138 = vadd.s32 %v117, 168
    %v139 = vadd.s32 %v117, 176
    %v140 = vadd.s32 %v117, 184
    %v141 = vadd.s32 %v117, 192
    %v142 = vadd.s32 %v117, 200
    %v143 = vadd.s32 %v117, 208
    %v144 = vadd.s32 %v117, 216
    %v145 = vadd.s32 %v117, 224
    %v146 = vadd.s32 %v117, 232
    %v147 = vadd.s32 %v117, 240
    %v148 = vadd.s32 %v117, 248
    %v149 = vand.u32 %v117, 127
    %v150 = vand.u32 %v118, 127
    %v151 = vand.u32 %v119, 127
    %v152 = vand.u32 %v120, 127
    %v153 = vand.u32 %v121, 127
    %v154 = vand.u32 %v122, 127
    %v155 = vand.u32 %v123, 127
    %v156 = vand.u32 %v124, 127
    %v157 = vand.u32 %v125, 127
    %v158 = vand.u32 %v126, 127
    %v159 = vand.u32 %v127, 127
    %v160 = vand.u32 %v128, 127
    %v161 = vand.u32 %v129, 127
    %v162 = vand.u32 %v130, 127
    %v163 = vand.u32 %v131, 127
    %v164 = vand.u32 %v132, 127
    %v165 = vand.u32 %v133, 127
    %v166 = vand.u32 %v134, 127
    %v167 = vand.u32 %v135, 127
    %v168 = vand.u32 %v136, 127
    %v169 = vand.u32 %v137, 127
    %v170 = vand.u32 %v138, 127
    %v171 = vand.u32 %v139, 127
    %v172 = vand.u32 %v140, 127
    %v173 = vand.u32 %v141, 127
    %v174 = vand.u32 %v142, 127
    %v175 = vand.u32 %v143, 127
    %v176 = vand.u32 %v144, 127
    %v177 = vand.u32 %v145, 127
    %v178 = vand.u32 %v146, 127
    %v179 = vand.u32 %v147, 127
    %v180 = vand.u32 %v148, 127
    %vm181 = vcmp.lt.s32.totalorder %v149, 116
    %vm182 = vcmp.lt.s32.totalorder %v150, 116
    %vm183 = vcmp.lt.s32.totalorder %v151, 116
    %vm184 = vcmp.lt.s32.totalorder %v152, 116
    %vm185 = vcmp.lt.s32.totalorder %v153, 116
    %vm186 = vcmp.lt.s32.totalorder %v154, 116
    %vm187 = vcmp.lt.s32.totalorder %v155, 116
    %vm188 = vcmp.lt.s32.totalorder %v156, 116
    %vm189 = vcmp.lt.s32.totalorder %v157, 116
    %vm190 = vcmp.lt.s32.totalorder %v158, 116
    %vm191 = vcmp.lt.s32.totalorder %v159, 116
    %vm192 = vcmp.lt.s32.totalorder %v160, 116
    %vm193 = vcmp.lt.s32.totalorder %v161, 116
    %vm194 = vcmp.lt.s32.totalorder %v162, 116
    %vm195 = vcmp.lt.s32.totalorder %v163, 116
    %vm196 = vcmp.lt.s32.totalorder %v164, 116
    %vm197 = vcmp.lt.s32.totalorder %v165, 116
    %vm198 = vcmp.lt.s32.totalorder %v166, 116
    %vm199 = vcmp.lt.s32.totalorder %v167, 116
    %vm200 = vcmp.lt.s32.totalorder %v168, 116
    %vm201 = vcmp.lt.s32.totalorder %v169, 116
    %vm202 = vcmp.lt.s32.totalorder %v170, 116
    %vm203 = vcmp.lt.s32.totalorder %v171, 116
    %vm204 = vcmp.lt.s32.totalorder %v172, 116
    %vm205 = vcmp.lt.s32.totalorder %v173, 116
    %vm206 = vcmp.lt.s32.totalorder %v174, 116
    %vm207 = vcmp.lt.s32.totalorder %v175, 116
    %vm208 = vcmp.lt.s32.totalorder %v176, 116
    %vm209 = vcmp.lt.s32.totalorder %v177, 116
    %vm210 = vcmp.lt.s32.totalorder %v178, 116
    %vm211 = vcmp.lt.s32.totalorder %v179, 116
    %vm212 = vcmp.lt.s32.totalorder %v180, 116
    %v213 = vsel %vm181, 1, 0
    %v214 = vsel %vm182, 1, 0
    %v215 = vsel %vm183, 1, 0
    %v216 = vsel %vm184, 1, 0
    %v217 = vsel %vm185, 1, 0
    %v218 = vsel %vm186, 1, 0
    %v219 = vsel %vm187, 1, 0
    %v220 = vsel %vm188, 1, 0
    %v221 = vsel %vm189, 1, 0
    %v222 = vsel %vm190, 1, 0
    %v223 = vsel %vm191, 1, 0
    %v224 = vsel %vm192, 1, 0
    %v225 = vsel %vm193, 1, 0
    %v226 = vsel %vm194, 1, 0
    %v227 = vsel %vm195, 1, 0
    %v228 = vsel %vm196, 1, 0
    %v229 = vsel %vm197, 1, 0
    %v230 = vsel %vm198, 1, 0
    %v231 = vsel %vm199, 1, 0
    %v232 = vsel %vm200, 1, 0
    %v233 = vsel %vm201, 1, 0
    %v234 = vsel %vm202, 1, 0
    %v235 = vsel %vm203, 1, 0
    %v236 = vsel %vm204, 1, 0
    %v237 = vsel %vm205, 1, 0
    %v238 = vsel %vm206, 1, 0
    %v239 = vsel %vm207, 1, 0
    %v240 = vsel %vm208, 1, 0
    %v241 = vsel %vm209, 1, 0
    %v242 = vsel %vm210, 1, 0
    %v243 = vsel %vm211, 1, 0
    %v244 = vsel %vm212, 1, 0
    %v245 = vcvt.s32.f32 %v213
    %v246 = vcvt.s32.f32 %v214
    %v247 = vcvt.s32.f32 %v215
    %v248 = vcvt.s32.f32 %v216
    %v249 = vcvt.s32.f32 %v217
    %v250 = vcvt.s32.f32 %v218
    %v251 = vcvt.s32.f32 %v219
    %v252 = vcvt.s32.f32 %v220
    %v253 = vcvt.s32.f32 %v221
    %v254 = vcvt.s32.f32 %v222
    %v255 = vcvt.s32.f32 %v223
    %v256 = vcvt.s32.f32 %v224
    %v257 = vcvt.s32.f32 %v225
    %v258 = vcvt.s32.f32 %v226
    %v259 = vcvt.s32.f32 %v227
    %v260 = vcvt.s32.f32 %v228
    %v261 = vcvt.s32.f32 %v229
    %v262 = vcvt.s32.f32 %v230
    %v263 = vcvt.s32.f32 %v231
    %v264 = vcvt.s32.f32 %v232
    %v265 = vcvt.s32.f32 %v233
    %v266 = vcvt.s32.f32 %v234
    %v267 = vcvt.s32.f32 %v235
    %v268 = vcvt.s32.f32 %v236
    %v269 = vcvt.s32.f32 %v237
    %v270 = vcvt.s32.f32 %v238
    %v271 = vcvt.s32.f32 %v239
    %v272 = vcvt.s32.f32 %v240
    %v273 = vcvt.s32.f32 %v241
    %v274 = vcvt.s32.f32 %v242
    %v275 = vcvt.s32.f32 %v243
    %v276 = vcvt.s32.f32 %v244
    %v277 = vld [vmem:[#allocation5] sm:$0xf]
    %v278 = vld [vmem:[#allocation5 + $0x4] sm:$0xf]
    %v279 = vld [vmem:[#allocation5 + $0x8] sm:$0xf]
    %v280 = vld [vmem:[#allocation5 + $0xc] sm:$0xf]
    %v281 = vld [vmem:[#allocation5 + $0x10] sm:$0xf]
    %v282 = vld [vmem:[#allocation5 + $0x14] sm:$0xf]
    %v283 = vld [vmem:[#allocation5 + $0x18] sm:$0xf]
    %v284 = vld [vmem:[#allocation5 + $0x1c] sm:$0xf]
    %v285 = vld [vmem:[#allocation5 + $0x20] sm:$0xf]
    %v286 = vld [vmem:[#allocation5 + $0x24] sm:$0xf]
    %v287 = vld [vmem:[#allocation5 + $0x28] sm:$0xf]
    %v288 = vld [vmem:[#allocation5 + $0x2c] sm:$0xf]
    %v289 = vld [vmem:[#allocation5 + $0x30] sm:$0xf]
    %v290 = vld [vmem:[#allocation5 + $0x34] sm:$0xf]
    %v291 = vld [vmem:[#allocation5 + $0x38] sm:$0xf]
    %v292 = vld [vmem:[#allocation5 + $0x3c] sm:$0xf]
    %v293 = vld [vmem:[#allocation5 + $0x40] sm:$0xf]
    %v294 = vld [vmem:[#allocation5 + $0x44] sm:$0xf]
    %v295 = vld [vmem:[#allocation5 + $0x48] sm:$0xf]
    %v296 = vld [vmem:[#allocation5 + $0x4c] sm:$0xf]
    %v297 = vld [vmem:[#allocation5 + $0x50] sm:$0xf]
    %v298 = vld [vmem:[#allocation5 + $0x54] sm:$0xf]
    %v299 = vld [vmem:[#allocation5 + $0x58] sm:$0xf]
    %v300 = vld [vmem:[#allocation5 + $0x5c] sm:$0xf]
    %v301 = vld [vmem:[#allocation5 + $0x60] sm:$0xf]
    %v302 = vld [vmem:[#allocation5 + $0x64] sm:$0xf]
    %v303 = vld [vmem:[#allocation5 + $0x68] sm:$0xf]
    %v304 = vld [vmem:[#allocation5 + $0x6c] sm:$0xf]
    %v305 = vld [vmem:[#allocation5 + $0x70] sm:$0xf]
    %v306 = vld [vmem:[#allocation5 + $0x74] sm:$0xf]
    %v307 = vld [vmem:[#allocation5 + $0x78] sm:$0xf]
    %v308 = vld [vmem:[#allocation5 + $0x7c] sm:$0xf]
    %v309 = vld [vmem:[#allocation7] sm:$0xf]
    %v310 = vld [vmem:[#allocation7 + $0x4] sm:$0xf]
    %v311 = vld [vmem:[#allocation7 + $0x8] sm:$0xf]
    %v312 = vld [vmem:[#allocation7 + $0xc] sm:$0xf]
    %v313 = vld [vmem:[#allocation7 + $0x10] sm:$0xf]
    %v314 = vld [vmem:[#allocation7 + $0x14] sm:$0xf]
    %v315 = vld [vmem:[#allocation7 + $0x18] sm:$0xf]
    %v316 = vld [vmem:[#allocation7 + $0x1c] sm:$0xf]
    %v317 = vld [vmem:[#allocation7 + $0x20] sm:$0xf]
    %v318 = vld [vmem:[#allocation7 + $0x24] sm:$0xf]
    %v319 = vld [vmem:[#allocation7 + $0x28] sm:$0xf]
    %v320 = vld [vmem:[#allocation7 + $0x2c] sm:$0xf]
    %v321 = vld [vmem:[#allocation7 + $0x30] sm:$0xf]
    %v322 = vld [vmem:[#allocation7 + $0x34] sm:$0xf]
    %v323 = vld [vmem:[#allocation7 + $0x38] sm:$0xf]
    %v324 = vld [vmem:[#allocation7 + $0x3c] sm:$0xf]
    %v325 = vld [vmem:[#allocation7 + $0x40] sm:$0xf]
    %v326 = vld [vmem:[#allocation7 + $0x44] sm:$0xf]
    %v327 = vld [vmem:[#allocation7 + $0x48] sm:$0xf]
    %v328 = vld [vmem:[#allocation7 + $0x4c] sm:$0xf]
    %v329 = vld [vmem:[#allocation7 + $0x50] sm:$0xf]
    %v330 = vld [vmem:[#allocation7 + $0x54] sm:$0xf]
    %v331 = vld [vmem:[#allocation7 + $0x58] sm:$0xf]
    %v332 = vld [vmem:[#allocation7 + $0x5c] sm:$0xf]
    %v333 = vld [vmem:[#allocation7 + $0x60] sm:$0xf]
    %v334 = vld [vmem:[#allocation7 + $0x64] sm:$0xf]
    %v335 = vld [vmem:[#allocation7 + $0x68] sm:$0xf]
    %v336 = vld [vmem:[#allocation7 + $0x6c] sm:$0xf]
    %v337 = vld [vmem:[#allocation7 + $0x70] sm:$0xf]
    %v338 = vld [vmem:[#allocation7 + $0x74] sm:$0xf]
    %v339 = vld [vmem:[#allocation7 + $0x78] sm:$0xf]
    %v340 = vld [vmem:[#allocation7 + $0x7c] sm:$0xf]
    %v341 = vld [vmem:[#allocation8] sm:$0xf]
    %v342 = vunpack.c.l.bf16 %v277
    %v343 = vunpack.c.l.bf16 %v278
    %v344 = vunpack.c.l.bf16 %v279
    %v345 = vunpack.c.l.bf16 %v280
    %v346 = vunpack.c.l.bf16 %v281
    %v347 = vunpack.c.l.bf16 %v282
    %v348 = vunpack.c.l.bf16 %v283
    %v349 = vunpack.c.l.bf16 %v284
    %v350 = vunpack.c.l.bf16 %v285
    %v351 = vunpack.c.l.bf16 %v286
    %v352 = vunpack.c.l.bf16 %v287
    %v353 = vunpack.c.l.bf16 %v288
    %v354 = vunpack.c.l.bf16 %v289
    %v355 = vunpack.c.l.bf16 %v290
    %v356 = vunpack.c.l.bf16 %v291
    %v357 = vunpack.c.l.bf16 %v292
    %v358 = vunpack.c.l.bf16 %v293
    %v359 = vunpack.c.l.bf16 %v294
    %v360 = vunpack.c.l.bf16 %v295
    %v361 = vunpack.c.l.bf16 %v296
    %v362 = vunpack.c.l.bf16 %v297
    %v363 = vunpack.c.l.bf16 %v298
    %v364 = vunpack.c.l.bf16 %v299
    %v365 = vunpack.c.l.bf16 %v300
    %v366 = vunpack.c.l.bf16 %v301
    %v367 = vunpack.c.l.bf16 %v302
    %v368 = vunpack.c.l.bf16 %v303
    %v369 = vunpack.c.l.bf16 %v304
    %v370 = vunpack.c.l.bf16 %v305
    %v371 = vunpack.c.l.bf16 %v306
    %v372 = vunpack.c.l.bf16 %v307
    %v373 = vunpack.c.l.bf16 %v308
    %v390 = vunpack.c.l.b16 %v84
    %v391 = vunpack.c.l.b16 %v85
    %v392 = vunpack.c.l.b16 %v86
    %v393 = vunpack.c.l.b16 %v87
    %v394 = vunpack.c.l.b16 %v88
    %v395 = vunpack.c.l.b16 %v89
    %v396 = vunpack.c.l.b16 %v90
    %v397 = vunpack.c.l.b16 %v91
    %v398 = vunpack.c.l.b16 %v92
    %v399 = vunpack.c.l.b16 %v93
    %v400 = vunpack.c.l.b16 %v94
    %v401 = vunpack.c.l.b16 %v95
    %v402 = vunpack.c.l.b16 %v96
    %v403 = vunpack.c.l.b16 %v97
    %v404 = vunpack.c.l.b16 %v98
    %v405 = vunpack.c.l.b16 %v99
    %v406 = vpack.c.b16 %v391, %v390
    %v407 = vpack.c.b16 %v393, %v392
    %v408 = vpack.c.b16 %v395, %v394
    %v409 = vpack.c.b16 %v397, %v396
    %v410 = vpack.c.b16 %v399, %v398
    %v411 = vpack.c.b16 %v401, %v400
    %v412 = vpack.c.b16 %v403, %v402
    %v413 = vpack.c.b16 %v405, %v404
    %v438 = vunpack.c.l.b16 %v277
    %v439 = vunpack.c.l.b16 %v278
    %v440 = vunpack.c.l.b16 %v279
    %v441 = vunpack.c.l.b16 %v280
    %v442 = vunpack.c.l.b16 %v281
    %v443 = vunpack.c.l.b16 %v282
    %v444 = vunpack.c.l.b16 %v283
    %v445 = vunpack.c.l.b16 %v284
    %v446 = vunpack.c.l.b16 %v285
    %v447 = vunpack.c.l.b16 %v286
    %v448 = vunpack.c.l.b16 %v287
    %v449 = vunpack.c.l.b16 %v288
    %v450 = vunpack.c.l.b16 %v289
    %v451 = vunpack.c.l.b16 %v290
    %v452 = vunpack.c.l.b16 %v291
    %v453 = vunpack.c.l.b16 %v292
    %v454 = vpack.c.b16 %v439, %v438
    %v455 = vpack.c.b16 %v441, %v440
    %v456 = vpack.c.b16 %v443, %v442
    %v457 = vpack.c.b16 %v445, %v444
    %v458 = vpack.c.b16 %v447, %v446
    %v459 = vpack.c.b16 %v449, %v448
    %v460 = vpack.c.b16 %v451, %v450
    %v461 = vpack.c.b16 %v453, %v452
    %470 = vmatpush.bf16.msra.mxu0 %v461
    %471 = vmatpush.bf16.msra.mxu0 %v460
    %472 = vmatpush.bf16.msra.mxu0 %v459
    %473 = vmatpush.bf16.msra.mxu0 %v458
    %474 = vmatpush.bf16.msra.mxu0 %v457
    %475 = vmatpush.bf16.msra.mxu0 %v456
    %476 = vmatpush.bf16.msra.mxu0 %v455
    %477 = vmatpush.bf16.msra.mxu0 %v454
    %478 = vmatmul.bf16.gmra.mxu0 %v406
    %v479 = vpop.f32.mrf.mxu0
    %v480 = vadd.f32 %v342, %v479
    %v481 = vpop.f32.mrf.mxu0
    %v482 = vadd.f32 %v343, %v481
    %483 = vmatmul.bf16.gmra.mxu0 %v407
    %v484 = vpop.f32.mrf.mxu0
    %v485 = vadd.f32 %v344, %v484
    %v486 = vpop.f32.mrf.mxu0
    %v487 = vadd.f32 %v345, %v486
    %488 = vmatmul.bf16.gmra.mxu0 %v408
    %v489 = vpop.f32.mrf.mxu0
    %v490 = vadd.f32 %v346, %v489
    %v491 = vpop.f32.mrf.mxu0
    %v492 = vadd.f32 %v347, %v491
    %493 = vmatmul.bf16.gmra.mxu0 %v409
    %v494 = vpop.f32.mrf.mxu0
    %v495 = vadd.f32 %v348, %v494
    %v496 = vpop.f32.mrf.mxu0
    %v497 = vadd.f32 %v349, %v496
    %498 = vmatmul.bf16.gmra.mxu0 %v410
    %v499 = vpop.f32.mrf.mxu0
    %v500 = vadd.f32 %v350, %v499
    %v501 = vpop.f32.mrf.mxu0
    %v502 = vadd.f32 %v351, %v501
    %503 = vmatmul.bf16.gmra.mxu0 %v411
    %v504 = vpop.f32.mrf.mxu0
    %v505 = vadd.f32 %v352, %v504
    %v506 = vpop.f32.mrf.mxu0
    %v507 = vadd.f32 %v353, %v506
    %508 = vmatmul.bf16.gmra.mxu0 %v412
    %v509 = vpop.f32.mrf.mxu0
    %v510 = vadd.f32 %v354, %v509
    %v511 = vpop.f32.mrf.mxu0
    %v512 = vadd.f32 %v355, %v511
    %513 = vmatmul.bf16.gmra.mxu0 %v413
    %v514 = vpop.f32.mrf.mxu0
    %v515 = vadd.f32 %v356, %v514
    %v516 = vpop.f32.mrf.mxu0
    %v517 = vadd.f32 %v357, %v516
    %518 = vdwg.mxu0
    %v535 = vunpack.c.l.b16 %v100
    %v536 = vunpack.c.l.b16 %v101
    %v537 = vunpack.c.l.b16 %v102
    %v538 = vunpack.c.l.b16 %v103
    %v539 = vunpack.c.l.b16 %v104
    %v540 = vunpack.c.l.b16 %v105
    %v541 = vunpack.c.l.b16 %v106
    %v542 = vunpack.c.l.b16 %v107
    %v543 = vunpack.c.l.b16 %v108
    %v544 = vunpack.c.l.b16 %v109
    %v545 = vunpack.c.l.b16 %v110
    %v546 = vunpack.c.l.b16 %v111
    %v547 = vunpack.c.l.b16 %v112
    %v548 = vunpack.c.l.b16 %v113
    %v549 = vunpack.c.l.b16 %v114
    %v550 = vunpack.c.l.b16 %v115
    %v551 = vpack.c.b16 %v536, %v535
    %v552 = vpack.c.b16 %v538, %v537
    %v553 = vpack.c.b16 %v540, %v539
    %v554 = vpack.c.b16 %v542, %v541
    %v555 = vpack.c.b16 %v544, %v543
    %v556 = vpack.c.b16 %v546, %v545
    %v557 = vpack.c.b16 %v548, %v547
    %v558 = vpack.c.b16 %v550, %v549
    %v583 = vunpack.c.l.b16 %v293
    %v584 = vunpack.c.l.b16 %v294
    %v585 = vunpack.c.l.b16 %v295
    %v586 = vunpack.c.l.b16 %v296
    %v587 = vunpack.c.l.b16 %v297
    %v588 = vunpack.c.l.b16 %v298
    %v589 = vunpack.c.l.b16 %v299
    %v590 = vunpack.c.l.b16 %v300
    %v591 = vunpack.c.l.b16 %v301
    %v592 = vunpack.c.l.b16 %v302
    %v593 = vunpack.c.l.b16 %v303
    %v594 = vunpack.c.l.b16 %v304
    %v595 = vunpack.c.l.b16 %v305
    %v596 = vunpack.c.l.b16 %v306
    %v597 = vunpack.c.l.b16 %v307
    %v598 = vunpack.c.l.b16 %v308
    %v599 = vpack.c.b16 %v584, %v583
    %v600 = vpack.c.b16 %v586, %v585
    %v601 = vpack.c.b16 %v588, %v587
    %v602 = vpack.c.b16 %v590, %v589
    %v603 = vpack.c.b16 %v592, %v591
    %v604 = vpack.c.b16 %v594, %v593
    %v605 = vpack.c.b16 %v596, %v595
    %v606 = vpack.c.b16 %v598, %v597
    %615 = vmatpush.bf16.msra.mxu0 %v606
    %616 = vmatpush.bf16.msra.mxu0 %v605
    %617 = vmatpush.bf16.msra.mxu0 %v604
    %618 = vmatpush.bf16.msra.mxu0 %v603
    %619 = vmatpush.bf16.msra.mxu0 %v602
    %620 = vmatpush.bf16.msra.mxu0 %v601
    %621 = vmatpush.bf16.msra.mxu0 %v600
    %622 = vmatpush.bf16.msra.mxu0 %v599
    %623 = vmatmul.bf16.gmra.mxu0 %v551
    %v624 = vpop.f32.mrf.mxu0
    %v625 = vadd.f32 %v358, %v624
    %v626 = vpop.f32.mrf.mxu0
    %v627 = vadd.f32 %v359, %v626
    %628 = vmatmul.bf16.gmra.mxu0 %v552
    %v629 = vpop.f32.mrf.mxu0
    %v630 = vadd.f32 %v360, %v629
    %v631 = vpop.f32.mrf.mxu0
    %v632 = vadd.f32 %v361, %v631
    %633 = vmatmul.bf16.gmra.mxu0 %v553
    %v634 = vpop.f32.mrf.mxu0
    %v635 = vadd.f32 %v362, %v634
    %v636 = vpop.f32.mrf.mxu0
    %v637 = vadd.f32 %v363, %v636
    %638 = vmatmul.bf16.gmra.mxu0 %v554
    %v639 = vpop.f32.mrf.mxu0
    %v640 = vadd.f32 %v364, %v639
    %v641 = vpop.f32.mrf.mxu0
    %v642 = vadd.f32 %v365, %v641
    %643 = vmatmul.bf16.gmra.mxu0 %v555
    %v644 = vpop.f32.mrf.mxu0
    %v645 = vadd.f32 %v366, %v644
    %v646 = vpop.f32.mrf.mxu0
    %v647 = vadd.f32 %v367, %v646
    %648 = vmatmul.bf16.gmra.mxu0 %v556
    %v649 = vpop.f32.mrf.mxu0
    %v650 = vadd.f32 %v368, %v649
    %v651 = vpop.f32.mrf.mxu0
    %v652 = vadd.f32 %v369, %v651
    %653 = vmatmul.bf16.gmra.mxu0 %v557
    %v654 = vpop.f32.mrf.mxu0
    %v655 = vadd.f32 %v370, %v654
    %v656 = vpop.f32.mrf.mxu0
    %v657 = vadd.f32 %v371, %v656
    %658 = vmatmul.bf16.gmra.mxu0 %v558
    %v659 = vpop.f32.mrf.mxu0
    %v660 = vadd.f32 %v372, %v659
    %v661 = vpop.f32.mrf.mxu0
    %v662 = vadd.f32 %v373, %v661
    %663 = vdwg.mxu0
    %v664 = vpack.c.bf16 %v482, %v480
    %v665 = vpack.c.bf16 %v487, %v485
    %v666 = vpack.c.bf16 %v492, %v490
    %v667 = vpack.c.bf16 %v497, %v495
    %v668 = vpack.c.bf16 %v502, %v500
    %v669 = vpack.c.bf16 %v507, %v505
    %v670 = vpack.c.bf16 %v512, %v510
    %v671 = vpack.c.bf16 %v517, %v515
    %v672 = vpack.c.bf16 %v627, %v625
    %v673 = vpack.c.bf16 %v632, %v630
    %v674 = vpack.c.bf16 %v637, %v635
    %v675 = vpack.c.bf16 %v642, %v640
    %v676 = vpack.c.bf16 %v647, %v645
    %v677 = vpack.c.bf16 %v652, %v650
    %v678 = vpack.c.bf16 %v657, %v655
    %v679 = vpack.c.bf16 %v662, %v660
    %v680 = vperm.slane %v341, 0
    %v697 = vunpack.c.l.b16 %v309
    %v698 = vunpack.c.l.b16 %v310
    %v699 = vunpack.c.l.b16 %v311
    %v700 = vunpack.c.l.b16 %v312
    %v701 = vunpack.c.l.b16 %v313
    %v702 = vunpack.c.l.b16 %v314
    %v703 = vunpack.c.l.b16 %v315
    %v704 = vunpack.c.l.b16 %v316
    %v705 = vunpack.c.l.b16 %v317
    %v706 = vunpack.c.l.b16 %v318
    %v707 = vunpack.c.l.b16 %v319
    %v708 = vunpack.c.l.b16 %v320
    %v709 = vunpack.c.l.b16 %v321
    %v710 = vunpack.c.l.b16 %v322
    %v711 = vunpack.c.l.b16 %v323
    %v712 = vunpack.c.l.b16 %v324
    %v713 = vpack.c.b16 %v698, %v697
    %v714 = vpack.c.b16 %v700, %v699
    %v715 = vpack.c.b16 %v702, %v701
    %v716 = vpack.c.b16 %v704, %v703
    %v717 = vpack.c.b16 %v706, %v705
    %v718 = vpack.c.b16 %v708, %v707
    %v719 = vpack.c.b16 %v710, %v709
    %v720 = vpack.c.b16 %v712, %v711
    %729 = vmatpush.bf16.msra.mxu0 %v720
    %730 = vmatpush.bf16.msra.mxu0 %v719
    %731 = vmatpush.bf16.msra.mxu0 %v718
    %732 = vmatpush.bf16.msra.mxu0 %v717
    %733 = vmatpush.bf16.msra.mxu0 %v716
    %734 = vmatpush.bf16.msra.mxu0 %v715
    %735 = vmatpush.bf16.msra.mxu0 %v714
    %736 = vmatpush.bf16.msra.mxu0 %v713
    %737 = vmatmul.bf16.gmra.mxu0 %v664
    %v738 = vpop.f32.mrf.mxu0
    %v739 = vadd.f32 %v680, %v738
    %v740 = vpop.f32.mrf.mxu0
    %v741 = vadd.f32 %v680, %v740
    %742 = vmatmul.bf16.gmra.mxu0 %v665
    %v743 = vpop.f32.mrf.mxu0
    %v744 = vadd.f32 %v680, %v743
    %v745 = vpop.f32.mrf.mxu0
    %v746 = vadd.f32 %v680, %v745
    %747 = vmatmul.bf16.gmra.mxu0 %v666
    %v748 = vpop.f32.mrf.mxu0
    %v749 = vadd.f32 %v680, %v748
    %v750 = vpop.f32.mrf.mxu0
    %v751 = vadd.f32 %v680, %v750
    %752 = vmatmul.bf16.gmra.mxu0 %v667
    %v753 = vpop.f32.mrf.mxu0
    %v754 = vadd.f32 %v680, %v753
    %v755 = vpop.f32.mrf.mxu0
    %v756 = vadd.f32 %v680, %v755
    %757 = vmatmul.bf16.gmra.mxu0 %v668
    %v758 = vpop.f32.mrf.mxu0
    %v759 = vadd.f32 %v680, %v758
    %v760 = vpop.f32.mrf.mxu0
    %v761 = vadd.f32 %v680, %v760
    %762 = vmatmul.bf16.gmra.mxu0 %v669
    %v763 = vpop.f32.mrf.mxu0
    %v764 = vadd.f32 %v680, %v763
    %v765 = vpop.f32.mrf.mxu0
    %v766 = vadd.f32 %v680, %v765
    %767 = vmatmul.bf16.gmra.mxu0 %v670
    %v768 = vpop.f32.mrf.mxu0
    %v769 = vadd.f32 %v680, %v768
    %v770 = vpop.f32.mrf.mxu0
    %v771 = vadd.f32 %v680, %v770
    %772 = vmatmul.bf16.gmra.mxu0 %v671
    %v773 = vpop.f32.mrf.mxu0
    %v774 = vadd.f32 %v680, %v773
    %v775 = vpop.f32.mrf.mxu0
    %v776 = vadd.f32 %v680, %v775
    %777 = vmatmul.bf16.gmra.mxu0 %v672
    %v778 = vpop.f32.mrf.mxu0
    %v779 = vadd.f32 %v680, %v778
    %v780 = vpop.f32.mrf.mxu0
    %v781 = vadd.f32 %v680, %v780
    %782 = vmatmul.bf16.gmra.mxu0 %v673
    %v783 = vpop.f32.mrf.mxu0
    %v784 = vadd.f32 %v680, %v783
    %v785 = vpop.f32.mrf.mxu0
    %v786 = vadd.f32 %v680, %v785
    %787 = vmatmul.bf16.gmra.mxu0 %v674
    %v788 = vpop.f32.mrf.mxu0
    %v789 = vadd.f32 %v680, %v788
    %v790 = vpop.f32.mrf.mxu0
    %v791 = vadd.f32 %v680, %v790
    %792 = vmatmul.bf16.gmra.mxu0 %v675
    %v793 = vpop.f32.mrf.mxu0
    %v794 = vadd.f32 %v680, %v793
    %v795 = vpop.f32.mrf.mxu0
    %v796 = vadd.f32 %v680, %v795
    %797 = vmatmul.bf16.gmra.mxu0 %v676
    %v798 = vpop.f32.mrf.mxu0
    %v799 = vadd.f32 %v680, %v798
    %v800 = vpop.f32.mrf.mxu0
    %v801 = vadd.f32 %v680, %v800
    %802 = vmatmul.bf16.gmra.mxu0 %v677
    %v803 = vpop.f32.mrf.mxu0
    %v804 = vadd.f32 %v680, %v803
    %v805 = vpop.f32.mrf.mxu0
    %v806 = vadd.f32 %v680, %v805
    %807 = vmatmul.bf16.gmra.mxu0 %v678
    %v808 = vpop.f32.mrf.mxu0
    %v809 = vadd.f32 %v680, %v808
    %v810 = vpop.f32.mrf.mxu0
    %v811 = vadd.f32 %v680, %v810
    %812 = vmatmul.bf16.gmra.mxu0 %v679
    %v813 = vpop.f32.mrf.mxu0
    %v814 = vadd.f32 %v680, %v813
    %v815 = vpop.f32.mrf.mxu0
    %v816 = vadd.f32 %v680, %v815
    %817 = vdwg.mxu0
    %v818 = vmax.f32 %v739, 0.0
    %v819 = vmax.f32 %v741, 0.0
    %v820 = vmax.f32 %v744, 0.0
    %v821 = vmax.f32 %v746, 0.0
    %v822 = vmax.f32 %v749, 0.0
    %v823 = vmax.f32 %v751, 0.0
    %v824 = vmax.f32 %v754, 0.0
    %v825 = vmax.f32 %v756, 0.0
    %v826 = vmax.f32 %v759, 0.0
    %v827 = vmax.f32 %v761, 0.0
    %v828 = vmax.f32 %v764, 0.0
    %v829 = vmax.f32 %v766, 0.0
    %v830 = vmax.f32 %v769, 0.0
    %v831 = vmax.f32 %v771, 0.0
    %v832 = vmax.f32 %v774, 0.0
    %v833 = vmax.f32 %v776, 0.0
    %v834 = vmax.f32 %v779, 0.0
    %v835 = vmax.f32 %v781, 0.0
    %v836 = vmax.f32 %v784, 0.0
    %v837 = vmax.f32 %v786, 0.0
    %v838 = vmax.f32 %v789, 0.0
    %v839 = vmax.f32 %v791, 0.0
    %v840 = vmax.f32 %v794, 0.0
    %v841 = vmax.f32 %v796, 0.0
    %v842 = vmax.f32 %v799, 0.0
    %v843 = vmax.f32 %v801, 0.0
    %v844 = vmax.f32 %v804, 0.0
    %v845 = vmax.f32 %v806, 0.0
    %v846 = vmax.f32 %v809, 0.0
    %v847 = vmax.f32 %v811, 0.0
    %v848 = vmax.f32 %v814, 0.0
    %v849 = vmax.f32 %v816, 0.0
    %v850 = vpack.c.bf16 %v819, %v818
    %v851 = vpack.c.bf16 %v821, %v820
    %v852 = vpack.c.bf16 %v823, %v822
    %v853 = vpack.c.bf16 %v825, %v824
    %v854 = vpack.c.bf16 %v827, %v826
    %v855 = vpack.c.bf16 %v829, %v828
    %v856 = vpack.c.bf16 %v831, %v830
    %v857 = vpack.c.bf16 %v833, %v832
    %v858 = vpack.c.bf16 %v835, %v834
    %v859 = vpack.c.bf16 %v837, %v836
    %v860 = vpack.c.bf16 %v839, %v838
    %v861 = vpack.c.bf16 %v841, %v840
    %v862 = vpack.c.bf16 %v843, %v842
    %v863 = vpack.c.bf16 %v845, %v844
    %v864 = vpack.c.bf16 %v847, %v846
    %v865 = vpack.c.bf16 %v849, %v848
    %v866 = vperm.slane %v341, 1
    %v883 = vunpack.c.l.b16 %v325
    %v884 = vunpack.c.l.b16 %v326
    %v885 = vunpack.c.l.b16 %v327
    %v886 = vunpack.c.l.b16 %v328
    %v887 = vunpack.c.l.b16 %v329
    %v888 = vunpack.c.l.b16 %v330
    %v889 = vunpack.c.l.b16 %v331
    %v890 = vunpack.c.l.b16 %v332
    %v891 = vunpack.c.l.b16 %v333
    %v892 = vunpack.c.l.b16 %v334
    %v893 = vunpack.c.l.b16 %v335
    %v894 = vunpack.c.l.b16 %v336
    %v895 = vunpack.c.l.b16 %v337
    %v896 = vunpack.c.l.b16 %v338
    %v897 = vunpack.c.l.b16 %v339
    %v898 = vunpack.c.l.b16 %v340
    %v899 = vpack.c.b16 %v884, %v883
    %v900 = vpack.c.b16 %v886, %v885
    %v901 = vpack.c.b16 %v888, %v887
    %v902 = vpack.c.b16 %v890, %v889
    %v903 = vpack.c.b16 %v892, %v891
    %v904 = vpack.c.b16 %v894, %v893
    %v905 = vpack.c.b16 %v896, %v895
    %v906 = vpack.c.b16 %v898, %v897
    %915 = vmatpush.bf16.msra.mxu0 %v906
    %916 = vmatpush.bf16.msra.mxu0 %v905
    %917 = vmatpush.bf16.msra.mxu0 %v904
    %918 = vmatpush.bf16.msra.mxu0 %v903
    %919 = vmatpush.bf16.msra.mxu0 %v902
    %920 = vmatpush.bf16.msra.mxu0 %v901
    %921 = vmatpush.bf16.msra.mxu0 %v900
    %922 = vmatpush.bf16.msra.mxu0 %v899
    %923 = vmatmul.bf16.gmra.mxu0 %v850
    %v924 = vpop.f32.mrf.mxu0
    %v925 = vadd.f32 %v866, %v924
    %v926 = vpop.f32.mrf.mxu0
    %v927 = vadd.f32 %v866, %v926
    %928 = vmatmul.bf16.gmra.mxu0 %v851
    %v929 = vpop.f32.mrf.mxu0
    %v930 = vadd.f32 %v866, %v929
    %v931 = vpop.f32.mrf.mxu0
    %v932 = vadd.f32 %v866, %v931
    %933 = vmatmul.bf16.gmra.mxu0 %v852
    %v934 = vpop.f32.mrf.mxu0
    %v935 = vadd.f32 %v866, %v934
    %v936 = vpop.f32.mrf.mxu0
    %v937 = vadd.f32 %v866, %v936
    %938 = vmatmul.bf16.gmra.mxu0 %v853
    %v939 = vpop.f32.mrf.mxu0
    %v940 = vadd.f32 %v866, %v939
    %v941 = vpop.f32.mrf.mxu0
    %v942 = vadd.f32 %v866, %v941
    %943 = vmatmul.bf16.gmra.mxu0 %v854
    %v944 = vpop.f32.mrf.mxu0
    %v945 = vadd.f32 %v866, %v944
    %v946 = vpop.f32.mrf.mxu0
    %v947 = vadd.f32 %v866, %v946
    %948 = vmatmul.bf16.gmra.mxu0 %v855
    %v949 = vpop.f32.mrf.mxu0
    %v950 = vadd.f32 %v866, %v949
    %v951 = vpop.f32.mrf.mxu0
    %v952 = vadd.f32 %v866, %v951
    %953 = vmatmul.bf16.gmra.mxu0 %v856
    %v954 = vpop.f32.mrf.mxu0
    %v955 = vadd.f32 %v866, %v954
    %v956 = vpop.f32.mrf.mxu0
    %v957 = vadd.f32 %v866, %v956
    %958 = vmatmul.bf16.gmra.mxu0 %v857
    %v959 = vpop.f32.mrf.mxu0
    %v960 = vadd.f32 %v866, %v959
    %v961 = vpop.f32.mrf.mxu0
    %v962 = vadd.f32 %v866, %v961
    %963 = vmatmul.bf16.gmra.mxu0 %v858
    %v964 = vpop.f32.mrf.mxu0
    %v965 = vadd.f32 %v866, %v964
    %v966 = vpop.f32.mrf.mxu0
    %v967 = vadd.f32 %v866, %v966
    %968 = vmatmul.bf16.gmra.mxu0 %v859
    %v969 = vpop.f32.mrf.mxu0
    %v970 = vadd.f32 %v866, %v969
    %v971 = vpop.f32.mrf.mxu0
    %v972 = vadd.f32 %v866, %v971
    %973 = vmatmul.bf16.gmra.mxu0 %v860
    %v974 = vpop.f32.mrf.mxu0
    %v975 = vadd.f32 %v866, %v974
    %v976 = vpop.f32.mrf.mxu0
    %v977 = vadd.f32 %v866, %v976
    %978 = vmatmul.bf16.gmra.mxu0 %v861
    %v979 = vpop.f32.mrf.mxu0
    %v980 = vadd.f32 %v866, %v979
    %v981 = vpop.f32.mrf.mxu0
    %v982 = vadd.f32 %v866, %v981
    %983 = vmatmul.bf16.gmra.mxu0 %v862
    %v984 = vpop.f32.mrf.mxu0
    %v985 = vadd.f32 %v866, %v984
    %v986 = vpop.f32.mrf.mxu0
    %v987 = vadd.f32 %v866, %v986
    %988 = vmatmul.bf16.gmra.mxu0 %v863
    %v989 = vpop.f32.mrf.mxu0
    %v990 = vadd.f32 %v866, %v989
    %v991 = vpop.f32.mrf.mxu0
    %v992 = vadd.f32 %v866, %v991
    %993 = vmatmul.bf16.gmra.mxu0 %v864
    %v994 = vpop.f32.mrf.mxu0
    %v995 = vadd.f32 %v866, %v994
    %v996 = vpop.f32.mrf.mxu0
    %v997 = vadd.f32 %v866, %v996
    %998 = vmatmul.bf16.gmra.mxu0 %v865
    %v999 = vpop.f32.mrf.mxu0
    %v1000 = vadd.f32 %v866, %v999
    %v1001 = vpop.f32.mrf.mxu0
    %v1002 = vadd.f32 %v866, %v1001
    %1003 = vdwg.mxu0
    %v1004 = vmul.f32 %v925, %v245
    %v1005 = vmul.f32 %v927, %v246
    %v1006 = vmul.f32 %v930, %v247
    %v1007 = vmul.f32 %v932, %v248
    %v1008 = vmul.f32 %v935, %v249
    %v1009 = vmul.f32 %v937, %v250
    %v1010 = vmul.f32 %v940, %v251
    %v1011 = vmul.f32 %v942, %v252
    %v1012 = vmul.f32 %v945, %v253
    %v1013 = vmul.f32 %v947, %v254
    %v1014 = vmul.f32 %v950, %v255
    %v1015 = vmul.f32 %v952, %v256
    %v1016 = vmul.f32 %v955, %v257
    %v1017 = vmul.f32 %v957, %v258
    %v1018 = vmul.f32 %v960, %v259
    %v1019 = vmul.f32 %v962, %v260
    %v1020 = vmul.f32 %v965, %v261
    %v1021 = vmul.f32 %v967, %v262
    %v1022 = vmul.f32 %v970, %v263
    %v1023 = vmul.f32 %v972, %v264
    %v1024 = vmul.f32 %v975, %v265
    %v1025 = vmul.f32 %v977, %v266
    %v1026 = vmul.f32 %v980, %v267
    %v1027 = vmul.f32 %v982, %v268
    %v1028 = vmul.f32 %v985, %v269
    %v1029 = vmul.f32 %v987, %v270
    %v1030 = vmul.f32 %v990, %v271
    %v1031 = vmul.f32 %v992, %v272
    %v1032 = vmul.f32 %v995, %v273
    %v1033 = vmul.f32 %v997, %v274
    %v1034 = vmul.f32 %v1000, %v275
    %v1035 = vmul.f32 %v1002, %v276
    %v1036 = vadd.f32 %v1004, %v1005
    %v1037 = vadd.f32 %v1036, %v1006
    %v1038 = vadd.f32 %v1037, %v1007
    %v1039 = vadd.f32 %v1038, %v1008
    %v1040 = vadd.f32 %v1039, %v1009
    %v1041 = vadd.f32 %v1040, %v1010
    %v1042 = vadd.f32 %v1041, %v1011
    %v1043 = vadd.f32 %v1042, %v1012
    %v1044 = vadd.f32 %v1043, %v1013
    %v1045 = vadd.f32 %v1044, %v1014
    %v1046 = vadd.f32 %v1045, %v1015
    %v1047 = vadd.f32 %v1046, %v1016
    %v1048 = vadd.f32 %v1047, %v1017
    %v1049 = vadd.f32 %v1048, %v1018
    %v1050 = vadd.f32 %v1049, %v1019
    %v1051 = vadd.f32 %v1050, %v1020
    %v1052 = vadd.f32 %v1051, %v1021
    %v1053 = vadd.f32 %v1052, %v1022
    %v1054 = vadd.f32 %v1053, %v1023
    %v1055 = vadd.f32 %v1054, %v1024
    %v1056 = vadd.f32 %v1055, %v1025
    %v1057 = vadd.f32 %v1056, %v1026
    %v1058 = vadd.f32 %v1057, %v1027
    %v1059 = vadd.f32 %v1058, %v1028
    %v1060 = vadd.f32 %v1059, %v1029
    %v1061 = vadd.f32 %v1060, %v1030
    %v1062 = vadd.f32 %v1061, %v1031
    %v1063 = vadd.f32 %v1062, %v1032
    %v1064 = vadd.f32 %v1063, %v1033
    %v1065 = vadd.f32 %v1064, %v1034
    %v1066 = vadd.f32 %v1065, %v1035
    %v1067 = vrot.slane %v1066, 4
    %v1068 = vadd.f32 %v1066, %v1067
    %v1069 = vrot.slane %v1068, 2
    %v1070 = vadd.f32 %v1068, %v1069
    %v1071 = vrot.slane %v1070, 1
    %v1072 = vadd.f32 %v1070, %v1071
    %v1073 = vmul.f32 %v1004, %v1004
    %v1074 = vmul.f32 %v1005, %v1005
    %v1075 = vmul.f32 %v1006, %v1006
    %v1076 = vmul.f32 %v1007, %v1007
    %v1077 = vmul.f32 %v1008, %v1008
    %v1078 = vmul.f32 %v1009, %v1009
    %v1079 = vmul.f32 %v1010, %v1010
    %v1080 = vmul.f32 %v1011, %v1011
    %v1081 = vmul.f32 %v1012, %v1012
    %v1082 = vmul.f32 %v1013, %v1013
    %v1083 = vmul.f32 %v1014, %v1014
    %v1084 = vmul.f32 %v1015, %v1015
    %v1085 = vmul.f32 %v1016, %v1016
    %v1086 = vmul.f32 %v1017, %v1017
    %v1087 = vmul.f32 %v1018, %v1018
    %v1088 = vmul.f32 %v1019, %v1019
    %v1089 = vmul.f32 %v1020, %v1020
    %v1090 = vmul.f32 %v1021, %v1021
    %v1091 = vmul.f32 %v1022, %v1022
    %v1092 = vmul.f32 %v1023, %v1023
    %v1093 = vmul.f32 %v1024, %v1024
    %v1094 = vmul.f32 %v1025, %v1025
    %v1095 = vmul.f32 %v1026, %v1026
    %v1096 = vmul.f32 %v1027, %v1027
    %v1097 = vmul.f32 %v1028, %v1028
    %v1098 = vmul.f32 %v1029, %v1029
    %v1099 = vmul.f32 %v1030, %v1030
    %v1100 = vmul.f32 %v1031, %v1031
    %v1101 = vmul.f32 %v1032, %v1032
    %v1102 = vmul.f32 %v1033, %v1033
    %v1103 = vmul.f32 %v1034, %v1034
    %v1104 = vmul.f32 %v1035, %v1035
    %v1105 = vadd.f32 %v1073, %v1074
    %v1106 = vadd.f32 %v1105, %v1075
    %v1107 = vadd.f32 %v1106, %v1076
    %v1108 = vadd.f32 %v1107, %v1077
    %v1109 = vadd.f32 %v1108, %v1078
    %v1110 = vadd.f32 %v1109, %v1079
    %v1111 = vadd.f32 %v1110, %v1080
    %v1112 = vadd.f32 %v1111, %v1081
    %v1113 = vadd.f32 %v1112, %v1082
    %v1114 = vadd.f32 %v1113, %v1083
    %v1115 = vadd.f32 %v1114, %v1084
    %v1116 = vadd.f32 %v1115, %v1085
    %v1117 = vadd.f32 %v1116, %v1086
    %v1118 = vadd.f32 %v1117, %v1087
    %v1119 = vadd.f32 %v1118, %v1088
    %v1120 = vadd.f32 %v1119, %v1089
    %v1121 = vadd.f32 %v1120, %v1090
    %v1122 = vadd.f32 %v1121, %v1091
    %v1123 = vadd.f32 %v1122, %v1092
    %v1124 = vadd.f32 %v1123, %v1093
    %v1125 = vadd.f32 %v1124, %v1094
    %v1126 = vadd.f32 %v1125, %v1095
    %v1127 = vadd.f32 %v1126, %v1096
    %v1128 = vadd.f32 %v1127, %v1097
    %v1129 = vadd.f32 %v1128, %v1098
    %v1130 = vadd.f32 %v1129, %v1099
    %v1131 = vadd.f32 %v1130, %v1100
    %v1132 = vadd.f32 %v1131, %v1101
    %v1133 = vadd.f32 %v1132, %v1102
    %v1134 = vadd.f32 %v1133, %v1103
    %v1135 = vadd.f32 %v1134, %v1104
    %v1136 = vrot.slane %v1135, 4
    %v1137 = vadd.f32 %v1135, %v1136
    %v1138 = vrot.slane %v1137, 2
    %v1139 = vadd.f32 %v1137, %v1138
    %v1140 = vrot.slane %v1139, 1
    %v1141 = vadd.f32 %v1139, %v1140
    %v1142 = vmul.f32 %v1072, 0.004310345
    %v1143 = vmul.f32 %v1141, 0.004310345
    %v1144 = vmul.f32 %v1142, %v1142
    %v1145 = vsub.f32 %v1143, %v1144
    %v1146 = vmax.f32 %v1145, 0.0
    %v1147 = vadd.f32 %v1146, 1e-05
    %v1148 = vrsqrt.pop %v1147
    %v1149 = vmul.f32 %v1148, %v1147
    %v1150 = vmul.f32 %v1149, %v1148
    %v1151 = vmul.f32 0.5, %v1150
    %v1152 = vsub.f32 1.5, %v1151
    %v1153 = vmul.f32 %v1148, %v1152
    %vm1154 = vweird.f32 %v1147
    %vm1155 = vweird.f32 %v1148
    %vm1156 = vmor %vm1154, %vm1155
    %v1157 = vsel %vm1156, %v1148, %v1153
    %v1158 = vmul.f32 %v1157, %v341
    %v1159 = vmul.f32 %v1142, %v1158
    %v1161 = vrot.slane %v1159, 7
    %v1163 = vsub.f32 %v341, %v1161
    %v1164 = vperm.slane %v1158, 2
    %v1165 = vmul.f32 %v1004, %v1164
    %v1166 = vmul.f32 %v1005, %v1164
    %v1167 = vmul.f32 %v1006, %v1164
    %v1168 = vmul.f32 %v1007, %v1164
    %v1169 = vmul.f32 %v1008, %v1164
    %v1170 = vmul.f32 %v1009, %v1164
    %v1171 = vmul.f32 %v1010, %v1164
    %v1172 = vmul.f32 %v1011, %v1164
    %v1173 = vmul.f32 %v1012, %v1164
    %v1174 = vmul.f32 %v1013, %v1164
    %v1175 = vmul.f32 %v1014, %v1164
    %v1176 = vmul.f32 %v1015, %v1164
    %v1177 = vmul.f32 %v1016, %v1164
    %v1178 = vmul.f32 %v1017, %v1164
    %v1179 = vmul.f32 %v1018, %v1164
    %v1180 = vmul.f32 %v1019, %v1164
    %v1181 = vmul.f32 %v1020, %v1164
    %v1182 = vmul.f32 %v1021, %v1164
    %v1183 = vmul.f32 %v1022, %v1164
    %v1184 = vmul.f32 %v1023, %v1164
    %v1185 = vmul.f32 %v1024, %v1164
    %v1186 = vmul.f32 %v1025, %v1164
    %v1187 = vmul.f32 %v1026, %v1164
    %v1188 = vmul.f32 %v1027, %v1164
    %v1189 = vmul.f32 %v1028, %v1164
    %v1190 = vmul.f32 %v1029, %v1164
    %v1191 = vmul.f32 %v1030, %v1164
    %v1192 = vmul.f32 %v1031, %v1164
    %v1193 = vmul.f32 %v1032, %v1164
    %v1194 = vmul.f32 %v1033, %v1164
    %v1195 = vmul.f32 %v1034, %v1164
    %v1196 = vmul.f32 %v1035, %v1164
    %v1197 = vperm.slane %v1163, 3
    %v1198 = vadd.f32 %v1165, %v1197
    %v1199 = vadd.f32 %v1166, %v1197
    %v1200 = vadd.f32 %v1167, %v1197
    %v1201 = vadd.f32 %v1168, %v1197
    %v1202 = vadd.f32 %v1169, %v1197
    %v1203 = vadd.f32 %v1170, %v1197
    %v1204 = vadd.f32 %v1171, %v1197
    %v1205 = vadd.f32 %v1172, %v1197
    %v1206 = vadd.f32 %v1173, %v1197
    %v1207 = vadd.f32 %v1174, %v1197
    %v1208 = vadd.f32 %v1175, %v1197
    %v1209 = vadd.f32 %v1176, %v1197
    %v1210 = vadd.f32 %v1177, %v1197
    %v1211 = vadd.f32 %v1178, %v1197
    %v1212 = vadd.f32 %v1179, %v1197
    %v1213 = vadd.f32 %v1180, %v1197
    %v1214 = vadd.f32 %v1181, %v1197
    %v1215 = vadd.f32 %v1182, %v1197
    %v1216 = vadd.f32 %v1183, %v1197
    %v1217 = vadd.f32 %v1184, %v1197
    %v1218 = vadd.f32 %v1185, %v1197
    %v1219 = vadd.f32 %v1186, %v1197
    %v1220 = vadd.f32 %v1187, %v1197
    %v1221 = vadd.f32 %v1188, %v1197
    %v1222 = vadd.f32 %v1189, %v1197
    %v1223 = vadd.f32 %v1190, %v1197
    %v1224 = vadd.f32 %v1191, %v1197
    %v1225 = vadd.f32 %v1192, %v1197
    %v1226 = vadd.f32 %v1193, %v1197
    %v1227 = vadd.f32 %v1194, %v1197
    %v1228 = vadd.f32 %v1195, %v1197
    %v1229 = vadd.f32 %v1196, %v1197
    %v1230 = vmax.f32 %v1198, 0.0
    %v1231 = vmax.f32 %v1199, 0.0
    %v1232 = vmax.f32 %v1200, 0.0
    %v1233 = vmax.f32 %v1201, 0.0
    %v1234 = vmax.f32 %v1202, 0.0
    %v1235 = vmax.f32 %v1203, 0.0
    %v1236 = vmax.f32 %v1204, 0.0
    %v1237 = vmax.f32 %v1205, 0.0
    %v1238 = vmax.f32 %v1206, 0.0
    %v1239 = vmax.f32 %v1207, 0.0
    %v1240 = vmax.f32 %v1208, 0.0
    %v1241 = vmax.f32 %v1209, 0.0
    %v1242 = vmax.f32 %v1210, 0.0
    %v1243 = vmax.f32 %v1211, 0.0
    %v1244 = vmax.f32 %v1212, 0.0
    %v1245 = vmax.f32 %v1213, 0.0
    %v1246 = vmax.f32 %v1214, 0.0
    %v1247 = vmax.f32 %v1215, 0.0
    %v1248 = vmax.f32 %v1216, 0.0
    %v1249 = vmax.f32 %v1217, 0.0
    %v1250 = vmax.f32 %v1218, 0.0
    %v1251 = vmax.f32 %v1219, 0.0
    %v1252 = vmax.f32 %v1220, 0.0
    %v1253 = vmax.f32 %v1221, 0.0
    %v1254 = vmax.f32 %v1222, 0.0
    %v1255 = vmax.f32 %v1223, 0.0
    %v1256 = vmax.f32 %v1224, 0.0
    %v1257 = vmax.f32 %v1225, 0.0
    %v1258 = vmax.f32 %v1226, 0.0
    %v1259 = vmax.f32 %v1227, 0.0
    %v1260 = vmax.f32 %v1228, 0.0
    %v1261 = vmax.f32 %v1229, 0.0
    %v1262 = vpack.c.bf16 %v1230, %v1230
    %v1263 = vpack.c.bf16 %v1231, %v1231
    %v1264 = vpack.c.bf16 %v1232, %v1232
    %v1265 = vpack.c.bf16 %v1233, %v1233
    %v1266 = vpack.c.bf16 %v1234, %v1234
    %v1267 = vpack.c.bf16 %v1235, %v1235
    %v1268 = vpack.c.bf16 %v1236, %v1236
    %v1269 = vpack.c.bf16 %v1237, %v1237
    %v1270 = vpack.c.bf16 %v1238, %v1238
    %v1271 = vpack.c.bf16 %v1239, %v1239
    %v1272 = vpack.c.bf16 %v1240, %v1240
    %v1273 = vpack.c.bf16 %v1241, %v1241
    %v1274 = vpack.c.bf16 %v1242, %v1242
    %v1275 = vpack.c.bf16 %v1243, %v1243
    %v1276 = vpack.c.bf16 %v1244, %v1244
    %v1277 = vpack.c.bf16 %v1245, %v1245
    %v1278 = vpack.c.bf16 %v1246, %v1246
    %v1279 = vpack.c.bf16 %v1247, %v1247
    %v1280 = vpack.c.bf16 %v1248, %v1248
    %v1281 = vpack.c.bf16 %v1249, %v1249
    %v1282 = vpack.c.bf16 %v1250, %v1250
    %v1283 = vpack.c.bf16 %v1251, %v1251
    %v1284 = vpack.c.bf16 %v1252, %v1252
    %v1285 = vpack.c.bf16 %v1253, %v1253
    %v1286 = vpack.c.bf16 %v1254, %v1254
    %v1287 = vpack.c.bf16 %v1255, %v1255
    %v1288 = vpack.c.bf16 %v1256, %v1256
    %v1289 = vpack.c.bf16 %v1257, %v1257
    %v1290 = vpack.c.bf16 %v1258, %v1258
    %v1291 = vpack.c.bf16 %v1259, %v1259
    %v1292 = vpack.c.bf16 %v1260, %v1260
    %v1293 = vpack.c.bf16 %v1261, %v1261
    %s1294 = scalar_lea.vmem [#allocation7], 128
    %v1295 = vld [vmem:[%s1294] sm:$0xf]
    %v1296 = vld [vmem:[%s1294 + $0x4] sm:$0xf]
    %v1297 = vld [vmem:[%s1294 + $0x8] sm:$0xf]
    %v1298 = vld [vmem:[%s1294 + $0xc] sm:$0xf]
    %v1299 = vld [vmem:[%s1294 + $0x10] sm:$0xf]
    %v1300 = vld [vmem:[%s1294 + $0x14] sm:$0xf]
    %v1301 = vld [vmem:[%s1294 + $0x18] sm:$0xf]
    %v1302 = vld [vmem:[%s1294 + $0x1c] sm:$0xf]
    %v1303 = vld [vmem:[%s1294 + $0x20] sm:$0xf]
    %v1304 = vld [vmem:[%s1294 + $0x24] sm:$0xf]
    %v1305 = vld [vmem:[%s1294 + $0x28] sm:$0xf]
    %v1306 = vld [vmem:[%s1294 + $0x2c] sm:$0xf]
    %v1307 = vld [vmem:[%s1294 + $0x30] sm:$0xf]
    %v1308 = vld [vmem:[%s1294 + $0x34] sm:$0xf]
    %v1309 = vld [vmem:[%s1294 + $0x38] sm:$0xf]
    %v1310 = vld [vmem:[%s1294 + $0x3c] sm:$0xf]
    %v1311 = vld [vmem:[%s1294 + $0x40] sm:$0xf]
    %v1312 = vld [vmem:[%s1294 + $0x44] sm:$0xf]
    %v1313 = vld [vmem:[%s1294 + $0x48] sm:$0xf]
    %v1314 = vld [vmem:[%s1294 + $0x4c] sm:$0xf]
    %v1315 = vld [vmem:[%s1294 + $0x50] sm:$0xf]
    %v1316 = vld [vmem:[%s1294 + $0x54] sm:$0xf]
    %v1317 = vld [vmem:[%s1294 + $0x58] sm:$0xf]
    %v1318 = vld [vmem:[%s1294 + $0x5c] sm:$0xf]
    %v1319 = vld [vmem:[%s1294 + $0x60] sm:$0xf]
    %v1320 = vld [vmem:[%s1294 + $0x64] sm:$0xf]
    %v1321 = vld [vmem:[%s1294 + $0x68] sm:$0xf]
    %v1322 = vld [vmem:[%s1294 + $0x6c] sm:$0xf]
    %v1323 = vld [vmem:[%s1294 + $0x70] sm:$0xf]
    %v1324 = vld [vmem:[%s1294 + $0x74] sm:$0xf]
    %v1325 = vld [vmem:[%s1294 + $0x78] sm:$0xf]
    %v1326 = vld [vmem:[%s1294 + $0x7c] sm:$0xf]
    %s1327 = scalar_lea.vmem [#allocation8], 4
    %v1328 = vld [vmem:[%s1327] sm:$0xf]
    %v1329 = vunpack.c.l.bf16 %v1262
    %v1330 = vunpack.c.l.bf16 %v1263
    %v1331 = vunpack.c.l.bf16 %v1264
    %v1332 = vunpack.c.l.bf16 %v1265
    %v1333 = vunpack.c.l.bf16 %v1266
    %v1334 = vunpack.c.l.bf16 %v1267
    %v1335 = vunpack.c.l.bf16 %v1268
    %v1336 = vunpack.c.l.bf16 %v1269
    %v1337 = vunpack.c.l.bf16 %v1270
    %v1338 = vunpack.c.l.bf16 %v1271
    %v1339 = vunpack.c.l.bf16 %v1272
    %v1340 = vunpack.c.l.bf16 %v1273
    %v1341 = vunpack.c.l.bf16 %v1274
    %v1342 = vunpack.c.l.bf16 %v1275
    %v1343 = vunpack.c.l.bf16 %v1276
    %v1344 = vunpack.c.l.bf16 %v1277
    %v1345 = vunpack.c.l.bf16 %v1278
    %v1346 = vunpack.c.l.bf16 %v1279
    %v1347 = vunpack.c.l.bf16 %v1280
    %v1348 = vunpack.c.l.bf16 %v1281
    %v1349 = vunpack.c.l.bf16 %v1282
    %v1350 = vunpack.c.l.bf16 %v1283
    %v1351 = vunpack.c.l.bf16 %v1284
    %v1352 = vunpack.c.l.bf16 %v1285
    %v1353 = vunpack.c.l.bf16 %v1286
    %v1354 = vunpack.c.l.bf16 %v1287
    %v1355 = vunpack.c.l.bf16 %v1288
    %v1356 = vunpack.c.l.bf16 %v1289
    %v1357 = vunpack.c.l.bf16 %v1290
    %v1358 = vunpack.c.l.bf16 %v1291
    %v1359 = vunpack.c.l.bf16 %v1292
    %v1360 = vunpack.c.l.bf16 %v1293
    %v1377 = vunpack.c.l.b16 %v1262
    %v1378 = vunpack.c.l.b16 %v1263
    %v1379 = vunpack.c.l.b16 %v1264
    %v1380 = vunpack.c.l.b16 %v1265
    %v1381 = vunpack.c.l.b16 %v1266
    %v1382 = vunpack.c.l.b16 %v1267
    %v1383 = vunpack.c.l.b16 %v1268
    %v1384 = vunpack.c.l.b16 %v1269
    %v1385 = vunpack.c.l.b16 %v1270
    %v1386 = vunpack.c.l.b16 %v1271
    %v1387 = vunpack.c.l.b16 %v1272
    %v1388 = vunpack.c.l.b16 %v1273
    %v1389 = vunpack.c.l.b16 %v1274
    %v1390 = vunpack.c.l.b16 %v1275
    %v1391 = vunpack.c.l.b16 %v1276
    %v1392 = vunpack.c.l.b16 %v1277
    %v1393 = vpack.c.b16 %v1378, %v1377
    %v1394 = vpack.c.b16 %v1380, %v1379
    %v1395 = vpack.c.b16 %v1382, %v1381
    %v1396 = vpack.c.b16 %v1384, %v1383
    %v1397 = vpack.c.b16 %v1386, %v1385
    %v1398 = vpack.c.b16 %v1388, %v1387
    %v1399 = vpack.c.b16 %v1390, %v1389
    %v1400 = vpack.c.b16 %v1392, %v1391
    %1409 = vmatpush.bf16.msra.mxu0 %v1400
    %1410 = vmatpush.bf16.msra.mxu0 %v1399
    %1411 = vmatpush.bf16.msra.mxu0 %v1398
    %1412 = vmatpush.bf16.msra.mxu0 %v1397
    %1413 = vmatpush.bf16.msra.mxu0 %v1396
    %1414 = vmatpush.bf16.msra.mxu0 %v1395
    %1415 = vmatpush.bf16.msra.mxu0 %v1394
    %1416 = vmatpush.bf16.msra.mxu0 %v1393
    %1417 = vmatmul.bf16.gmra.mxu0 %v406
    %v1418 = vpop.f32.mrf.mxu0
    %v1419 = vadd.f32 %v1329, %v1418
    %v1420 = vpop.f32.mrf.mxu0
    %v1421 = vadd.f32 %v1330, %v1420
    %1422 = vmatmul.bf16.gmra.mxu0 %v407
    %v1423 = vpop.f32.mrf.mxu0
    %v1424 = vadd.f32 %v1331, %v1423
    %v1425 = vpop.f32.mrf.mxu0
    %v1426 = vadd.f32 %v1332, %v1425
    %1427 = vmatmul.bf16.gmra.mxu0 %v408
    %v1428 = vpop.f32.mrf.mxu0
    %v1429 = vadd.f32 %v1333, %v1428
    %v1430 = vpop.f32.mrf.mxu0
    %v1431 = vadd.f32 %v1334, %v1430
    %1432 = vmatmul.bf16.gmra.mxu0 %v409
    %v1433 = vpop.f32.mrf.mxu0
    %v1434 = vadd.f32 %v1335, %v1433
    %v1435 = vpop.f32.mrf.mxu0
    %v1436 = vadd.f32 %v1336, %v1435
    %1437 = vmatmul.bf16.gmra.mxu0 %v410
    %v1438 = vpop.f32.mrf.mxu0
    %v1439 = vadd.f32 %v1337, %v1438
    %v1440 = vpop.f32.mrf.mxu0
    %v1441 = vadd.f32 %v1338, %v1440
    %1442 = vmatmul.bf16.gmra.mxu0 %v411
    %v1443 = vpop.f32.mrf.mxu0
    %v1444 = vadd.f32 %v1339, %v1443
    %v1445 = vpop.f32.mrf.mxu0
    %v1446 = vadd.f32 %v1340, %v1445
    %1447 = vmatmul.bf16.gmra.mxu0 %v412
    %v1448 = vpop.f32.mrf.mxu0
    %v1449 = vadd.f32 %v1341, %v1448
    %v1450 = vpop.f32.mrf.mxu0
    %v1451 = vadd.f32 %v1342, %v1450
    %1452 = vmatmul.bf16.gmra.mxu0 %v413
    %v1453 = vpop.f32.mrf.mxu0
    %v1454 = vadd.f32 %v1343, %v1453
    %v1455 = vpop.f32.mrf.mxu0
    %v1456 = vadd.f32 %v1344, %v1455
    %1457 = vdwg.mxu0
    %v1474 = vunpack.c.l.b16 %v1278
    %v1475 = vunpack.c.l.b16 %v1279
    %v1476 = vunpack.c.l.b16 %v1280
    %v1477 = vunpack.c.l.b16 %v1281
    %v1478 = vunpack.c.l.b16 %v1282
    %v1479 = vunpack.c.l.b16 %v1283
    %v1480 = vunpack.c.l.b16 %v1284
    %v1481 = vunpack.c.l.b16 %v1285
    %v1482 = vunpack.c.l.b16 %v1286
    %v1483 = vunpack.c.l.b16 %v1287
    %v1484 = vunpack.c.l.b16 %v1288
    %v1485 = vunpack.c.l.b16 %v1289
    %v1486 = vunpack.c.l.b16 %v1290
    %v1487 = vunpack.c.l.b16 %v1291
    %v1488 = vunpack.c.l.b16 %v1292
    %v1489 = vunpack.c.l.b16 %v1293
    %v1490 = vpack.c.b16 %v1475, %v1474
    %v1491 = vpack.c.b16 %v1477, %v1476
    %v1492 = vpack.c.b16 %v1479, %v1478
    %v1493 = vpack.c.b16 %v1481, %v1480
    %v1494 = vpack.c.b16 %v1483, %v1482
    %v1495 = vpack.c.b16 %v1485, %v1484
    %v1496 = vpack.c.b16 %v1487, %v1486
    %v1497 = vpack.c.b16 %v1489, %v1488
    %1506 = vmatpush.bf16.msra.mxu0 %v1497
    %1507 = vmatpush.bf16.msra.mxu0 %v1496
    %1508 = vmatpush.bf16.msra.mxu0 %v1495
    %1509 = vmatpush.bf16.msra.mxu0 %v1494
    %1510 = vmatpush.bf16.msra.mxu0 %v1493
    %1511 = vmatpush.bf16.msra.mxu0 %v1492
    %1512 = vmatpush.bf16.msra.mxu0 %v1491
    %1513 = vmatpush.bf16.msra.mxu0 %v1490
    %1514 = vmatmul.bf16.gmra.mxu0 %v551
    %v1515 = vpop.f32.mrf.mxu0
    %v1516 = vadd.f32 %v1345, %v1515
    %v1517 = vpop.f32.mrf.mxu0
    %v1518 = vadd.f32 %v1346, %v1517
    %1519 = vmatmul.bf16.gmra.mxu0 %v552
    %v1520 = vpop.f32.mrf.mxu0
    %v1521 = vadd.f32 %v1347, %v1520
    %v1522 = vpop.f32.mrf.mxu0
    %v1523 = vadd.f32 %v1348, %v1522
    %1524 = vmatmul.bf16.gmra.mxu0 %v553
    %v1525 = vpop.f32.mrf.mxu0
    %v1526 = vadd.f32 %v1349, %v1525
    %v1527 = vpop.f32.mrf.mxu0
    %v1528 = vadd.f32 %v1350, %v1527
    %1529 = vmatmul.bf16.gmra.mxu0 %v554
    %v1530 = vpop.f32.mrf.mxu0
    %v1531 = vadd.f32 %v1351, %v1530
    %v1532 = vpop.f32.mrf.mxu0
    %v1533 = vadd.f32 %v1352, %v1532
    %1534 = vmatmul.bf16.gmra.mxu0 %v555
    %v1535 = vpop.f32.mrf.mxu0
    %v1536 = vadd.f32 %v1353, %v1535
    %v1537 = vpop.f32.mrf.mxu0
    %v1538 = vadd.f32 %v1354, %v1537
    %1539 = vmatmul.bf16.gmra.mxu0 %v556
    %v1540 = vpop.f32.mrf.mxu0
    %v1541 = vadd.f32 %v1355, %v1540
    %v1542 = vpop.f32.mrf.mxu0
    %v1543 = vadd.f32 %v1356, %v1542
    %1544 = vmatmul.bf16.gmra.mxu0 %v557
    %v1545 = vpop.f32.mrf.mxu0
    %v1546 = vadd.f32 %v1357, %v1545
    %v1547 = vpop.f32.mrf.mxu0
    %v1548 = vadd.f32 %v1358, %v1547
    %1549 = vmatmul.bf16.gmra.mxu0 %v558
    %v1550 = vpop.f32.mrf.mxu0
    %v1551 = vadd.f32 %v1359, %v1550
    %v1552 = vpop.f32.mrf.mxu0
    %v1553 = vadd.f32 %v1360, %v1552
    %1554 = vdwg.mxu0
    %v1555 = vpack.c.bf16 %v1421, %v1419
    %v1556 = vpack.c.bf16 %v1426, %v1424
    %v1557 = vpack.c.bf16 %v1431, %v1429
    %v1558 = vpack.c.bf16 %v1436, %v1434
    %v1559 = vpack.c.bf16 %v1441, %v1439
    %v1560 = vpack.c.bf16 %v1446, %v1444
    %v1561 = vpack.c.bf16 %v1451, %v1449
    %v1562 = vpack.c.bf16 %v1456, %v1454
    %v1563 = vpack.c.bf16 %v1518, %v1516
    %v1564 = vpack.c.bf16 %v1523, %v1521
    %v1565 = vpack.c.bf16 %v1528, %v1526
    %v1566 = vpack.c.bf16 %v1533, %v1531
    %v1567 = vpack.c.bf16 %v1538, %v1536
    %v1568 = vpack.c.bf16 %v1543, %v1541
    %v1569 = vpack.c.bf16 %v1548, %v1546
    %v1570 = vpack.c.bf16 %v1553, %v1551
    %v1571 = vperm.slane %v1328, 0
    %v1588 = vunpack.c.l.b16 %v1295
    %v1589 = vunpack.c.l.b16 %v1296
    %v1590 = vunpack.c.l.b16 %v1297
    %v1591 = vunpack.c.l.b16 %v1298
    %v1592 = vunpack.c.l.b16 %v1299
    %v1593 = vunpack.c.l.b16 %v1300
    %v1594 = vunpack.c.l.b16 %v1301
    %v1595 = vunpack.c.l.b16 %v1302
    %v1596 = vunpack.c.l.b16 %v1303
    %v1597 = vunpack.c.l.b16 %v1304
    %v1598 = vunpack.c.l.b16 %v1305
    %v1599 = vunpack.c.l.b16 %v1306
    %v1600 = vunpack.c.l.b16 %v1307
    %v1601 = vunpack.c.l.b16 %v1308
    %v1602 = vunpack.c.l.b16 %v1309
    %v1603 = vunpack.c.l.b16 %v1310
    %v1604 = vpack.c.b16 %v1589, %v1588
    %v1605 = vpack.c.b16 %v1591, %v1590
    %v1606 = vpack.c.b16 %v1593, %v1592
    %v1607 = vpack.c.b16 %v1595, %v1594
    %v1608 = vpack.c.b16 %v1597, %v1596
    %v1609 = vpack.c.b16 %v1599, %v1598
    %v1610 = vpack.c.b16 %v1601, %v1600
    %v1611 = vpack.c.b16 %v1603, %v1602
    %1620 = vmatpush.bf16.msra.mxu0 %v1611
    %1621 = vmatpush.bf16.msra.mxu0 %v1610
    %1622 = vmatpush.bf16.msra.mxu0 %v1609
    %1623 = vmatpush.bf16.msra.mxu0 %v1608
    %1624 = vmatpush.bf16.msra.mxu0 %v1607
    %1625 = vmatpush.bf16.msra.mxu0 %v1606
    %1626 = vmatpush.bf16.msra.mxu0 %v1605
    %1627 = vmatpush.bf16.msra.mxu0 %v1604
    %1628 = vmatmul.bf16.gmra.mxu0 %v1555
    %v1629 = vpop.f32.mrf.mxu0
    %v1630 = vadd.f32 %v1571, %v1629
    %v1631 = vpop.f32.mrf.mxu0
    %v1632 = vadd.f32 %v1571, %v1631
    %1633 = vmatmul.bf16.gmra.mxu0 %v1556
    %v1634 = vpop.f32.mrf.mxu0
    %v1635 = vadd.f32 %v1571, %v1634
    %v1636 = vpop.f32.mrf.mxu0
    %v1637 = vadd.f32 %v1571, %v1636
    %1638 = vmatmul.bf16.gmra.mxu0 %v1557
    %v1639 = vpop.f32.mrf.mxu0
    %v1640 = vadd.f32 %v1571, %v1639
    %v1641 = vpop.f32.mrf.mxu0
    %v1642 = vadd.f32 %v1571, %v1641
    %1643 = vmatmul.bf16.gmra.mxu0 %v1558
    %v1644 = vpop.f32.mrf.mxu0
    %v1645 = vadd.f32 %v1571, %v1644
    %v1646 = vpop.f32.mrf.mxu0
    %v1647 = vadd.f32 %v1571, %v1646
    %1648 = vmatmul.bf16.gmra.mxu0 %v1559
    %v1649 = vpop.f32.mrf.mxu0
    %v1650 = vadd.f32 %v1571, %v1649
    %v1651 = vpop.f32.mrf.mxu0
    %v1652 = vadd.f32 %v1571, %v1651
    %1653 = vmatmul.bf16.gmra.mxu0 %v1560
    %v1654 = vpop.f32.mrf.mxu0
    %v1655 = vadd.f32 %v1571, %v1654
    %v1656 = vpop.f32.mrf.mxu0
    %v1657 = vadd.f32 %v1571, %v1656
    %1658 = vmatmul.bf16.gmra.mxu0 %v1561
    %v1659 = vpop.f32.mrf.mxu0
    %v1660 = vadd.f32 %v1571, %v1659
    %v1661 = vpop.f32.mrf.mxu0
    %v1662 = vadd.f32 %v1571, %v1661
    %1663 = vmatmul.bf16.gmra.mxu0 %v1562
    %v1664 = vpop.f32.mrf.mxu0
    %v1665 = vadd.f32 %v1571, %v1664
    %v1666 = vpop.f32.mrf.mxu0
    %v1667 = vadd.f32 %v1571, %v1666
    %1668 = vmatmul.bf16.gmra.mxu0 %v1563
    %v1669 = vpop.f32.mrf.mxu0
    %v1670 = vadd.f32 %v1571, %v1669
    %v1671 = vpop.f32.mrf.mxu0
    %v1672 = vadd.f32 %v1571, %v1671
    %1673 = vmatmul.bf16.gmra.mxu0 %v1564
    %v1674 = vpop.f32.mrf.mxu0
    %v1675 = vadd.f32 %v1571, %v1674
    %v1676 = vpop.f32.mrf.mxu0
    %v1677 = vadd.f32 %v1571, %v1676
    %1678 = vmatmul.bf16.gmra.mxu0 %v1565
    %v1679 = vpop.f32.mrf.mxu0
    %v1680 = vadd.f32 %v1571, %v1679
    %v1681 = vpop.f32.mrf.mxu0
    %v1682 = vadd.f32 %v1571, %v1681
    %1683 = vmatmul.bf16.gmra.mxu0 %v1566
    %v1684 = vpop.f32.mrf.mxu0
    %v1685 = vadd.f32 %v1571, %v1684
    %v1686 = vpop.f32.mrf.mxu0
    %v1687 = vadd.f32 %v1571, %v1686
    %1688 = vmatmul.bf16.gmra.mxu0 %v1567
    %v1689 = vpop.f32.mrf.mxu0
    %v1690 = vadd.f32 %v1571, %v1689
    %v1691 = vpop.f32.mrf.mxu0
    %v1692 = vadd.f32 %v1571, %v1691
    %1693 = vmatmul.bf16.gmra.mxu0 %v1568
    %v1694 = vpop.f32.mrf.mxu0
    %v1695 = vadd.f32 %v1571, %v1694
    %v1696 = vpop.f32.mrf.mxu0
    %v1697 = vadd.f32 %v1571, %v1696
    %1698 = vmatmul.bf16.gmra.mxu0 %v1569
    %v1699 = vpop.f32.mrf.mxu0
    %v1700 = vadd.f32 %v1571, %v1699
    %v1701 = vpop.f32.mrf.mxu0
    %v1702 = vadd.f32 %v1571, %v1701
    %1703 = vmatmul.bf16.gmra.mxu0 %v1570
    %v1704 = vpop.f32.mrf.mxu0
    %v1705 = vadd.f32 %v1571, %v1704
    %v1706 = vpop.f32.mrf.mxu0
    %v1707 = vadd.f32 %v1571, %v1706
    %1708 = vdwg.mxu0
    %v1709 = vmax.f32 %v1630, 0.0
    %v1710 = vmax.f32 %v1632, 0.0
    %v1711 = vmax.f32 %v1635, 0.0
    %v1712 = vmax.f32 %v1637, 0.0
    %v1713 = vmax.f32 %v1640, 0.0
    %v1714 = vmax.f32 %v1642, 0.0
    %v1715 = vmax.f32 %v1645, 0.0
    %v1716 = vmax.f32 %v1647, 0.0
    %v1717 = vmax.f32 %v1650, 0.0
    %v1718 = vmax.f32 %v1652, 0.0
    %v1719 = vmax.f32 %v1655, 0.0
    %v1720 = vmax.f32 %v1657, 0.0
    %v1721 = vmax.f32 %v1660, 0.0
    %v1722 = vmax.f32 %v1662, 0.0
    %v1723 = vmax.f32 %v1665, 0.0
    %v1724 = vmax.f32 %v1667, 0.0
    %v1725 = vmax.f32 %v1670, 0.0
    %v1726 = vmax.f32 %v1672, 0.0
    %v1727 = vmax.f32 %v1675, 0.0
    %v1728 = vmax.f32 %v1677, 0.0
    %v1729 = vmax.f32 %v1680, 0.0
    %v1730 = vmax.f32 %v1682, 0.0
    %v1731 = vmax.f32 %v1685, 0.0
    %v1732 = vmax.f32 %v1687, 0.0
    %v1733 = vmax.f32 %v1690, 0.0
    %v1734 = vmax.f32 %v1692, 0.0
    %v1735 = vmax.f32 %v1695, 0.0
    %v1736 = vmax.f32 %v1697, 0.0
    %v1737 = vmax.f32 %v1700, 0.0
    %v1738 = vmax.f32 %v1702, 0.0
    %v1739 = vmax.f32 %v1705, 0.0
    %v1740 = vmax.f32 %v1707, 0.0
    %v1741 = vpack.c.bf16 %v1710, %v1709
    %v1742 = vpack.c.bf16 %v1712, %v1711
    %v1743 = vpack.c.bf16 %v1714, %v1713
    %v1744 = vpack.c.bf16 %v1716, %v1715
    %v1745 = vpack.c.bf16 %v1718, %v1717
    %v1746 = vpack.c.bf16 %v1720, %v1719
    %v1747 = vpack.c.bf16 %v1722, %v1721
    %v1748 = vpack.c.bf16 %v1724, %v1723
    %v1749 = vpack.c.bf16 %v1726, %v1725
    %v1750 = vpack.c.bf16 %v1728, %v1727
    %v1751 = vpack.c.bf16 %v1730, %v1729
    %v1752 = vpack.c.bf16 %v1732, %v1731
    %v1753 = vpack.c.bf16 %v1734, %v1733
    %v1754 = vpack.c.bf16 %v1736, %v1735
    %v1755 = vpack.c.bf16 %v1738, %v1737
    %v1756 = vpack.c.bf16 %v1740, %v1739
    %v1757 = vperm.slane %v1328, 1
    %v1774 = vunpack.c.l.b16 %v1311
    %v1775 = vunpack.c.l.b16 %v1312
    %v1776 = vunpack.c.l.b16 %v1313
    %v1777 = vunpack.c.l.b16 %v1314
    %v1778 = vunpack.c.l.b16 %v1315
    %v1779 = vunpack.c.l.b16 %v1316
    %v1780 = vunpack.c.l.b16 %v1317
    %v1781 = vunpack.c.l.b16 %v1318
    %v1782 = vunpack.c.l.b16 %v1319
    %v1783 = vunpack.c.l.b16 %v1320
    %v1784 = vunpack.c.l.b16 %v1321
    %v1785 = vunpack.c.l.b16 %v1322
    %v1786 = vunpack.c.l.b16 %v1323
    %v1787 = vunpack.c.l.b16 %v1324
    %v1788 = vunpack.c.l.b16 %v1325
    %v1789 = vunpack.c.l.b16 %v1326
    %v1790 = vpack.c.b16 %v1775, %v1774
    %v1791 = vpack.c.b16 %v1777, %v1776
    %v1792 = vpack.c.b16 %v1779, %v1778
    %v1793 = vpack.c.b16 %v1781, %v1780
    %v1794 = vpack.c.b16 %v1783, %v1782
    %v1795 = vpack.c.b16 %v1785, %v1784
    %v1796 = vpack.c.b16 %v1787, %v1786
    %v1797 = vpack.c.b16 %v1789, %v1788
    %1806 = vmatpush.bf16.msra.mxu0 %v1797
    %1807 = vmatpush.bf16.msra.mxu0 %v1796
    %1808 = vmatpush.bf16.msra.mxu0 %v1795
    %1809 = vmatpush.bf16.msra.mxu0 %v1794
    %1810 = vmatpush.bf16.msra.mxu0 %v1793
    %1811 = vmatpush.bf16.msra.mxu0 %v1792
    %1812 = vmatpush.bf16.msra.mxu0 %v1791
    %1813 = vmatpush.bf16.msra.mxu0 %v1790
    %1814 = vmatmul.bf16.gmra.mxu0 %v1741
    %v1815 = vpop.f32.mrf.mxu0
    %v1816 = vadd.f32 %v1757, %v1815
    %v1817 = vpop.f32.mrf.mxu0
    %v1818 = vadd.f32 %v1757, %v1817
    %1819 = vmatmul.bf16.gmra.mxu0 %v1742
    %v1820 = vpop.f32.mrf.mxu0
    %v1821 = vadd.f32 %v1757, %v1820
    %v1822 = vpop.f32.mrf.mxu0
    %v1823 = vadd.f32 %v1757, %v1822
    %1824 = vmatmul.bf16.gmra.mxu0 %v1743
    %v1825 = vpop.f32.mrf.mxu0
    %v1826 = vadd.f32 %v1757, %v1825
    %v1827 = vpop.f32.mrf.mxu0
    %v1828 = vadd.f32 %v1757, %v1827
    %1829 = vmatmul.bf16.gmra.mxu0 %v1744
    %v1830 = vpop.f32.mrf.mxu0
    %v1831 = vadd.f32 %v1757, %v1830
    %v1832 = vpop.f32.mrf.mxu0
    %v1833 = vadd.f32 %v1757, %v1832
    %1834 = vmatmul.bf16.gmra.mxu0 %v1745
    %v1835 = vpop.f32.mrf.mxu0
    %v1836 = vadd.f32 %v1757, %v1835
    %v1837 = vpop.f32.mrf.mxu0
    %v1838 = vadd.f32 %v1757, %v1837
    %1839 = vmatmul.bf16.gmra.mxu0 %v1746
    %v1840 = vpop.f32.mrf.mxu0
    %v1841 = vadd.f32 %v1757, %v1840
    %v1842 = vpop.f32.mrf.mxu0
    %v1843 = vadd.f32 %v1757, %v1842
    %1844 = vmatmul.bf16.gmra.mxu0 %v1747
    %v1845 = vpop.f32.mrf.mxu0
    %v1846 = vadd.f32 %v1757, %v1845
    %v1847 = vpop.f32.mrf.mxu0
    %v1848 = vadd.f32 %v1757, %v1847
    %1849 = vmatmul.bf16.gmra.mxu0 %v1748
    %v1850 = vpop.f32.mrf.mxu0
    %v1851 = vadd.f32 %v1757, %v1850
    %v1852 = vpop.f32.mrf.mxu0
    %v1853 = vadd.f32 %v1757, %v1852
    %1854 = vmatmul.bf16.gmra.mxu0 %v1749
    %v1855 = vpop.f32.mrf.mxu0
    %v1856 = vadd.f32 %v1757, %v1855
    %v1857 = vpop.f32.mrf.mxu0
    %v1858 = vadd.f32 %v1757, %v1857
    %1859 = vmatmul.bf16.gmra.mxu0 %v1750
    %v1860 = vpop.f32.mrf.mxu0
    %v1861 = vadd.f32 %v1757, %v1860
    %v1862 = vpop.f32.mrf.mxu0
    %v1863 = vadd.f32 %v1757, %v1862
    %1864 = vmatmul.bf16.gmra.mxu0 %v1751
    %v1865 = vpop.f32.mrf.mxu0
    %v1866 = vadd.f32 %v1757, %v1865
    %v1867 = vpop.f32.mrf.mxu0
    %v1868 = vadd.f32 %v1757, %v1867
    %1869 = vmatmul.bf16.gmra.mxu0 %v1752
    %v1870 = vpop.f32.mrf.mxu0
    %v1871 = vadd.f32 %v1757, %v1870
    %v1872 = vpop.f32.mrf.mxu0
    %v1873 = vadd.f32 %v1757, %v1872
    %1874 = vmatmul.bf16.gmra.mxu0 %v1753
    %v1875 = vpop.f32.mrf.mxu0
    %v1876 = vadd.f32 %v1757, %v1875
    %v1877 = vpop.f32.mrf.mxu0
    %v1878 = vadd.f32 %v1757, %v1877
    %1879 = vmatmul.bf16.gmra.mxu0 %v1754
    %v1880 = vpop.f32.mrf.mxu0
    %v1881 = vadd.f32 %v1757, %v1880
    %v1882 = vpop.f32.mrf.mxu0
    %v1883 = vadd.f32 %v1757, %v1882
    %1884 = vmatmul.bf16.gmra.mxu0 %v1755
    %v1885 = vpop.f32.mrf.mxu0
    %v1886 = vadd.f32 %v1757, %v1885
    %v1887 = vpop.f32.mrf.mxu0
    %v1888 = vadd.f32 %v1757, %v1887
    %1889 = vmatmul.bf16.gmra.mxu0 %v1756
    %v1890 = vpop.f32.mrf.mxu0
    %v1891 = vadd.f32 %v1757, %v1890
    %v1892 = vpop.f32.mrf.mxu0
    %v1893 = vadd.f32 %v1757, %v1892
    %1894 = vdwg.mxu0
    %v1895 = vmul.f32 %v1816, %v245
    %v1896 = vmul.f32 %v1818, %v246
    %v1897 = vmul.f32 %v1821, %v247
    %v1898 = vmul.f32 %v1823, %v248
    %v1899 = vmul.f32 %v1826, %v249
    %v1900 = vmul.f32 %v1828, %v250
    %v1901 = vmul.f32 %v1831, %v251
    %v1902 = vmul.f32 %v1833, %v252
    %v1903 = vmul.f32 %v1836, %v253
    %v1904 = vmul.f32 %v1838, %v254
    %v1905 = vmul.f32 %v1841, %v255
    %v1906 = vmul.f32 %v1843, %v256
    %v1907 = vmul.f32 %v1846, %v257
    %v1908 = vmul.f32 %v1848, %v258
    %v1909 = vmul.f32 %v1851, %v259
    %v1910 = vmul.f32 %v1853, %v260
    %v1911 = vmul.f32 %v1856, %v261
    %v1912 = vmul.f32 %v1858, %v262
    %v1913 = vmul.f32 %v1861, %v263
    %v1914 = vmul.f32 %v1863, %v264
    %v1915 = vmul.f32 %v1866, %v265
    %v1916 = vmul.f32 %v1868, %v266
    %v1917 = vmul.f32 %v1871, %v267
    %v1918 = vmul.f32 %v1873, %v268
    %v1919 = vmul.f32 %v1876, %v269
    %v1920 = vmul.f32 %v1878, %v270
    %v1921 = vmul.f32 %v1881, %v271
    %v1922 = vmul.f32 %v1883, %v272
    %v1923 = vmul.f32 %v1886, %v273
    %v1924 = vmul.f32 %v1888, %v274
    %v1925 = vmul.f32 %v1891, %v275
    %v1926 = vmul.f32 %v1893, %v276
    %v1927 = vadd.f32 %v1895, %v1896
    %v1928 = vadd.f32 %v1927, %v1897
    %v1929 = vadd.f32 %v1928, %v1898
    %v1930 = vadd.f32 %v1929, %v1899
    %v1931 = vadd.f32 %v1930, %v1900
    %v1932 = vadd.f32 %v1931, %v1901
    %v1933 = vadd.f32 %v1932, %v1902
    %v1934 = vadd.f32 %v1933, %v1903
    %v1935 = vadd.f32 %v1934, %v1904
    %v1936 = vadd.f32 %v1935, %v1905
    %v1937 = vadd.f32 %v1936, %v1906
    %v1938 = vadd.f32 %v1937, %v1907
    %v1939 = vadd.f32 %v1938, %v1908
    %v1940 = vadd.f32 %v1939, %v1909
    %v1941 = vadd.f32 %v1940, %v1910
    %v1942 = vadd.f32 %v1941, %v1911
    %v1943 = vadd.f32 %v1942, %v1912
    %v1944 = vadd.f32 %v1943, %v1913
    %v1945 = vadd.f32 %v1944, %v1914
    %v1946 = vadd.f32 %v1945, %v1915
    %v1947 = vadd.f32 %v1946, %v1916
    %v1948 = vadd.f32 %v1947, %v1917
    %v1949 = vadd.f32 %v1948, %v1918
    %v1950 = vadd.f32 %v1949, %v1919
    %v1951 = vadd.f32 %v1950, %v1920
    %v1952 = vadd.f32 %v1951, %v1921
    %v1953 = vadd.f32 %v1952, %v1922
    %v1954 = vadd.f32 %v1953, %v1923
    %v1955 = vadd.f32 %v1954, %v1924
    %v1956 = vadd.f32 %v1955, %v1925
    %v1957 = vadd.f32 %v1956, %v1926
    %v1958 = vrot.slane %v1957, 4
    %v1959 = vadd.f32 %v1957, %v1958
    %v1960 = vrot.slane %v1959, 2
    %v1961 = vadd.f32 %v1959, %v1960
    %v1962 = vrot.slane %v1961, 1
    %v1963 = vadd.f32 %v1961, %v1962
    %v1964 = vmul.f32 %v1895, %v1895
    %v1965 = vmul.f32 %v1896, %v1896
    %v1966 = vmul.f32 %v1897, %v1897
    %v1967 = vmul.f32 %v1898, %v1898
    %v1968 = vmul.f32 %v1899, %v1899
    %v1969 = vmul.f32 %v1900, %v1900
    %v1970 = vmul.f32 %v1901, %v1901
    %v1971 = vmul.f32 %v1902, %v1902
    %v1972 = vmul.f32 %v1903, %v1903
    %v1973 = vmul.f32 %v1904, %v1904
    %v1974 = vmul.f32 %v1905, %v1905
    %v1975 = vmul.f32 %v1906, %v1906
    %v1976 = vmul.f32 %v1907, %v1907
    %v1977 = vmul.f32 %v1908, %v1908
    %v1978 = vmul.f32 %v1909, %v1909
    %v1979 = vmul.f32 %v1910, %v1910
    %v1980 = vmul.f32 %v1911, %v1911
    %v1981 = vmul.f32 %v1912, %v1912
    %v1982 = vmul.f32 %v1913, %v1913
    %v1983 = vmul.f32 %v1914, %v1914
    %v1984 = vmul.f32 %v1915, %v1915
    %v1985 = vmul.f32 %v1916, %v1916
    %v1986 = vmul.f32 %v1917, %v1917
    %v1987 = vmul.f32 %v1918, %v1918
    %v1988 = vmul.f32 %v1919, %v1919
    %v1989 = vmul.f32 %v1920, %v1920
    %v1990 = vmul.f32 %v1921, %v1921
    %v1991 = vmul.f32 %v1922, %v1922
    %v1992 = vmul.f32 %v1923, %v1923
    %v1993 = vmul.f32 %v1924, %v1924
    %v1994 = vmul.f32 %v1925, %v1925
    %v1995 = vmul.f32 %v1926, %v1926
    %v1996 = vadd.f32 %v1964, %v1965
    %v1997 = vadd.f32 %v1996, %v1966
    %v1998 = vadd.f32 %v1997, %v1967
    %v1999 = vadd.f32 %v1998, %v1968
    %v2000 = vadd.f32 %v1999, %v1969
    %v2001 = vadd.f32 %v2000, %v1970
    %v2002 = vadd.f32 %v2001, %v1971
    %v2003 = vadd.f32 %v2002, %v1972
    %v2004 = vadd.f32 %v2003, %v1973
    %v2005 = vadd.f32 %v2004, %v1974
    %v2006 = vadd.f32 %v2005, %v1975
    %v2007 = vadd.f32 %v2006, %v1976
    %v2008 = vadd.f32 %v2007, %v1977
    %v2009 = vadd.f32 %v2008, %v1978
    %v2010 = vadd.f32 %v2009, %v1979
    %v2011 = vadd.f32 %v2010, %v1980
    %v2012 = vadd.f32 %v2011, %v1981
    %v2013 = vadd.f32 %v2012, %v1982
    %v2014 = vadd.f32 %v2013, %v1983
    %v2015 = vadd.f32 %v2014, %v1984
    %v2016 = vadd.f32 %v2015, %v1985
    %v2017 = vadd.f32 %v2016, %v1986
    %v2018 = vadd.f32 %v2017, %v1987
    %v2019 = vadd.f32 %v2018, %v1988
    %v2020 = vadd.f32 %v2019, %v1989
    %v2021 = vadd.f32 %v2020, %v1990
    %v2022 = vadd.f32 %v2021, %v1991
    %v2023 = vadd.f32 %v2022, %v1992
    %v2024 = vadd.f32 %v2023, %v1993
    %v2025 = vadd.f32 %v2024, %v1994
    %v2026 = vadd.f32 %v2025, %v1995
    %v2027 = vrot.slane %v2026, 4
    %v2028 = vadd.f32 %v2026, %v2027
    %v2029 = vrot.slane %v2028, 2
    %v2030 = vadd.f32 %v2028, %v2029
    %v2031 = vrot.slane %v2030, 1
    %v2032 = vadd.f32 %v2030, %v2031
    %v2033 = vmul.f32 %v1963, 0.004310345
    %v2034 = vmul.f32 %v2032, 0.004310345
    %v2035 = vmul.f32 %v2033, %v2033
    %v2036 = vsub.f32 %v2034, %v2035
    %v2037 = vmax.f32 %v2036, 0.0
    %v2038 = vadd.f32 %v2037, 1e-05
    %v2039 = vrsqrt.pop %v2038
    %v2040 = vmul.f32 %v2039, %v2038
    %v2041 = vmul.f32 %v2040, %v2039
    %v2042 = vmul.f32 0.5, %v2041
    %v2043 = vsub.f32 1.5, %v2042
    %v2044 = vmul.f32 %v2039, %v2043
    %vm2045 = vweird.f32 %v2038
    %vm2046 = vweird.f32 %v2039
    %vm2047 = vmor %vm2045, %vm2046
    %v2048 = vsel %vm2047, %v2039, %v2044
    %v2049 = vmul.f32 %v2048, %v1328
    %v2050 = vmul.f32 %v2033, %v2049
    %v2052 = vrot.slane %v2050, 7
    %v2054 = vsub.f32 %v1328, %v2052
    %v2055 = vperm.slane %v2049, 2
    %v2056 = vmul.f32 %v1895, %v2055
    %v2057 = vmul.f32 %v1896, %v2055
    %v2058 = vmul.f32 %v1897, %v2055
    %v2059 = vmul.f32 %v1898, %v2055
    %v2060 = vmul.f32 %v1899, %v2055
    %v2061 = vmul.f32 %v1900, %v2055
    %v2062 = vmul.f32 %v1901, %v2055
    %v2063 = vmul.f32 %v1902, %v2055
    %v2064 = vmul.f32 %v1903, %v2055
    %v2065 = vmul.f32 %v1904, %v2055
    %v2066 = vmul.f32 %v1905, %v2055
    %v2067 = vmul.f32 %v1906, %v2055
    %v2068 = vmul.f32 %v1907, %v2055
    %v2069 = vmul.f32 %v1908, %v2055
    %v2070 = vmul.f32 %v1909, %v2055
    %v2071 = vmul.f32 %v1910, %v2055
    %v2072 = vmul.f32 %v1911, %v2055
    %v2073 = vmul.f32 %v1912, %v2055
    %v2074 = vmul.f32 %v1913, %v2055
    %v2075 = vmul.f32 %v1914, %v2055
    %v2076 = vmul.f32 %v1915, %v2055
    %v2077 = vmul.f32 %v1916, %v2055
    %v2078 = vmul.f32 %v1917, %v2055
    %v2079 = vmul.f32 %v1918, %v2055
    %v2080 = vmul.f32 %v1919, %v2055
    %v2081 = vmul.f32 %v1920, %v2055
    %v2082 = vmul.f32 %v1921, %v2055
    %v2083 = vmul.f32 %v1922, %v2055
    %v2084 = vmul.f32 %v1923, %v2055
    %v2085 = vmul.f32 %v1924, %v2055
    %v2086 = vmul.f32 %v1925, %v2055
    %v2087 = vmul.f32 %v1926, %v2055
    %v2088 = vperm.slane %v2054, 3
    %v2089 = vadd.f32 %v2056, %v2088
    %v2090 = vadd.f32 %v2057, %v2088
    %v2091 = vadd.f32 %v2058, %v2088
    %v2092 = vadd.f32 %v2059, %v2088
    %v2093 = vadd.f32 %v2060, %v2088
    %v2094 = vadd.f32 %v2061, %v2088
    %v2095 = vadd.f32 %v2062, %v2088
    %v2096 = vadd.f32 %v2063, %v2088
    %v2097 = vadd.f32 %v2064, %v2088
    %v2098 = vadd.f32 %v2065, %v2088
    %v2099 = vadd.f32 %v2066, %v2088
    %v2100 = vadd.f32 %v2067, %v2088
    %v2101 = vadd.f32 %v2068, %v2088
    %v2102 = vadd.f32 %v2069, %v2088
    %v2103 = vadd.f32 %v2070, %v2088
    %v2104 = vadd.f32 %v2071, %v2088
    %v2105 = vadd.f32 %v2072, %v2088
    %v2106 = vadd.f32 %v2073, %v2088
    %v2107 = vadd.f32 %v2074, %v2088
    %v2108 = vadd.f32 %v2075, %v2088
    %v2109 = vadd.f32 %v2076, %v2088
    %v2110 = vadd.f32 %v2077, %v2088
    %v2111 = vadd.f32 %v2078, %v2088
    %v2112 = vadd.f32 %v2079, %v2088
    %v2113 = vadd.f32 %v2080, %v2088
    %v2114 = vadd.f32 %v2081, %v2088
    %v2115 = vadd.f32 %v2082, %v2088
    %v2116 = vadd.f32 %v2083, %v2088
    %v2117 = vadd.f32 %v2084, %v2088
    %v2118 = vadd.f32 %v2085, %v2088
    %v2119 = vadd.f32 %v2086, %v2088
    %v2120 = vadd.f32 %v2087, %v2088
    %v2121 = vmax.f32 %v2089, 0.0
    %v2122 = vmax.f32 %v2090, 0.0
    %v2123 = vmax.f32 %v2091, 0.0
    %v2124 = vmax.f32 %v2092, 0.0
    %v2125 = vmax.f32 %v2093, 0.0
    %v2126 = vmax.f32 %v2094, 0.0
    %v2127 = vmax.f32 %v2095, 0.0
    %v2128 = vmax.f32 %v2096, 0.0
    %v2129 = vmax.f32 %v2097, 0.0
    %v2130 = vmax.f32 %v2098, 0.0
    %v2131 = vmax.f32 %v2099, 0.0
    %v2132 = vmax.f32 %v2100, 0.0
    %v2133 = vmax.f32 %v2101, 0.0
    %v2134 = vmax.f32 %v2102, 0.0
    %v2135 = vmax.f32 %v2103, 0.0
    %v2136 = vmax.f32 %v2104, 0.0
    %v2137 = vmax.f32 %v2105, 0.0
    %v2138 = vmax.f32 %v2106, 0.0
    %v2139 = vmax.f32 %v2107, 0.0
    %v2140 = vmax.f32 %v2108, 0.0
    %v2141 = vmax.f32 %v2109, 0.0
    %v2142 = vmax.f32 %v2110, 0.0
    %v2143 = vmax.f32 %v2111, 0.0
    %v2144 = vmax.f32 %v2112, 0.0
    %v2145 = vmax.f32 %v2113, 0.0
    %v2146 = vmax.f32 %v2114, 0.0
    %v2147 = vmax.f32 %v2115, 0.0
    %v2148 = vmax.f32 %v2116, 0.0
    %v2149 = vmax.f32 %v2117, 0.0
    %v2150 = vmax.f32 %v2118, 0.0
    %v2151 = vmax.f32 %v2119, 0.0
    %v2152 = vmax.f32 %v2120, 0.0
    %v2153 = vpack.c.bf16 %v2121, %v2121
    %v2154 = vpack.c.bf16 %v2122, %v2122
    %v2155 = vpack.c.bf16 %v2123, %v2123
    %v2156 = vpack.c.bf16 %v2124, %v2124
    %v2157 = vpack.c.bf16 %v2125, %v2125
    %v2158 = vpack.c.bf16 %v2126, %v2126
    %v2159 = vpack.c.bf16 %v2127, %v2127
    %v2160 = vpack.c.bf16 %v2128, %v2128
    %v2161 = vpack.c.bf16 %v2129, %v2129
    %v2162 = vpack.c.bf16 %v2130, %v2130
    %v2163 = vpack.c.bf16 %v2131, %v2131
    %v2164 = vpack.c.bf16 %v2132, %v2132
    %v2165 = vpack.c.bf16 %v2133, %v2133
    %v2166 = vpack.c.bf16 %v2134, %v2134
    %v2167 = vpack.c.bf16 %v2135, %v2135
    %v2168 = vpack.c.bf16 %v2136, %v2136
    %v2169 = vpack.c.bf16 %v2137, %v2137
    %v2170 = vpack.c.bf16 %v2138, %v2138
    %v2171 = vpack.c.bf16 %v2139, %v2139
    %v2172 = vpack.c.bf16 %v2140, %v2140
    %v2173 = vpack.c.bf16 %v2141, %v2141
    %v2174 = vpack.c.bf16 %v2142, %v2142
    %v2175 = vpack.c.bf16 %v2143, %v2143
    %v2176 = vpack.c.bf16 %v2144, %v2144
    %v2177 = vpack.c.bf16 %v2145, %v2145
    %v2178 = vpack.c.bf16 %v2146, %v2146
    %v2179 = vpack.c.bf16 %v2147, %v2147
    %v2180 = vpack.c.bf16 %v2148, %v2148
    %v2181 = vpack.c.bf16 %v2149, %v2149
    %v2182 = vpack.c.bf16 %v2150, %v2150
    %v2183 = vpack.c.bf16 %v2151, %v2151
    %v2184 = vpack.c.bf16 %v2152, %v2152
    %s2185 = scalar_lea.vmem [#allocation7], 256
    %v2186 = vld [vmem:[%s2185] sm:$0xf]
    %v2187 = vld [vmem:[%s2185 + $0x4] sm:$0xf]
    %v2188 = vld [vmem:[%s2185 + $0x8] sm:$0xf]
    %v2189 = vld [vmem:[%s2185 + $0xc] sm:$0xf]
    %v2190 = vld [vmem:[%s2185 + $0x10] sm:$0xf]
    %v2191 = vld [vmem:[%s2185 + $0x14] sm:$0xf]
    %v2192 = vld [vmem:[%s2185 + $0x18] sm:$0xf]
    %v2193 = vld [vmem:[%s2185 + $0x1c] sm:$0xf]
    %v2194 = vld [vmem:[%s2185 + $0x20] sm:$0xf]
    %v2195 = vld [vmem:[%s2185 + $0x24] sm:$0xf]
    %v2196 = vld [vmem:[%s2185 + $0x28] sm:$0xf]
    %v2197 = vld [vmem:[%s2185 + $0x2c] sm:$0xf]
    %v2198 = vld [vmem:[%s2185 + $0x30] sm:$0xf]
    %v2199 = vld [vmem:[%s2185 + $0x34] sm:$0xf]
    %v2200 = vld [vmem:[%s2185 + $0x38] sm:$0xf]
    %v2201 = vld [vmem:[%s2185 + $0x3c] sm:$0xf]
    %v2202 = vld [vmem:[%s2185 + $0x40] sm:$0xf]
    %v2203 = vld [vmem:[%s2185 + $0x44] sm:$0xf]
    %v2204 = vld [vmem:[%s2185 + $0x48] sm:$0xf]
    %v2205 = vld [vmem:[%s2185 + $0x4c] sm:$0xf]
    %v2206 = vld [vmem:[%s2185 + $0x50] sm:$0xf]
    %v2207 = vld [vmem:[%s2185 + $0x54] sm:$0xf]
    %v2208 = vld [vmem:[%s2185 + $0x58] sm:$0xf]
    %v2209 = vld [vmem:[%s2185 + $0x5c] sm:$0xf]
    %v2210 = vld [vmem:[%s2185 + $0x60] sm:$0xf]
    %v2211 = vld [vmem:[%s2185 + $0x64] sm:$0xf]
    %v2212 = vld [vmem:[%s2185 + $0x68] sm:$0xf]
    %v2213 = vld [vmem:[%s2185 + $0x6c] sm:$0xf]
    %v2214 = vld [vmem:[%s2185 + $0x70] sm:$0xf]
    %v2215 = vld [vmem:[%s2185 + $0x74] sm:$0xf]
    %v2216 = vld [vmem:[%s2185 + $0x78] sm:$0xf]
    %v2217 = vld [vmem:[%s2185 + $0x7c] sm:$0xf]
    %s2218 = scalar_lea.vmem [#allocation8], 8
    %v2219 = vld [vmem:[%s2218] sm:$0xf]
    %v2220 = vunpack.c.l.bf16 %v2153
    %v2221 = vunpack.c.l.bf16 %v2154
    %v2222 = vunpack.c.l.bf16 %v2155
    %v2223 = vunpack.c.l.bf16 %v2156
    %v2224 = vunpack.c.l.bf16 %v2157
    %v2225 = vunpack.c.l.bf16 %v2158
    %v2226 = vunpack.c.l.bf16 %v2159
    %v2227 = vunpack.c.l.bf16 %v2160
    %v2228 = vunpack.c.l.bf16 %v2161
    %v2229 = vunpack.c.l.bf16 %v2162
    %v2230 = vunpack.c.l.bf16 %v2163
    %v2231 = vunpack.c.l.bf16 %v2164
    %v2232 = vunpack.c.l.bf16 %v2165
    %v2233 = vunpack.c.l.bf16 %v2166
    %v2234 = vunpack.c.l.bf16 %v2167
    %v2235 = vunpack.c.l.bf16 %v2168
    %v2236 = vunpack.c.l.bf16 %v2169
    %v2237 = vunpack.c.l.bf16 %v2170
    %v2238 = vunpack.c.l.bf16 %v2171
    %v2239 = vunpack.c.l.bf16 %v2172
    %v2240 = vunpack.c.l.bf16 %v2173
    %v2241 = vunpack.c.l.bf16 %v2174
    %v2242 = vunpack.c.l.bf16 %v2175
    %v2243 = vunpack.c.l.bf16 %v2176
    %v2244 = vunpack.c.l.bf16 %v2177
    %v2245 = vunpack.c.l.bf16 %v2178
    %v2246 = vunpack.c.l.bf16 %v2179
    %v2247 = vunpack.c.l.bf16 %v2180
    %v2248 = vunpack.c.l.bf16 %v2181
    %v2249 = vunpack.c.l.bf16 %v2182
    %v2250 = vunpack.c.l.bf16 %v2183
    %v2251 = vunpack.c.l.bf16 %v2184
    %v2268 = vunpack.c.l.b16 %v2153
    %v2269 = vunpack.c.l.b16 %v2154
    %v2270 = vunpack.c.l.b16 %v2155
    %v2271 = vunpack.c.l.b16 %v2156
    %v2272 = vunpack.c.l.b16 %v2157
    %v2273 = vunpack.c.l.b16 %v2158
    %v2274 = vunpack.c.l.b16 %v2159
    %v2275 = vunpack.c.l.b16 %v2160
    %v2276 = vunpack.c.l.b16 %v2161
    %v2277 = vunpack.c.l.b16 %v2162
    %v2278 = vunpack.c.l.b16 %v2163
    %v2279 = vunpack.c.l.b16 %v2164
    %v2280 = vunpack.c.l.b16 %v2165
    %v2281 = vunpack.c.l.b16 %v2166
    %v2282 = vunpack.c.l.b16 %v2167
    %v2283 = vunpack.c.l.b16 %v2168
    %v2284 = vpack.c.b16 %v2269, %v2268
    %v2285 = vpack.c.b16 %v2271, %v2270
    %v2286 = vpack.c.b16 %v2273, %v2272
    %v2287 = vpack.c.b16 %v2275, %v2274
    %v2288 = vpack.c.b16 %v2277, %v2276
    %v2289 = vpack.c.b16 %v2279, %v2278
    %v2290 = vpack.c.b16 %v2281, %v2280
    %v2291 = vpack.c.b16 %v2283, %v2282
    %2300 = vmatpush.bf16.msra.mxu0 %v2291
    %2301 = vmatpush.bf16.msra.mxu0 %v2290
    %2302 = vmatpush.bf16.msra.mxu0 %v2289
    %2303 = vmatpush.bf16.msra.mxu0 %v2288
    %2304 = vmatpush.bf16.msra.mxu0 %v2287
    %2305 = vmatpush.bf16.msra.mxu0 %v2286
    %2306 = vmatpush.bf16.msra.mxu0 %v2285
    %2307 = vmatpush.bf16.msra.mxu0 %v2284
    %2308 = vmatmul.bf16.gmra.mxu0 %v406
    %v2309 = vpop.f32.mrf.mxu0
    %v2310 = vadd.f32 %v2220, %v2309
    %v2311 = vpop.f32.mrf.mxu0
    %v2312 = vadd.f32 %v2221, %v2311
    %2313 = vmatmul.bf16.gmra.mxu0 %v407
    %v2314 = vpop.f32.mrf.mxu0
    %v2315 = vadd.f32 %v2222, %v2314
    %v2316 = vpop.f32.mrf.mxu0
    %v2317 = vadd.f32 %v2223, %v2316
    %2318 = vmatmul.bf16.gmra.mxu0 %v408
    %v2319 = vpop.f32.mrf.mxu0
    %v2320 = vadd.f32 %v2224, %v2319
    %v2321 = vpop.f32.mrf.mxu0
    %v2322 = vadd.f32 %v2225, %v2321
    %2323 = vmatmul.bf16.gmra.mxu0 %v409
    %v2324 = vpop.f32.mrf.mxu0
    %v2325 = vadd.f32 %v2226, %v2324
    %v2326 = vpop.f32.mrf.mxu0
    %v2327 = vadd.f32 %v2227, %v2326
    %2328 = vmatmul.bf16.gmra.mxu0 %v410
    %v2329 = vpop.f32.mrf.mxu0
    %v2330 = vadd.f32 %v2228, %v2329
    %v2331 = vpop.f32.mrf.mxu0
    %v2332 = vadd.f32 %v2229, %v2331
    %2333 = vmatmul.bf16.gmra.mxu0 %v411
    %v2334 = vpop.f32.mrf.mxu0
    %v2335 = vadd.f32 %v2230, %v2334
    %v2336 = vpop.f32.mrf.mxu0
    %v2337 = vadd.f32 %v2231, %v2336
    %2338 = vmatmul.bf16.gmra.mxu0 %v412
    %v2339 = vpop.f32.mrf.mxu0
    %v2340 = vadd.f32 %v2232, %v2339
    %v2341 = vpop.f32.mrf.mxu0
    %v2342 = vadd.f32 %v2233, %v2341
    %2343 = vmatmul.bf16.gmra.mxu0 %v413
    %v2344 = vpop.f32.mrf.mxu0
    %v2345 = vadd.f32 %v2234, %v2344
    %v2346 = vpop.f32.mrf.mxu0
    %v2347 = vadd.f32 %v2235, %v2346
    %2348 = vdwg.mxu0
    %v2365 = vunpack.c.l.b16 %v2169
    %v2366 = vunpack.c.l.b16 %v2170
    %v2367 = vunpack.c.l.b16 %v2171
    %v2368 = vunpack.c.l.b16 %v2172
    %v2369 = vunpack.c.l.b16 %v2173
    %v2370 = vunpack.c.l.b16 %v2174
    %v2371 = vunpack.c.l.b16 %v2175
    %v2372 = vunpack.c.l.b16 %v2176
    %v2373 = vunpack.c.l.b16 %v2177
    %v2374 = vunpack.c.l.b16 %v2178
    %v2375 = vunpack.c.l.b16 %v2179
    %v2376 = vunpack.c.l.b16 %v2180
    %v2377 = vunpack.c.l.b16 %v2181
    %v2378 = vunpack.c.l.b16 %v2182
    %v2379 = vunpack.c.l.b16 %v2183
    %v2380 = vunpack.c.l.b16 %v2184
    %v2381 = vpack.c.b16 %v2366, %v2365
    %v2382 = vpack.c.b16 %v2368, %v2367
    %v2383 = vpack.c.b16 %v2370, %v2369
    %v2384 = vpack.c.b16 %v2372, %v2371
    %v2385 = vpack.c.b16 %v2374, %v2373
    %v2386 = vpack.c.b16 %v2376, %v2375
    %v2387 = vpack.c.b16 %v2378, %v2377
    %v2388 = vpack.c.b16 %v2380, %v2379
    %2397 = vmatpush.bf16.msra.mxu0 %v2388
    %2398 = vmatpush.bf16.msra.mxu0 %v2387
    %2399 = vmatpush.bf16.msra.mxu0 %v2386
    %2400 = vmatpush.bf16.msra.mxu0 %v2385
    %2401 = vmatpush.bf16.msra.mxu0 %v2384
    %2402 = vmatpush.bf16.msra.mxu0 %v2383
    %2403 = vmatpush.bf16.msra.mxu0 %v2382
    %2404 = vmatpush.bf16.msra.mxu0 %v2381
    %2405 = vmatmul.bf16.gmra.mxu0 %v551
    %v2406 = vpop.f32.mrf.mxu0
    %v2407 = vadd.f32 %v2236, %v2406
    %v2408 = vpop.f32.mrf.mxu0
    %v2409 = vadd.f32 %v2237, %v2408
    %2410 = vmatmul.bf16.gmra.mxu0 %v552
    %v2411 = vpop.f32.mrf.mxu0
    %v2412 = vadd.f32 %v2238, %v2411
    %v2413 = vpop.f32.mrf.mxu0
    %v2414 = vadd.f32 %v2239, %v2413
    %2415 = vmatmul.bf16.gmra.mxu0 %v553
    %v2416 = vpop.f32.mrf.mxu0
    %v2417 = vadd.f32 %v2240, %v2416
    %v2418 = vpop.f32.mrf.mxu0
    %v2419 = vadd.f32 %v2241, %v2418
    %2420 = vmatmul.bf16.gmra.mxu0 %v554
    %v2421 = vpop.f32.mrf.mxu0
    %v2422 = vadd.f32 %v2242, %v2421
    %v2423 = vpop.f32.mrf.mxu0
    %v2424 = vadd.f32 %v2243, %v2423
    %2425 = vmatmul.bf16.gmra.mxu0 %v555
    %v2426 = vpop.f32.mrf.mxu0
    %v2427 = vadd.f32 %v2244, %v2426
    %v2428 = vpop.f32.mrf.mxu0
    %v2429 = vadd.f32 %v2245, %v2428
    %2430 = vmatmul.bf16.gmra.mxu0 %v556
    %v2431 = vpop.f32.mrf.mxu0
    %v2432 = vadd.f32 %v2246, %v2431
    %v2433 = vpop.f32.mrf.mxu0
    %v2434 = vadd.f32 %v2247, %v2433
    %2435 = vmatmul.bf16.gmra.mxu0 %v557
    %v2436 = vpop.f32.mrf.mxu0
    %v2437 = vadd.f32 %v2248, %v2436
    %v2438 = vpop.f32.mrf.mxu0
    %v2439 = vadd.f32 %v2249, %v2438
    %2440 = vmatmul.bf16.gmra.mxu0 %v558
    %v2441 = vpop.f32.mrf.mxu0
    %v2442 = vadd.f32 %v2250, %v2441
    %v2443 = vpop.f32.mrf.mxu0
    %v2444 = vadd.f32 %v2251, %v2443
    %2445 = vdwg.mxu0
    %v2446 = vpack.c.bf16 %v2312, %v2310
    %v2447 = vpack.c.bf16 %v2317, %v2315
    %v2448 = vpack.c.bf16 %v2322, %v2320
    %v2449 = vpack.c.bf16 %v2327, %v2325
    %v2450 = vpack.c.bf16 %v2332, %v2330
    %v2451 = vpack.c.bf16 %v2337, %v2335
    %v2452 = vpack.c.bf16 %v2342, %v2340
    %v2453 = vpack.c.bf16 %v2347, %v2345
    %v2454 = vpack.c.bf16 %v2409, %v2407
    %v2455 = vpack.c.bf16 %v2414, %v2412
    %v2456 = vpack.c.bf16 %v2419, %v2417
    %v2457 = vpack.c.bf16 %v2424, %v2422
    %v2458 = vpack.c.bf16 %v2429, %v2427
    %v2459 = vpack.c.bf16 %v2434, %v2432
    %v2460 = vpack.c.bf16 %v2439, %v2437
    %v2461 = vpack.c.bf16 %v2444, %v2442
    %v2462 = vperm.slane %v2219, 0
    %v2479 = vunpack.c.l.b16 %v2186
    %v2480 = vunpack.c.l.b16 %v2187
    %v2481 = vunpack.c.l.b16 %v2188
    %v2482 = vunpack.c.l.b16 %v2189
    %v2483 = vunpack.c.l.b16 %v2190
    %v2484 = vunpack.c.l.b16 %v2191
    %v2485 = vunpack.c.l.b16 %v2192
    %v2486 = vunpack.c.l.b16 %v2193
    %v2487 = vunpack.c.l.b16 %v2194
    %v2488 = vunpack.c.l.b16 %v2195
    %v2489 = vunpack.c.l.b16 %v2196
    %v2490 = vunpack.c.l.b16 %v2197
    %v2491 = vunpack.c.l.b16 %v2198
    %v2492 = vunpack.c.l.b16 %v2199
    %v2493 = vunpack.c.l.b16 %v2200
    %v2494 = vunpack.c.l.b16 %v2201
    %v2495 = vpack.c.b16 %v2480, %v2479
    %v2496 = vpack.c.b16 %v2482, %v2481
    %v2497 = vpack.c.b16 %v2484, %v2483
    %v2498 = vpack.c.b16 %v2486, %v2485
    %v2499 = vpack.c.b16 %v2488, %v2487
    %v2500 = vpack.c.b16 %v2490, %v2489
    %v2501 = vpack.c.b16 %v2492, %v2491
    %v2502 = vpack.c.b16 %v2494, %v2493
    %2511 = vmatpush.bf16.msra.mxu0 %v2502
    %2512 = vmatpush.bf16.msra.mxu0 %v2501
    %2513 = vmatpush.bf16.msra.mxu0 %v2500
    %2514 = vmatpush.bf16.msra.mxu0 %v2499
    %2515 = vmatpush.bf16.msra.mxu0 %v2498
    %2516 = vmatpush.bf16.msra.mxu0 %v2497
    %2517 = vmatpush.bf16.msra.mxu0 %v2496
    %2518 = vmatpush.bf16.msra.mxu0 %v2495
    %2519 = vmatmul.bf16.gmra.mxu0 %v2446
    %v2520 = vpop.f32.mrf.mxu0
    %v2521 = vadd.f32 %v2462, %v2520
    %v2522 = vpop.f32.mrf.mxu0
    %v2523 = vadd.f32 %v2462, %v2522
    %2524 = vmatmul.bf16.gmra.mxu0 %v2447
    %v2525 = vpop.f32.mrf.mxu0
    %v2526 = vadd.f32 %v2462, %v2525
    %v2527 = vpop.f32.mrf.mxu0
    %v2528 = vadd.f32 %v2462, %v2527
    %2529 = vmatmul.bf16.gmra.mxu0 %v2448
    %v2530 = vpop.f32.mrf.mxu0
    %v2531 = vadd.f32 %v2462, %v2530
    %v2532 = vpop.f32.mrf.mxu0
    %v2533 = vadd.f32 %v2462, %v2532
    %2534 = vmatmul.bf16.gmra.mxu0 %v2449
    %v2535 = vpop.f32.mrf.mxu0
    %v2536 = vadd.f32 %v2462, %v2535
    %v2537 = vpop.f32.mrf.mxu0
    %v2538 = vadd.f32 %v2462, %v2537
    %2539 = vmatmul.bf16.gmra.mxu0 %v2450
    %v2540 = vpop.f32.mrf.mxu0
    %v2541 = vadd.f32 %v2462, %v2540
    %v2542 = vpop.f32.mrf.mxu0
    %v2543 = vadd.f32 %v2462, %v2542
    %2544 = vmatmul.bf16.gmra.mxu0 %v2451
    %v2545 = vpop.f32.mrf.mxu0
    %v2546 = vadd.f32 %v2462, %v2545
    %v2547 = vpop.f32.mrf.mxu0
    %v2548 = vadd.f32 %v2462, %v2547
    %2549 = vmatmul.bf16.gmra.mxu0 %v2452
    %v2550 = vpop.f32.mrf.mxu0
    %v2551 = vadd.f32 %v2462, %v2550
    %v2552 = vpop.f32.mrf.mxu0
    %v2553 = vadd.f32 %v2462, %v2552
    %2554 = vmatmul.bf16.gmra.mxu0 %v2453
    %v2555 = vpop.f32.mrf.mxu0
    %v2556 = vadd.f32 %v2462, %v2555
    %v2557 = vpop.f32.mrf.mxu0
    %v2558 = vadd.f32 %v2462, %v2557
    %2559 = vmatmul.bf16.gmra.mxu0 %v2454
    %v2560 = vpop.f32.mrf.mxu0
    %v2561 = vadd.f32 %v2462, %v2560
    %v2562 = vpop.f32.mrf.mxu0
    %v2563 = vadd.f32 %v2462, %v2562
    %2564 = vmatmul.bf16.gmra.mxu0 %v2455
    %v2565 = vpop.f32.mrf.mxu0
    %v2566 = vadd.f32 %v2462, %v2565
    %v2567 = vpop.f32.mrf.mxu0
    %v2568 = vadd.f32 %v2462, %v2567
    %2569 = vmatmul.bf16.gmra.mxu0 %v2456
    %v2570 = vpop.f32.mrf.mxu0
    %v2571 = vadd.f32 %v2462, %v2570
    %v2572 = vpop.f32.mrf.mxu0
    %v2573 = vadd.f32 %v2462, %v2572
    %2574 = vmatmul.bf16.gmra.mxu0 %v2457
    %v2575 = vpop.f32.mrf.mxu0
    %v2576 = vadd.f32 %v2462, %v2575
    %v2577 = vpop.f32.mrf.mxu0
    %v2578 = vadd.f32 %v2462, %v2577
    %2579 = vmatmul.bf16.gmra.mxu0 %v2458
    %v2580 = vpop.f32.mrf.mxu0
    %v2581 = vadd.f32 %v2462, %v2580
    %v2582 = vpop.f32.mrf.mxu0
    %v2583 = vadd.f32 %v2462, %v2582
    %2584 = vmatmul.bf16.gmra.mxu0 %v2459
    %v2585 = vpop.f32.mrf.mxu0
    %v2586 = vadd.f32 %v2462, %v2585
    %v2587 = vpop.f32.mrf.mxu0
    %v2588 = vadd.f32 %v2462, %v2587
    %2589 = vmatmul.bf16.gmra.mxu0 %v2460
    %v2590 = vpop.f32.mrf.mxu0
    %v2591 = vadd.f32 %v2462, %v2590
    %v2592 = vpop.f32.mrf.mxu0
    %v2593 = vadd.f32 %v2462, %v2592
    %2594 = vmatmul.bf16.gmra.mxu0 %v2461
    %v2595 = vpop.f32.mrf.mxu0
    %v2596 = vadd.f32 %v2462, %v2595
    %v2597 = vpop.f32.mrf.mxu0
    %v2598 = vadd.f32 %v2462, %v2597
    %2599 = vdwg.mxu0
    %v2600 = vmax.f32 %v2521, 0.0
    %v2601 = vmax.f32 %v2523, 0.0
    %v2602 = vmax.f32 %v2526, 0.0
    %v2603 = vmax.f32 %v2528, 0.0
    %v2604 = vmax.f32 %v2531, 0.0
    %v2605 = vmax.f32 %v2533, 0.0
    %v2606 = vmax.f32 %v2536, 0.0
    %v2607 = vmax.f32 %v2538, 0.0
    %v2608 = vmax.f32 %v2541, 0.0
    %v2609 = vmax.f32 %v2543, 0.0
    %v2610 = vmax.f32 %v2546, 0.0
    %v2611 = vmax.f32 %v2548, 0.0
    %v2612 = vmax.f32 %v2551, 0.0
    %v2613 = vmax.f32 %v2553, 0.0
    %v2614 = vmax.f32 %v2556, 0.0
    %v2615 = vmax.f32 %v2558, 0.0
    %v2616 = vmax.f32 %v2561, 0.0
    %v2617 = vmax.f32 %v2563, 0.0
    %v2618 = vmax.f32 %v2566, 0.0
    %v2619 = vmax.f32 %v2568, 0.0
    %v2620 = vmax.f32 %v2571, 0.0
    %v2621 = vmax.f32 %v2573, 0.0
    %v2622 = vmax.f32 %v2576, 0.0
    %v2623 = vmax.f32 %v2578, 0.0
    %v2624 = vmax.f32 %v2581, 0.0
    %v2625 = vmax.f32 %v2583, 0.0
    %v2626 = vmax.f32 %v2586, 0.0
    %v2627 = vmax.f32 %v2588, 0.0
    %v2628 = vmax.f32 %v2591, 0.0
    %v2629 = vmax.f32 %v2593, 0.0
    %v2630 = vmax.f32 %v2596, 0.0
    %v2631 = vmax.f32 %v2598, 0.0
    %v2632 = vpack.c.bf16 %v2601, %v2600
    %v2633 = vpack.c.bf16 %v2603, %v2602
    %v2634 = vpack.c.bf16 %v2605, %v2604
    %v2635 = vpack.c.bf16 %v2607, %v2606
    %v2636 = vpack.c.bf16 %v2609, %v2608
    %v2637 = vpack.c.bf16 %v2611, %v2610
    %v2638 = vpack.c.bf16 %v2613, %v2612
    %v2639 = vpack.c.bf16 %v2615, %v2614
    %v2640 = vpack.c.bf16 %v2617, %v2616
    %v2641 = vpack.c.bf16 %v2619, %v2618
    %v2642 = vpack.c.bf16 %v2621, %v2620
    %v2643 = vpack.c.bf16 %v2623, %v2622
    %v2644 = vpack.c.bf16 %v2625, %v2624
    %v2645 = vpack.c.bf16 %v2627, %v2626
    %v2646 = vpack.c.bf16 %v2629, %v2628
    %v2647 = vpack.c.bf16 %v2631, %v2630
    %v2648 = vperm.slane %v2219, 1
    %v2665 = vunpack.c.l.b16 %v2202
    %v2666 = vunpack.c.l.b16 %v2203
    %v2667 = vunpack.c.l.b16 %v2204
    %v2668 = vunpack.c.l.b16 %v2205
    %v2669 = vunpack.c.l.b16 %v2206
    %v2670 = vunpack.c.l.b16 %v2207
    %v2671 = vunpack.c.l.b16 %v2208
    %v2672 = vunpack.c.l.b16 %v2209
    %v2673 = vunpack.c.l.b16 %v2210
    %v2674 = vunpack.c.l.b16 %v2211
    %v2675 = vunpack.c.l.b16 %v2212
    %v2676 = vunpack.c.l.b16 %v2213
    %v2677 = vunpack.c.l.b16 %v2214
    %v2678 = vunpack.c.l.b16 %v2215
    %v2679 = vunpack.c.l.b16 %v2216
    %v2680 = vunpack.c.l.b16 %v2217
    %v2681 = vpack.c.b16 %v2666, %v2665
    %v2682 = vpack.c.b16 %v2668, %v2667
    %v2683 = vpack.c.b16 %v2670, %v2669
    %v2684 = vpack.c.b16 %v2672, %v2671
    %v2685 = vpack.c.b16 %v2674, %v2673
    %v2686 = vpack.c.b16 %v2676, %v2675
    %v2687 = vpack.c.b16 %v2678, %v2677
    %v2688 = vpack.c.b16 %v2680, %v2679
    %2697 = vmatpush.bf16.msra.mxu0 %v2688
    %2698 = vmatpush.bf16.msra.mxu0 %v2687
    %2699 = vmatpush.bf16.msra.mxu0 %v2686
    %2700 = vmatpush.bf16.msra.mxu0 %v2685
    %2701 = vmatpush.bf16.msra.mxu0 %v2684
    %2702 = vmatpush.bf16.msra.mxu0 %v2683
    %2703 = vmatpush.bf16.msra.mxu0 %v2682
    %2704 = vmatpush.bf16.msra.mxu0 %v2681
    %2705 = vmatmul.bf16.gmra.mxu0 %v2632
    %v2706 = vpop.f32.mrf.mxu0
    %v2707 = vadd.f32 %v2648, %v2706
    %v2708 = vpop.f32.mrf.mxu0
    %v2709 = vadd.f32 %v2648, %v2708
    %2710 = vmatmul.bf16.gmra.mxu0 %v2633
    %v2711 = vpop.f32.mrf.mxu0
    %v2712 = vadd.f32 %v2648, %v2711
    %v2713 = vpop.f32.mrf.mxu0
    %v2714 = vadd.f32 %v2648, %v2713
    %2715 = vmatmul.bf16.gmra.mxu0 %v2634
    %v2716 = vpop.f32.mrf.mxu0
    %v2717 = vadd.f32 %v2648, %v2716
    %v2718 = vpop.f32.mrf.mxu0
    %v2719 = vadd.f32 %v2648, %v2718
    %2720 = vmatmul.bf16.gmra.mxu0 %v2635
    %v2721 = vpop.f32.mrf.mxu0
    %v2722 = vadd.f32 %v2648, %v2721
    %v2723 = vpop.f32.mrf.mxu0
    %v2724 = vadd.f32 %v2648, %v2723
    %2725 = vmatmul.bf16.gmra.mxu0 %v2636
    %v2726 = vpop.f32.mrf.mxu0
    %v2727 = vadd.f32 %v2648, %v2726
    %v2728 = vpop.f32.mrf.mxu0
    %v2729 = vadd.f32 %v2648, %v2728
    %2730 = vmatmul.bf16.gmra.mxu0 %v2637
    %v2731 = vpop.f32.mrf.mxu0
    %v2732 = vadd.f32 %v2648, %v2731
    %v2733 = vpop.f32.mrf.mxu0
    %v2734 = vadd.f32 %v2648, %v2733
    %2735 = vmatmul.bf16.gmra.mxu0 %v2638
    %v2736 = vpop.f32.mrf.mxu0
    %v2737 = vadd.f32 %v2648, %v2736
    %v2738 = vpop.f32.mrf.mxu0
    %v2739 = vadd.f32 %v2648, %v2738
    %2740 = vmatmul.bf16.gmra.mxu0 %v2639
    %v2741 = vpop.f32.mrf.mxu0
    %v2742 = vadd.f32 %v2648, %v2741
    %v2743 = vpop.f32.mrf.mxu0
    %v2744 = vadd.f32 %v2648, %v2743
    %2745 = vmatmul.bf16.gmra.mxu0 %v2640
    %v2746 = vpop.f32.mrf.mxu0
    %v2747 = vadd.f32 %v2648, %v2746
    %v2748 = vpop.f32.mrf.mxu0
    %v2749 = vadd.f32 %v2648, %v2748
    %2750 = vmatmul.bf16.gmra.mxu0 %v2641
    %v2751 = vpop.f32.mrf.mxu0
    %v2752 = vadd.f32 %v2648, %v2751
    %v2753 = vpop.f32.mrf.mxu0
    %v2754 = vadd.f32 %v2648, %v2753
    %2755 = vmatmul.bf16.gmra.mxu0 %v2642
    %v2756 = vpop.f32.mrf.mxu0
    %v2757 = vadd.f32 %v2648, %v2756
    %v2758 = vpop.f32.mrf.mxu0
    %v2759 = vadd.f32 %v2648, %v2758
    %2760 = vmatmul.bf16.gmra.mxu0 %v2643
    %v2761 = vpop.f32.mrf.mxu0
    %v2762 = vadd.f32 %v2648, %v2761
    %v2763 = vpop.f32.mrf.mxu0
    %v2764 = vadd.f32 %v2648, %v2763
    %2765 = vmatmul.bf16.gmra.mxu0 %v2644
    %v2766 = vpop.f32.mrf.mxu0
    %v2767 = vadd.f32 %v2648, %v2766
    %v2768 = vpop.f32.mrf.mxu0
    %v2769 = vadd.f32 %v2648, %v2768
    %2770 = vmatmul.bf16.gmra.mxu0 %v2645
    %v2771 = vpop.f32.mrf.mxu0
    %v2772 = vadd.f32 %v2648, %v2771
    %v2773 = vpop.f32.mrf.mxu0
    %v2774 = vadd.f32 %v2648, %v2773
    %2775 = vmatmul.bf16.gmra.mxu0 %v2646
    %v2776 = vpop.f32.mrf.mxu0
    %v2777 = vadd.f32 %v2648, %v2776
    %v2778 = vpop.f32.mrf.mxu0
    %v2779 = vadd.f32 %v2648, %v2778
    %2780 = vmatmul.bf16.gmra.mxu0 %v2647
    %v2781 = vpop.f32.mrf.mxu0
    %v2782 = vadd.f32 %v2648, %v2781
    %v2783 = vpop.f32.mrf.mxu0
    %v2784 = vadd.f32 %v2648, %v2783
    %2785 = vdwg.mxu0
    %v2786 = vmul.f32 %v2707, %v245
    %v2787 = vmul.f32 %v2709, %v246
    %v2788 = vmul.f32 %v2712, %v247
    %v2789 = vmul.f32 %v2714, %v248
    %v2790 = vmul.f32 %v2717, %v249
    %v2791 = vmul.f32 %v2719, %v250
    %v2792 = vmul.f32 %v2722, %v251
    %v2793 = vmul.f32 %v2724, %v252
    %v2794 = vmul.f32 %v2727, %v253
    %v2795 = vmul.f32 %v2729, %v254
    %v2796 = vmul.f32 %v2732, %v255
    %v2797 = vmul.f32 %v2734, %v256
    %v2798 = vmul.f32 %v2737, %v257
    %v2799 = vmul.f32 %v2739, %v258
    %v2800 = vmul.f32 %v2742, %v259
    %v2801 = vmul.f32 %v2744, %v260
    %v2802 = vmul.f32 %v2747, %v261
    %v2803 = vmul.f32 %v2749, %v262
    %v2804 = vmul.f32 %v2752, %v263
    %v2805 = vmul.f32 %v2754, %v264
    %v2806 = vmul.f32 %v2757, %v265
    %v2807 = vmul.f32 %v2759, %v266
    %v2808 = vmul.f32 %v2762, %v267
    %v2809 = vmul.f32 %v2764, %v268
    %v2810 = vmul.f32 %v2767, %v269
    %v2811 = vmul.f32 %v2769, %v270
    %v2812 = vmul.f32 %v2772, %v271
    %v2813 = vmul.f32 %v2774, %v272
    %v2814 = vmul.f32 %v2777, %v273
    %v2815 = vmul.f32 %v2779, %v274
    %v2816 = vmul.f32 %v2782, %v275
    %v2817 = vmul.f32 %v2784, %v276
    %v2818 = vadd.f32 %v2786, %v2787
    %v2819 = vadd.f32 %v2818, %v2788
    %v2820 = vadd.f32 %v2819, %v2789
    %v2821 = vadd.f32 %v2820, %v2790
    %v2822 = vadd.f32 %v2821, %v2791
    %v2823 = vadd.f32 %v2822, %v2792
    %v2824 = vadd.f32 %v2823, %v2793
    %v2825 = vadd.f32 %v2824, %v2794
    %v2826 = vadd.f32 %v2825, %v2795
    %v2827 = vadd.f32 %v2826, %v2796
    %v2828 = vadd.f32 %v2827, %v2797
    %v2829 = vadd.f32 %v2828, %v2798
    %v2830 = vadd.f32 %v2829, %v2799
    %v2831 = vadd.f32 %v2830, %v2800
    %v2832 = vadd.f32 %v2831, %v2801
    %v2833 = vadd.f32 %v2832, %v2802
    %v2834 = vadd.f32 %v2833, %v2803
    %v2835 = vadd.f32 %v2834, %v2804
    %v2836 = vadd.f32 %v2835, %v2805
    %v2837 = vadd.f32 %v2836, %v2806
    %v2838 = vadd.f32 %v2837, %v2807
    %v2839 = vadd.f32 %v2838, %v2808
    %v2840 = vadd.f32 %v2839, %v2809
    %v2841 = vadd.f32 %v2840, %v2810
    %v2842 = vadd.f32 %v2841, %v2811
    %v2843 = vadd.f32 %v2842, %v2812
    %v2844 = vadd.f32 %v2843, %v2813
    %v2845 = vadd.f32 %v2844, %v2814
    %v2846 = vadd.f32 %v2845, %v2815
    %v2847 = vadd.f32 %v2846, %v2816
    %v2848 = vadd.f32 %v2847, %v2817
    %v2849 = vrot.slane %v2848, 4
    %v2850 = vadd.f32 %v2848, %v2849
    %v2851 = vrot.slane %v2850, 2
    %v2852 = vadd.f32 %v2850, %v2851
    %v2853 = vrot.slane %v2852, 1
    %v2854 = vadd.f32 %v2852, %v2853
    %v2855 = vmul.f32 %v2786, %v2786
    %v2856 = vmul.f32 %v2787, %v2787
    %v2857 = vmul.f32 %v2788, %v2788
    %v2858 = vmul.f32 %v2789, %v2789
    %v2859 = vmul.f32 %v2790, %v2790
    %v2860 = vmul.f32 %v2791, %v2791
    %v2861 = vmul.f32 %v2792, %v2792
    %v2862 = vmul.f32 %v2793, %v2793
    %v2863 = vmul.f32 %v2794, %v2794
    %v2864 = vmul.f32 %v2795, %v2795
    %v2865 = vmul.f32 %v2796, %v2796
    %v2866 = vmul.f32 %v2797, %v2797
    %v2867 = vmul.f32 %v2798, %v2798
    %v2868 = vmul.f32 %v2799, %v2799
    %v2869 = vmul.f32 %v2800, %v2800
    %v2870 = vmul.f32 %v2801, %v2801
    %v2871 = vmul.f32 %v2802, %v2802
    %v2872 = vmul.f32 %v2803, %v2803
    %v2873 = vmul.f32 %v2804, %v2804
    %v2874 = vmul.f32 %v2805, %v2805
    %v2875 = vmul.f32 %v2806, %v2806
    %v2876 = vmul.f32 %v2807, %v2807
    %v2877 = vmul.f32 %v2808, %v2808
    %v2878 = vmul.f32 %v2809, %v2809
    %v2879 = vmul.f32 %v2810, %v2810
    %v2880 = vmul.f32 %v2811, %v2811
    %v2881 = vmul.f32 %v2812, %v2812
    %v2882 = vmul.f32 %v2813, %v2813
    %v2883 = vmul.f32 %v2814, %v2814
    %v2884 = vmul.f32 %v2815, %v2815
    %v2885 = vmul.f32 %v2816, %v2816
    %v2886 = vmul.f32 %v2817, %v2817
    %v2887 = vadd.f32 %v2855, %v2856
    %v2888 = vadd.f32 %v2887, %v2857
    %v2889 = vadd.f32 %v2888, %v2858
    %v2890 = vadd.f32 %v2889, %v2859
    %v2891 = vadd.f32 %v2890, %v2860
    %v2892 = vadd.f32 %v2891, %v2861
    %v2893 = vadd.f32 %v2892, %v2862
    %v2894 = vadd.f32 %v2893, %v2863
    %v2895 = vadd.f32 %v2894, %v2864
    %v2896 = vadd.f32 %v2895, %v2865
    %v2897 = vadd.f32 %v2896, %v2866
    %v2898 = vadd.f32 %v2897, %v2867
    %v2899 = vadd.f32 %v2898, %v2868
    %v2900 = vadd.f32 %v2899, %v2869
    %v2901 = vadd.f32 %v2900, %v2870
    %v2902 = vadd.f32 %v2901, %v2871
    %v2903 = vadd.f32 %v2902, %v2872
    %v2904 = vadd.f32 %v2903, %v2873
    %v2905 = vadd.f32 %v2904, %v2874
    %v2906 = vadd.f32 %v2905, %v2875
    %v2907 = vadd.f32 %v2906, %v2876
    %v2908 = vadd.f32 %v2907, %v2877
    %v2909 = vadd.f32 %v2908, %v2878
    %v2910 = vadd.f32 %v2909, %v2879
    %v2911 = vadd.f32 %v2910, %v2880
    %v2912 = vadd.f32 %v2911, %v2881
    %v2913 = vadd.f32 %v2912, %v2882
    %v2914 = vadd.f32 %v2913, %v2883
    %v2915 = vadd.f32 %v2914, %v2884
    %v2916 = vadd.f32 %v2915, %v2885
    %v2917 = vadd.f32 %v2916, %v2886
    %v2918 = vrot.slane %v2917, 4
    %v2919 = vadd.f32 %v2917, %v2918
    %v2920 = vrot.slane %v2919, 2
    %v2921 = vadd.f32 %v2919, %v2920
    %v2922 = vrot.slane %v2921, 1
    %v2923 = vadd.f32 %v2921, %v2922
    %v2924 = vmul.f32 %v2854, 0.004310345
    %v2925 = vmul.f32 %v2923, 0.004310345
    %v2926 = vmul.f32 %v2924, %v2924
    %v2927 = vsub.f32 %v2925, %v2926
    %v2928 = vmax.f32 %v2927, 0.0
    %v2929 = vadd.f32 %v2928, 1e-05
    %v2930 = vrsqrt.pop %v2929
    %v2931 = vmul.f32 %v2930, %v2929
    %v2932 = vmul.f32 %v2931, %v2930
    %v2933 = vmul.f32 0.5, %v2932
    %v2934 = vsub.f32 1.5, %v2933
    %v2935 = vmul.f32 %v2930, %v2934
    %vm2936 = vweird.f32 %v2929
    %vm2937 = vweird.f32 %v2930
    %vm2938 = vmor %vm2936, %vm2937
    %v2939 = vsel %vm2938, %v2930, %v2935
    %v2940 = vmul.f32 %v2939, %v2219
    %v2941 = vmul.f32 %v2924, %v2940
    %v2943 = vrot.slane %v2941, 7
    %v2945 = vsub.f32 %v2219, %v2943
    %v2946 = vperm.slane %v2940, 2
    %v2947 = vmul.f32 %v2786, %v2946
    %v2948 = vmul.f32 %v2787, %v2946
    %v2949 = vmul.f32 %v2788, %v2946
    %v2950 = vmul.f32 %v2789, %v2946
    %v2951 = vmul.f32 %v2790, %v2946
    %v2952 = vmul.f32 %v2791, %v2946
    %v2953 = vmul.f32 %v2792, %v2946
    %v2954 = vmul.f32 %v2793, %v2946
    %v2955 = vmul.f32 %v2794, %v2946
    %v2956 = vmul.f32 %v2795, %v2946
    %v2957 = vmul.f32 %v2796, %v2946
    %v2958 = vmul.f32 %v2797, %v2946
    %v2959 = vmul.f32 %v2798, %v2946
    %v2960 = vmul.f32 %v2799, %v2946
    %v2961 = vmul.f32 %v2800, %v2946
    %v2962 = vmul.f32 %v2801, %v2946
    %v2963 = vmul.f32 %v2802, %v2946
    %v2964 = vmul.f32 %v2803, %v2946
    %v2965 = vmul.f32 %v2804, %v2946
    %v2966 = vmul.f32 %v2805, %v2946
    %v2967 = vmul.f32 %v2806, %v2946
    %v2968 = vmul.f32 %v2807, %v2946
    %v2969 = vmul.f32 %v2808, %v2946
    %v2970 = vmul.f32 %v2809, %v2946
    %v2971 = vmul.f32 %v2810, %v2946
    %v2972 = vmul.f32 %v2811, %v2946
    %v2973 = vmul.f32 %v2812, %v2946
    %v2974 = vmul.f32 %v2813, %v2946
    %v2975 = vmul.f32 %v2814, %v2946
    %v2976 = vmul.f32 %v2815, %v2946
    %v2977 = vmul.f32 %v2816, %v2946
    %v2978 = vmul.f32 %v2817, %v2946
    %v2979 = vperm.slane %v2945, 3
    %v2980 = vadd.f32 %v2947, %v2979
    %v2981 = vadd.f32 %v2948, %v2979
    %v2982 = vadd.f32 %v2949, %v2979
    %v2983 = vadd.f32 %v2950, %v2979
    %v2984 = vadd.f32 %v2951, %v2979
    %v2985 = vadd.f32 %v2952, %v2979
    %v2986 = vadd.f32 %v2953, %v2979
    %v2987 = vadd.f32 %v2954, %v2979
    %v2988 = vadd.f32 %v2955, %v2979
    %v2989 = vadd.f32 %v2956, %v2979
    %v2990 = vadd.f32 %v2957, %v2979
    %v2991 = vadd.f32 %v2958, %v2979
    %v2992 = vadd.f32 %v2959, %v2979
    %v2993 = vadd.f32 %v2960, %v2979
    %v2994 = vadd.f32 %v2961, %v2979
    %v2995 = vadd.f32 %v2962, %v2979
    %v2996 = vadd.f32 %v2963, %v2979
    %v2997 = vadd.f32 %v2964, %v2979
    %v2998 = vadd.f32 %v2965, %v2979
    %v2999 = vadd.f32 %v2966, %v2979
    %v3000 = vadd.f32 %v2967, %v2979
    %v3001 = vadd.f32 %v2968, %v2979
    %v3002 = vadd.f32 %v2969, %v2979
    %v3003 = vadd.f32 %v2970, %v2979
    %v3004 = vadd.f32 %v2971, %v2979
    %v3005 = vadd.f32 %v2972, %v2979
    %v3006 = vadd.f32 %v2973, %v2979
    %v3007 = vadd.f32 %v2974, %v2979
    %v3008 = vadd.f32 %v2975, %v2979
    %v3009 = vadd.f32 %v2976, %v2979
    %v3010 = vadd.f32 %v2977, %v2979
    %v3011 = vadd.f32 %v2978, %v2979
    %v3012 = vpack.c.bf16 %v2980, %v2980
    %v3013 = vpack.c.bf16 %v2981, %v2981
    %v3014 = vpack.c.bf16 %v2982, %v2982
    %v3015 = vpack.c.bf16 %v2983, %v2983
    %v3016 = vpack.c.bf16 %v2984, %v2984
    %v3017 = vpack.c.bf16 %v2985, %v2985
    %v3018 = vpack.c.bf16 %v2986, %v2986
    %v3019 = vpack.c.bf16 %v2987, %v2987
    %v3020 = vpack.c.bf16 %v2988, %v2988
    %v3021 = vpack.c.bf16 %v2989, %v2989
    %v3022 = vpack.c.bf16 %v2990, %v2990
    %v3023 = vpack.c.bf16 %v2991, %v2991
    %v3024 = vpack.c.bf16 %v2992, %v2992
    %v3025 = vpack.c.bf16 %v2993, %v2993
    %v3026 = vpack.c.bf16 %v2994, %v2994
    %v3027 = vpack.c.bf16 %v2995, %v2995
    %v3028 = vpack.c.bf16 %v2996, %v2996
    %v3029 = vpack.c.bf16 %v2997, %v2997
    %v3030 = vpack.c.bf16 %v2998, %v2998
    %v3031 = vpack.c.bf16 %v2999, %v2999
    %v3032 = vpack.c.bf16 %v3000, %v3000
    %v3033 = vpack.c.bf16 %v3001, %v3001
    %v3034 = vpack.c.bf16 %v3002, %v3002
    %v3035 = vpack.c.bf16 %v3003, %v3003
    %v3036 = vpack.c.bf16 %v3004, %v3004
    %v3037 = vpack.c.bf16 %v3005, %v3005
    %v3038 = vpack.c.bf16 %v3006, %v3006
    %v3039 = vpack.c.bf16 %v3007, %v3007
    %v3040 = vpack.c.bf16 %v3008, %v3008
    %v3041 = vpack.c.bf16 %v3009, %v3009
    %v3042 = vpack.c.bf16 %v3010, %v3010
    %v3043 = vpack.c.bf16 %v3011, %v3011
    %v3044 = vunpack.c.l.bf16 %v3012
    %v3045 = vunpack.c.l.bf16 %v3013
    %v3046 = vunpack.c.l.bf16 %v3014
    %v3047 = vunpack.c.l.bf16 %v3015
    %v3048 = vunpack.c.l.bf16 %v3016
    %v3049 = vunpack.c.l.bf16 %v3017
    %v3050 = vunpack.c.l.bf16 %v3018
    %v3051 = vunpack.c.l.bf16 %v3019
    %v3052 = vunpack.c.l.bf16 %v3020
    %v3053 = vunpack.c.l.bf16 %v3021
    %v3054 = vunpack.c.l.bf16 %v3022
    %v3055 = vunpack.c.l.bf16 %v3023
    %v3056 = vunpack.c.l.bf16 %v3024
    %v3057 = vunpack.c.l.bf16 %v3025
    %v3058 = vunpack.c.l.bf16 %v3026
    %v3059 = vunpack.c.l.bf16 %v3027
    %v3060 = vunpack.c.l.bf16 %v3028
    %v3061 = vunpack.c.l.bf16 %v3029
    %v3062 = vunpack.c.l.bf16 %v3030
    %v3063 = vunpack.c.l.bf16 %v3031
    %v3064 = vunpack.c.l.bf16 %v3032
    %v3065 = vunpack.c.l.bf16 %v3033
    %v3066 = vunpack.c.l.bf16 %v3034
    %v3067 = vunpack.c.l.bf16 %v3035
    %v3068 = vunpack.c.l.bf16 %v3036
    %v3069 = vunpack.c.l.bf16 %v3037
    %v3070 = vunpack.c.l.bf16 %v3038
    %v3071 = vunpack.c.l.bf16 %v3039
    %v3072 = vunpack.c.l.bf16 %v3040
    %v3073 = vunpack.c.l.bf16 %v3041
    %v3074 = vunpack.c.l.bf16 %v3042
    %v3075 = vunpack.c.l.bf16 %v3043
    %v3076 = vmul.f32 %v3044, %v245
    %v3077 = vmul.f32 %v3045, %v246
    %v3078 = vmul.f32 %v3046, %v247
    %v3079 = vmul.f32 %v3047, %v248
    %v3080 = vmul.f32 %v3048, %v249
    %v3081 = vmul.f32 %v3049, %v250
    %v3082 = vmul.f32 %v3050, %v251
    %v3083 = vmul.f32 %v3051, %v252
    %v3084 = vmul.f32 %v3052, %v253
    %v3085 = vmul.f32 %v3053, %v254
    %v3086 = vmul.f32 %v3054, %v255
    %v3087 = vmul.f32 %v3055, %v256
    %v3088 = vmul.f32 %v3056, %v257
    %v3089 = vmul.f32 %v3057, %v258
    %v3090 = vmul.f32 %v3058, %v259
    %v3091 = vmul.f32 %v3059, %v260
    %v3092 = vmul.f32 %v3060, %v261
    %v3093 = vmul.f32 %v3061, %v262
    %v3094 = vmul.f32 %v3062, %v263
    %v3095 = vmul.f32 %v3063, %v264
    %v3096 = vmul.f32 %v3064, %v265
    %v3097 = vmul.f32 %v3065, %v266
    %v3098 = vmul.f32 %v3066, %v267
    %v3099 = vmul.f32 %v3067, %v268
    %v3100 = vmul.f32 %v3068, %v269
    %v3101 = vmul.f32 %v3069, %v270
    %v3102 = vmul.f32 %v3070, %v271
    %v3103 = vmul.f32 %v3071, %v272
    %v3104 = vmul.f32 %v3072, %v273
    %v3105 = vmul.f32 %v3073, %v274
    %v3106 = vmul.f32 %v3074, %v275
    %v3107 = vmul.f32 %v3075, %v276
    %v3108 = vadd.f32 %v3076, %v3077
    %v3109 = vadd.f32 %v3108, %v3078
    %v3110 = vadd.f32 %v3109, %v3079
    %v3111 = vadd.f32 %v3110, %v3080
    %v3112 = vadd.f32 %v3111, %v3081
    %v3113 = vadd.f32 %v3112, %v3082
    %v3114 = vadd.f32 %v3113, %v3083
    %v3115 = vadd.f32 %v3114, %v3084
    %v3116 = vadd.f32 %v3115, %v3085
    %v3117 = vadd.f32 %v3116, %v3086
    %v3118 = vadd.f32 %v3117, %v3087
    %v3119 = vadd.f32 %v3118, %v3088
    %v3120 = vadd.f32 %v3119, %v3089
    %v3121 = vadd.f32 %v3120, %v3090
    %v3122 = vadd.f32 %v3121, %v3091
    %v3123 = vrot.slane %v3122, 4
    %v3124 = vadd.f32 %v3122, %v3123
    %v3125 = vrot.slane %v3124, 2
    %v3126 = vadd.f32 %v3124, %v3125
    %v3127 = vrot.slane %v3126, 1
    %v3128 = vadd.f32 %v3126, %v3127
    %v3129 = vadd.f32 %v3092, %v3093
    %v3130 = vadd.f32 %v3129, %v3094
    %v3131 = vadd.f32 %v3130, %v3095
    %v3132 = vadd.f32 %v3131, %v3096
    %v3133 = vadd.f32 %v3132, %v3097
    %v3134 = vadd.f32 %v3133, %v3098
    %v3135 = vadd.f32 %v3134, %v3099
    %v3136 = vadd.f32 %v3135, %v3100
    %v3137 = vadd.f32 %v3136, %v3101
    %v3138 = vadd.f32 %v3137, %v3102
    %v3139 = vadd.f32 %v3138, %v3103
    %v3140 = vadd.f32 %v3139, %v3104
    %v3141 = vadd.f32 %v3140, %v3105
    %v3142 = vadd.f32 %v3141, %v3106
    %v3143 = vadd.f32 %v3142, %v3107
    %v3144 = vrot.slane %v3143, 4
    %v3145 = vadd.f32 %v3143, %v3144
    %v3146 = vrot.slane %v3145, 2
    %v3147 = vadd.f32 %v3145, %v3146
    %v3148 = vrot.slane %v3147, 1
    %v3149 = vadd.f32 %v3147, %v3148
    %vm3152 = vcmask 1041409
    %v3153 = vsel %vm3152, %v3149, %v3128
    %3155 = vst [vmem:[#allocation11] sm:$0x3] %v3153
    %v3156 = vpack.c.bf16 %v3076, %v3076
    %v3157 = vpack.c.bf16 %v3077, %v3077
    %v3158 = vpack.c.bf16 %v3078, %v3078
    %v3159 = vpack.c.bf16 %v3079, %v3079
    %v3160 = vpack.c.bf16 %v3080, %v3080
    %v3161 = vpack.c.bf16 %v3081, %v3081
    %v3162 = vpack.c.bf16 %v3082, %v3082
    %v3163 = vpack.c.bf16 %v3083, %v3083
    %v3164 = vpack.c.bf16 %v3084, %v3084
    %v3165 = vpack.c.bf16 %v3085, %v3085
    %v3166 = vpack.c.bf16 %v3086, %v3086
    %v3167 = vpack.c.bf16 %v3087, %v3087
    %v3168 = vpack.c.bf16 %v3088, %v3088
    %v3169 = vpack.c.bf16 %v3089, %v3089
    %v3170 = vpack.c.bf16 %v3090, %v3090
    %v3171 = vpack.c.bf16 %v3091, %v3091
    %v3172 = vpack.c.bf16 %v3092, %v3092
    %v3173 = vpack.c.bf16 %v3093, %v3093
    %v3174 = vpack.c.bf16 %v3094, %v3094
    %v3175 = vpack.c.bf16 %v3095, %v3095
    %v3176 = vpack.c.bf16 %v3096, %v3096
    %v3177 = vpack.c.bf16 %v3097, %v3097
    %v3178 = vpack.c.bf16 %v3098, %v3098
    %v3179 = vpack.c.bf16 %v3099, %v3099
    %v3180 = vpack.c.bf16 %v3100, %v3100
    %v3181 = vpack.c.bf16 %v3101, %v3101
    %v3182 = vpack.c.bf16 %v3102, %v3102
    %v3183 = vpack.c.bf16 %v3103, %v3103
    %v3184 = vpack.c.bf16 %v3104, %v3104
    %v3185 = vpack.c.bf16 %v3105, %v3105
    %v3186 = vpack.c.bf16 %v3106, %v3106
    %v3187 = vpack.c.bf16 %v3107, %v3107
    %3188 = vst [vmem:[#allocation10] sm:$0xf] %v3156
    %3189 = vst [vmem:[#allocation10 + $0x4] sm:$0xf] %v3157
    %3190 = vst [vmem:[#allocation10 + $0x8] sm:$0xf] %v3158
    %3191 = vst [vmem:[#allocation10 + $0xc] sm:$0xf] %v3159
    %3192 = vst [vmem:[#allocation10 + $0x10] sm:$0xf] %v3160
    %3193 = vst [vmem:[#allocation10 + $0x14] sm:$0xf] %v3161
    %3194 = vst [vmem:[#allocation10 + $0x18] sm:$0xf] %v3162
    %3195 = vst [vmem:[#allocation10 + $0x1c] sm:$0xf] %v3163
    %3196 = vst [vmem:[#allocation10 + $0x20] sm:$0xf] %v3164
    %3197 = vst [vmem:[#allocation10 + $0x24] sm:$0xf] %v3165
    %3198 = vst [vmem:[#allocation10 + $0x28] sm:$0xf] %v3166
    %3199 = vst [vmem:[#allocation10 + $0x2c] sm:$0xf] %v3167
    %3200 = vst [vmem:[#allocation10 + $0x30] sm:$0xf] %v3168
    %3201 = vst [vmem:[#allocation10 + $0x34] sm:$0xf] %v3169
    %3202 = vst [vmem:[#allocation10 + $0x38] sm:$0xf] %v3170
    %3203 = vst [vmem:[#allocation10 + $0x3c] sm:$0xf] %v3171
    %3204 = vst [vmem:[#allocation10 + $0x40] sm:$0xf] %v3172
    %3205 = vst [vmem:[#allocation10 + $0x44] sm:$0xf] %v3173
    %3206 = vst [vmem:[#allocation10 + $0x48] sm:$0xf] %v3174
    %3207 = vst [vmem:[#allocation10 + $0x4c] sm:$0xf] %v3175
    %3208 = vst [vmem:[#allocation10 + $0x50] sm:$0xf] %v3176
    %3209 = vst [vmem:[#allocation10 + $0x54] sm:$0xf] %v3177
    %3210 = vst [vmem:[#allocation10 + $0x58] sm:$0xf] %v3178
    %3211 = vst [vmem:[#allocation10 + $0x5c] sm:$0xf] %v3179
    %3212 = vst [vmem:[#allocation10 + $0x60] sm:$0xf] %v3180
    %3213 = vst [vmem:[#allocation10 + $0x64] sm:$0xf] %v3181
    %3214 = vst [vmem:[#allocation10 + $0x68] sm:$0xf] %v3182
    %3215 = vst [vmem:[#allocation10 + $0x6c] sm:$0xf] %v3183
    %3216 = vst [vmem:[#allocation10 + $0x70] sm:$0xf] %v3184
    %3217 = vst [vmem:[#allocation10 + $0x74] sm:$0xf] %v3185
    %3218 = vst [vmem:[#allocation10 + $0x78] sm:$0xf] %v3186
    %3219 = vst [vmem:[#allocation10 + $0x7c] sm:$0xf] %v3187
    // Predicated region
    $region34: #{tpu_custom_call.1} parent=1 // pred_check
      _
    $region35: #{tpu_custom_call.1} parent=1 // pred_check_branch
      %3221 = sbr.rel (0) target = $region37
    $region36: #{tpu_custom_call.1} parent=1 // pred_region
      %3223 = vsyncadd [#allocation4], 0
      %s3224 = sshll.u32 [#allocation10], 4
      %s3225 = int_to_ptr.vmem [resolvable:$true] %s3224
      %s3226 = sshll.u32 %s4, 4
      %s3227 = int_to_ptr.hbm [resolvable:$true] %s3226
      %3232 = dma.vmem_to_hbm [thread:$0]  %s3225, 2048, %s3227, [#allocation4], 64, 64, 4
    $region37: #{tpu_custom_call.1} parent=1 // pred_fallthru
      _
    // Predicated region
    $region38: #{tpu_custom_call.1} parent=1 // pred_check
      _
    $region39: #{tpu_custom_call.1} parent=1 // pred_check_branch
      %3234 = sbr.rel (0) target = $region41
    $region40: #{tpu_custom_call.1} parent=1 // pred_region
      %3236 = vsyncadd [#allocation12], 0
      %s3238 = sshll.u32 [#allocation11], 4
      %s3239 = int_to_ptr.vmem [resolvable:$true] %s3238
      %s3240 = sshll.u32 %s5, 4
      %s3241 = int_to_ptr.hbm [resolvable:$true] %s3240
      %3243 = dma.vmem_to_hbm [thread:$0]  %s3239, 32, %s3241, [#allocation12]
    $region41: #{tpu_custom_call.1} parent=1 // pred_fallthru
      _
    // Predicated region
    $region42: #{tpu_custom_call.1} parent=1 // pred_check
      _
    $region43: #{tpu_custom_call.1} parent=1 // pred_check_branch
      %3245 = sbr.rel (0) target = $region45
    $region44: #{tpu_custom_call.1} parent=1 // pred_region
      %3247 = dma.done [#allocation4], 2048
    $region45: #{tpu_custom_call.1} parent=1 // pred_fallthru
      _
    // Predicated region
    $region46: #{tpu_custom_call.1} parent=1 // pred_check
      _
    $region47: #{tpu_custom_call.1} parent=1 // pred_check_branch
      %3249 = sbr.rel (0) target = $region49
    $region48: #{tpu_custom_call.1} parent=1 // pred_region
      %3251 = dma.done [#allocation12], 32
    $region49: #{tpu_custom_call.1} parent=1 // pred_fallthru
      _
    %3252 = vsyncpa [#allocation3], 1
    %3253 = vsyncpa [#allocation6], 1
    %3254 = vsyncpa [#allocation9], 1
    %3255 = vsyncpa [#allocation4], 1
    %3256 = vsyncpa [#allocation12], 1

</llo_original>
